<compile_context>
chip_gen: v7x
topology: tpu7x:2x2x1
jax: 0.10.0
libtpu: 0.0.40
codegen_flags: <defaults>
</compile_context>

<pallas_src>
import numpy as np

import jax
import jax.numpy as jnp
from jax.experimental import pallas as pl
from jax.experimental.pallas import tpu as pltpu


# Sizes pinned by the PyTorch module: LayerNorm([64, 16]) => S=64 patches of
# D=16 features; SelfAttention uses key_dim = patch_size = 16.
S = 64                 # number of patches
D = 16                 # per-patch feature dim
PPG = 128 // D         # patches per 128-lane group  -> 8
G = S // PPG           # number of groups            -> 8
F = PPG * D            # group width (lanes)         -> 128
LN_EPS = 1e-5


def encoder_kernel(x_ref, wq_ref, wk_ref, wv_ref,
                   w1_ref, b1_ref, w2_ref, b2_ref, o_ref):
    """Fused Encoder forward.

    x_ref        : (B, S, D)   input
    wq/wk/wv_ref : (D, D)      attention projections
    w1/w2_ref    : (G, F, F)   grouped block-diagonal per-patch MLP weights
    b1/b2_ref    : (G, 1, F)   grouped per-patch MLP biases
    o_ref        : (B, S*D)    lane-dense output (reshaped to (B,S,D) outside)
    """
    x = x_ref[...]
    B = x.shape[0]

    # ---------------- self-attention (natural (B, S, D) layout) -------------
    xf = x.reshape(B * S, D)                      # merge leading dims only
    # 1/3 score scale folded into q (cheaper than scaling the (B,S,S) scores).
    q = (jnp.dot(xf, wq_ref[...], preferred_element_type=jnp.float32)
         * (1.0 / 3.0)).reshape(B, S, D)
    k = jnp.dot(xf, wk_ref[...],
                preferred_element_type=jnp.float32).reshape(B, S, D)
    v = jnp.dot(xf, wv_ref[...],
                preferred_element_type=jnp.float32).reshape(B, S, D)

    scores = jnp.einsum('bqe,bke->bqk', q, k,
                        preferred_element_type=jnp.float32)       # (B, S, S)

    # Legacy F.softmax implicit dim on 3-D input => softmax over dim=0 (batch),
    # numerically stabilised.
    m = jnp.max(scores, axis=0, keepdims=True)
    e = jnp.exp(scores - m)
    p = e / jnp.sum(e, axis=0, keepdims=True)

    z = jnp.einsum('bqk,bke->bqe', p, v,
                   preferred_element_type=jnp.float32)            # (B, S, D)

    # ---------------- residual + LayerNorm([S, D]) (gamma=1, beta=0) --------
    h = x + z
    mu = jnp.mean(jnp.mean(h, axis=2, keepdims=True), axis=1, keepdims=True)
    c = h - mu
    var = jnp.mean(jnp.mean(c * c, axis=2, keepdims=True), axis=1, keepdims=True)
    xn = c * jax.lax.rsqrt(var + LN_EPS)                          # (B, S, D)

    # ---------------- 64 per-patch MLPs as G grouped 128x128 matmuls --------
    # Each group packs PPG=8 patches onto 128 lanes via static sublane slices
    # + lane concat (layout-safe; no minor-dim reshape), then two block-diag
    # 128x128 MXU matmuls reproduce the 8 independent (16->16->16) MLPs
    # exactly (off-diagonal blocks are structural zeros).
    y_groups = []
    for g in range(G):
        seg = jnp.concatenate(
            [xn[:, g * PPG + i, :] for i in range(PPG)], axis=-1)   # (B, F)
        a1 = jnp.maximum(
            jnp.dot(seg, w1_ref[g], preferred_element_type=jnp.float32)
            + b1_ref[g], 0.0)
        a2 = jnp.maximum(
            jnp.dot(a1, w2_ref[g], preferred_element_type=jnp.float32)
            + b2_ref[g], 0.0)                     # ReLU after 2nd linear (r2)
        y_groups.append(a2 + seg)                 # second residual, per group

    y = jnp.concatenate(y_groups, axis=-1)        # (B, S*D), lane-dense

    # ---------------- final LayerNorm([S, D]) over the flat 1024 lanes ------
    mu2 = jnp.mean(y, axis=-1, keepdims=True)
    c2 = y - mu2
    var2 = jnp.mean(c2 * c2, axis=-1, keepdims=True)
    o_ref[...] = c2 * jax.lax.rsqrt(var2 + LN_EPS)   # unmasked lane-dense store


def pack_patch_mlp(w, b):
    """One-time parameter repack (outside the jitted per-call path).

    w: (S, D, D) per-patch weights -> (G, F, F) block-diagonal groups
    b: (S, D)    per-patch biases  -> (G, 1, F)
    Group g, local patch i holds global patch p = g*PPG + i on the diagonal
    block [i*D:(i+1)*D, i*D:(i+1)*D].
    """
    w = np.asarray(w, dtype=np.float32)
    b = np.asarray(b, dtype=np.float32)
    wg = np.zeros((G, F, F), np.float32)
    for g in range(G):
        for i in range(PPG):
            p = g * PPG + i
            wg[g, i * D:(i + 1) * D, i * D:(i + 1) * D] = w[p]
    bg = b.reshape(G, 1, F)
    return jnp.asarray(wg), jnp.asarray(bg)


@jax.jit
def encoder_forward(x, wq, wk, wv, w1g, b1g, w2g, b2g):
    B = x.shape[0]
    vmem = pl.BlockSpec(memory_space=pltpu.MemorySpace.VMEM)
    # Grid-less, single TensorCore: total VMEM footprint ~1.1 MiB, far under
    # the scoped default on v5e/v6e/v7x.
    out_flat = pl.pallas_call(
        encoder_kernel,
        out_shape=jax.ShapeDtypeStruct((B, S * D), jnp.float32),
        in_specs=[vmem] * 8,
        out_specs=vmem,
    )(x, wq, wk, wv, w1g, b1g, w2g, b2g)
    return out_flat.reshape(B, S, D)     # free metadata reshape at HBM level


def encoder_reference(x, wq, wk, wv, w1, b1, w2, b2):
    """Pure-JAX reference with the same semantics (for correctness check)."""
    q = x @ wq
    k = x @ wk
    v = x @ wv
    scores = jnp.einsum('bqe,bke->bqk', q, k) / 3.0
    p = jax.nn.softmax(scores, axis=0)            # legacy implicit dim=0
    z = jnp.einsum('bqk,bke->bqe', p, v)

    def ln(t):
        mu = t.mean(axis=(1, 2), keepdims=True)
        var = ((t - mu) ** 2).mean(axis=(1, 2), keepdims=True)
        return (t - mu) * jax.lax.rsqrt(var + LN_EPS)

    xn = ln(x + z)
    h1 = jnp.maximum(jnp.einsum('bpd,pde->bpe', xn, w1) + b1[None], 0.0)
    h2 = jnp.maximum(jnp.einsum('bpd,pde->bpe', h1, w2) + b2[None], 0.0)
    return ln(h2 + xn)


if __name__ == "__main__":
    B = 2

    key = jax.random.PRNGKey(0)
    ks = jax.random.split(key, 8)

    x = jax.random.normal(ks[0], (B, S, D), jnp.float32)

    # SelfAttention params (torch.randn(patch_size, key_dim)).
    wq = jax.random.normal(ks[1], (D, D), jnp.float32)
    wk = jax.random.normal(ks[2], (D, D), jnp.float32)
    wv = jax.random.normal(ks[3], (D, D), jnp.float32)

    # 64 NeuralNetwork(16, 16) modules.  nn.Linear computes x @ W^T + b; here
    # (in, out)-shaped weights with the same init distribution are generated
    # directly and used as x @ W + b.
    bound = D ** -0.5
    w1 = jax.random.uniform(ks[4], (S, D, D), jnp.float32, -bound, bound)
    b1 = jax.random.uniform(ks[5], (S, D), jnp.float32, -bound, bound)
    w2 = jax.random.uniform(ks[6], (S, D, D), jnp.float32, -bound, bound)
    b2 = jax.random.uniform(ks[7], (S, D), jnp.float32, -bound, bound)

    # One-time repack into grouped block-diagonal MXU tiles (NOT per call).
    w1g, b1g = pack_patch_mlp(w1, b1)
    w2g, b2g = pack_patch_mlp(w2, b2)

    out = encoder_forward(x, wq, wk, wv, w1g, b1g, w2g, b2g)
    jax.block_until_ready(out)
    assert out.shape == (B, S, D) and out.dtype == jnp.float32

    ref = encoder_reference(x, wq, wk, wv, w1, b1, w2, b2)
    max_err = float(jnp.max(jnp.abs(out - ref)))
    assert jnp.allclose(out, ref, atol=1e-2, rtol=1e-2), max_err

    print("KERNEL_OK")
</pallas_src>

<mosaic_0001>
module attributes {stable_mosaic.version = 11 : i64} {
  func.func @encoder_kernel(%arg0: memref<2x64x16xf32, #tpu.memory_space<vmem>>, %arg1: memref<16x16xf32, #tpu.memory_space<vmem>>, %arg2: memref<16x16xf32, #tpu.memory_space<vmem>>, %arg3: memref<16x16xf32, #tpu.memory_space<vmem>>, %arg4: memref<8x128x128xf32, #tpu.memory_space<vmem>>, %arg5: memref<8x1x128xf32, #tpu.memory_space<vmem>>, %arg6: memref<8x128x128xf32, #tpu.memory_space<vmem>>, %arg7: memref<8x1x128xf32, #tpu.memory_space<vmem>>, %arg8: memref<2x1024xf32, #tpu.memory_space<vmem>>) attributes {dimension_semantics = [], scalar_prefetch = 0 : i64, scratch_operands = 0 : i64, tpu.core_type = #tpu.core_type<tc>} {
    %c0 = arith.constant 0 : index
    %c0_0 = arith.constant 0 : index
    %c0_1 = arith.constant 0 : index
    %0 = vector.load %arg0[%c0, %c0_0, %c0_1] : memref<2x64x16xf32, #tpu.memory_space<vmem>>, vector<2x64x16xf32>
    %1 = vector.shape_cast %0 : vector<2x64x16xf32> to vector<128x16xf32>
    %c0_2 = arith.constant 0 : index
    %c0_3 = arith.constant 0 : index
    %2 = vector.load %arg1[%c0_2, %c0_3] : memref<16x16xf32, #tpu.memory_space<vmem>>, vector<16x16xf32>
    %cst = arith.constant dense<0.000000e+00> : vector<128x16xf32>
    %3 = tpu.matmul %1, %2, %cst {dimension_numbers = #tpu.dot_dimension_numbers<[1], [0], [0], [1], [0, 0, 1, 1], [], []>} : vector<128x16xf32>, vector<16x16xf32>, vector<128x16xf32> -> vector<128x16xf32>
    %cst_4 = arith.constant 0.333333343 : f32
    %4 = vector.broadcast %cst_4 : f32 to vector<128x16xf32>
    %5 = arith.mulf %3, %4 : vector<128x16xf32>
    %6 = vector.shape_cast %5 : vector<128x16xf32> to vector<2x64x16xf32>
    %c0_5 = arith.constant 0 : index
    %c0_6 = arith.constant 0 : index
    %7 = vector.load %arg2[%c0_5, %c0_6] : memref<16x16xf32, #tpu.memory_space<vmem>>, vector<16x16xf32>
    %cst_7 = arith.constant dense<0.000000e+00> : vector<128x16xf32>
    %8 = tpu.matmul %1, %7, %cst_7 {dimension_numbers = #tpu.dot_dimension_numbers<[1], [0], [0], [1], [0, 0, 1, 1], [], []>} : vector<128x16xf32>, vector<16x16xf32>, vector<128x16xf32> -> vector<128x16xf32>
    %9 = vector.shape_cast %8 : vector<128x16xf32> to vector<2x64x16xf32>
    %c0_8 = arith.constant 0 : index
    %c0_9 = arith.constant 0 : index
    %10 = vector.load %arg3[%c0_8, %c0_9] : memref<16x16xf32, #tpu.memory_space<vmem>>, vector<16x16xf32>
    %cst_10 = arith.constant dense<0.000000e+00> : vector<128x16xf32>
    %11 = tpu.matmul %1, %10, %cst_10 {dimension_numbers = #tpu.dot_dimension_numbers<[1], [0], [0], [1], [0, 0, 1, 1], [], []>} : vector<128x16xf32>, vector<16x16xf32>, vector<128x16xf32> -> vector<128x16xf32>
    %12 = vector.shape_cast %11 : vector<128x16xf32> to vector<2x64x16xf32>
    "tpu.trace_start"() <{level = 10 : i32, message = "bqe,bke->bqk"}> : () -> ()
    %cst_11 = arith.constant dense<0.000000e+00> : vector<2x64x64xf32>
    %13 = tpu.matmul %6, %9, %cst_11 {dimension_numbers = #tpu.dot_dimension_numbers<[2], [2], [1], [1], [0, 0, 0, 1, 1, 1], [0], [0]>} : vector<2x64x16xf32>, vector<2x64x16xf32>, vector<2x64x64xf32> -> vector<2x64x64xf32>
    "tpu.trace_stop"() : () -> ()
    %cst_12 = arith.constant dense<0xFF800000> : vector<64x64xf32>
    %14 = vector.multi_reduction <maximumf>, %13, %cst_12 [0] : vector<2x64x64xf32> to vector<64x64xf32>
    %15 = vector.shape_cast %14 : vector<64x64xf32> to vector<1x64x64xf32>
    %16 = vector.broadcast %15 : vector<1x64x64xf32> to vector<2x64x64xf32>
    %17 = arith.subf %13, %16 : vector<2x64x64xf32>
    %18 = math.exp %17 : vector<2x64x64xf32>
    %cst_13 = arith.constant dense<0.000000e+00> : vector<64x64xf32>
    %19 = vector.multi_reduction <add>, %18, %cst_13 [0] : vector<2x64x64xf32> to vector<64x64xf32>
    %20 = vector.shape_cast %19 : vector<64x64xf32> to vector<1x64x64xf32>
    %21 = vector.broadcast %20 : vector<1x64x64xf32> to vector<2x64x64xf32>
    %22 = arith.divf %18, %21 : vector<2x64x64xf32>
    "tpu.trace_start"() <{level = 10 : i32, message = "bqk,bke->bqe"}> : () -> ()
    %cst_14 = arith.constant dense<0.000000e+00> : vector<2x64x16xf32>
    %23 = tpu.matmul %22, %12, %cst_14 {dimension_numbers = #tpu.dot_dimension_numbers<[2], [1], [1], [2], [0, 0, 0, 1, 1, 2], [0], [0]>} : vector<2x64x64xf32>, vector<2x64x16xf32>, vector<2x64x16xf32> -> vector<2x64x16xf32>
    "tpu.trace_stop"() : () -> ()
    %24 = arith.addf %0, %23 : vector<2x64x16xf32>
    %cst_15 = arith.constant dense<0.000000e+00> : vector<2x64xf32>
    %25 = vector.multi_reduction <add>, %24, %cst_15 [2] : vector<2x64x16xf32> to vector<2x64xf32>
    %26 = vector.shape_cast %25 : vector<2x64xf32> to vector<2x64x1xf32>
    %cst_16 = arith.constant 1.600000e+01 : f32
    %27 = vector.broadcast %cst_16 : f32 to vector<2x64x1xf32>
    %28 = arith.divf %26, %27 : vector<2x64x1xf32>
    %cst_17 = arith.constant dense<0.000000e+00> : vector<2x1xf32>
    %29 = vector.multi_reduction <add>, %28, %cst_17 [1] : vector<2x64x1xf32> to vector<2x1xf32>
    %30 = vector.shape_cast %29 : vector<2x1xf32> to vector<2x1x1xf32>
    %cst_18 = arith.constant 6.400000e+01 : f32
    %31 = vector.broadcast %cst_18 : f32 to vector<2x1x1xf32>
    %32 = arith.divf %30, %31 : vector<2x1x1xf32>
    %33 = vector.broadcast %32 : vector<2x1x1xf32> to vector<2x64x16xf32>
    %34 = arith.subf %24, %33 : vector<2x64x16xf32>
    %35 = arith.mulf %34, %34 : vector<2x64x16xf32>
    %cst_19 = arith.constant dense<0.000000e+00> : vector<2x64xf32>
    %36 = vector.multi_reduction <add>, %35, %cst_19 [2] : vector<2x64x16xf32> to vector<2x64xf32>
    %37 = vector.shape_cast %36 : vector<2x64xf32> to vector<2x64x1xf32>
    %cst_20 = arith.constant 1.600000e+01 : f32
    %38 = vector.broadcast %cst_20 : f32 to vector<2x64x1xf32>
    %39 = arith.divf %37, %38 : vector<2x64x1xf32>
    %cst_21 = arith.constant dense<0.000000e+00> : vector<2x1xf32>
    %40 = vector.multi_reduction <add>, %39, %cst_21 [1] : vector<2x64x1xf32> to vector<2x1xf32>
    %41 = vector.shape_cast %40 : vector<2x1xf32> to vector<2x1x1xf32>
    %cst_22 = arith.constant 6.400000e+01 : f32
    %42 = vector.broadcast %cst_22 : f32 to vector<2x1x1xf32>
    %43 = arith.divf %41, %42 : vector<2x1x1xf32>
    %cst_23 = arith.constant 9.99999974E-6 : f32
    %44 = vector.broadcast %cst_23 : f32 to vector<2x1x1xf32>
    %45 = arith.addf %43, %44 : vector<2x1x1xf32>
    %46 = math.rsqrt %45 : vector<2x1x1xf32>
    %47 = vector.broadcast %46 : vector<2x1x1xf32> to vector<2x64x16xf32>
    %48 = arith.mulf %34, %47 : vector<2x64x16xf32>
    %49 = vector.extract_strided_slice %48 {offsets = [0, 0, 0], sizes = [2, 1, 16], strides = [1, 1, 1]} : vector<2x64x16xf32> to vector<2x1x16xf32>
    %50 = vector.shape_cast %49 : vector<2x1x16xf32> to vector<2x16xf32>
    %51 = vector.extract_strided_slice %48 {offsets = [0, 1, 0], sizes = [2, 1, 16], strides = [1, 1, 1]} : vector<2x64x16xf32> to vector<2x1x16xf32>
    %52 = vector.shape_cast %51 : vector<2x1x16xf32> to vector<2x16xf32>
    %53 = vector.extract_strided_slice %48 {offsets = [0, 2, 0], sizes = [2, 1, 16], strides = [1, 1, 1]} : vector<2x64x16xf32> to vector<2x1x16xf32>
    %54 = vector.shape_cast %53 : vector<2x1x16xf32> to vector<2x16xf32>
    %55 = vector.extract_strided_slice %48 {offsets = [0, 3, 0], sizes = [2, 1, 16], strides = [1, 1, 1]} : vector<2x64x16xf32> to vector<2x1x16xf32>
    %56 = vector.shape_cast %55 : vector<2x1x16xf32> to vector<2x16xf32>
    %57 = vector.extract_strided_slice %48 {offsets = [0, 4, 0], sizes = [2, 1, 16], strides = [1, 1, 1]} : vector<2x64x16xf32> to vector<2x1x16xf32>
    %58 = vector.shape_cast %57 : vector<2x1x16xf32> to vector<2x16xf32>
    %59 = vector.extract_strided_slice %48 {offsets = [0, 5, 0], sizes = [2, 1, 16], strides = [1, 1, 1]} : vector<2x64x16xf32> to vector<2x1x16xf32>
    %60 = vector.shape_cast %59 : vector<2x1x16xf32> to vector<2x16xf32>
    %61 = vector.extract_strided_slice %48 {offsets = [0, 6, 0], sizes = [2, 1, 16], strides = [1, 1, 1]} : vector<2x64x16xf32> to vector<2x1x16xf32>
    %62 = vector.shape_cast %61 : vector<2x1x16xf32> to vector<2x16xf32>
    %63 = vector.extract_strided_slice %48 {offsets = [0, 7, 0], sizes = [2, 1, 16], strides = [1, 1, 1]} : vector<2x64x16xf32> to vector<2x1x16xf32>
    %64 = vector.shape_cast %63 : vector<2x1x16xf32> to vector<2x16xf32>
    %65 = tpu.concatenate %50, %52, %54, %56, %58, %60, %62, %64 in 1 : vector<2x16xf32>, vector<2x16xf32>, vector<2x16xf32>, vector<2x16xf32>, vector<2x16xf32>, vector<2x16xf32>, vector<2x16xf32>, vector<2x16xf32> -> vector<2x128xf32>
    %c0_24 = arith.constant 0 : index
    %c0_25 = arith.constant 0 : index
    %c0_26 = arith.constant 0 : index
    %66 = vector.load %arg4[%c0_24, %c0_25, %c0_26] : memref<8x128x128xf32, #tpu.memory_space<vmem>>, vector<1x128x128xf32>
    %67 = vector.shape_cast %66 : vector<1x128x128xf32> to vector<128x128xf32>
    %cst_27 = arith.constant dense<0.000000e+00> : vector<2x128xf32>
    %68 = tpu.matmul %65, %67, %cst_27 {dimension_numbers = #tpu.dot_dimension_numbers<[1], [0], [0], [1], [0, 0, 1, 1], [], []>} : vector<2x128xf32>, vector<128x128xf32>, vector<2x128xf32> -> vector<2x128xf32>
    %c0_28 = arith.constant 0 : index
    %c0_29 = arith.constant 0 : index
    %c0_30 = arith.constant 0 : index
    %69 = vector.load %arg5[%c0_28, %c0_29, %c0_30] : memref<8x1x128xf32, #tpu.memory_space<vmem>>, vector<1x1x128xf32>
    %70 = vector.shape_cast %69 : vector<1x1x128xf32> to vector<1x128xf32>
    %71 = vector.broadcast %70 : vector<1x128xf32> to vector<2x128xf32>
    %72 = arith.addf %68, %71 : vector<2x128xf32>
    %cst_31 = arith.constant 0.000000e+00 : f32
    %73 = vector.broadcast %cst_31 : f32 to vector<2x128xf32>
    %74 = arith.maximumf %72, %73 : vector<2x128xf32>
    %c0_32 = arith.constant 0 : index
    %c0_33 = arith.constant 0 : index
    %c0_34 = arith.constant 0 : index
    %75 = vector.load %arg6[%c0_32, %c0_33, %c0_34] : memref<8x128x128xf32, #tpu.memory_space<vmem>>, vector<1x128x128xf32>
    %76 = vector.shape_cast %75 : vector<1x128x128xf32> to vector<128x128xf32>
    %cst_35 = arith.constant dense<0.000000e+00> : vector<2x128xf32>
    %77 = tpu.matmul %74, %76, %cst_35 {dimension_numbers = #tpu.dot_dimension_numbers<[1], [0], [0], [1], [0, 0, 1, 1], [], []>} : vector<2x128xf32>, vector<128x128xf32>, vector<2x128xf32> -> vector<2x128xf32>
    %c0_36 = arith.constant 0 : index
    %c0_37 = arith.constant 0 : index
    %c0_38 = arith.constant 0 : index
    %78 = vector.load %arg7[%c0_36, %c0_37, %c0_38] : memref<8x1x128xf32, #tpu.memory_space<vmem>>, vector<1x1x128xf32>
    %79 = vector.shape_cast %78 : vector<1x1x128xf32> to vector<1x128xf32>
    %80 = vector.broadcast %79 : vector<1x128xf32> to vector<2x128xf32>
    %81 = arith.addf %77, %80 : vector<2x128xf32>
    %cst_39 = arith.constant 0.000000e+00 : f32
    %82 = vector.broadcast %cst_39 : f32 to vector<2x128xf32>
    %83 = arith.maximumf %81, %82 : vector<2x128xf32>
    %84 = arith.addf %83, %65 : vector<2x128xf32>
    %85 = vector.extract_strided_slice %48 {offsets = [0, 8, 0], sizes = [2, 1, 16], strides = [1, 1, 1]} : vector<2x64x16xf32> to vector<2x1x16xf32>
    %86 = vector.shape_cast %85 : vector<2x1x16xf32> to vector<2x16xf32>
    %87 = vector.extract_strided_slice %48 {offsets = [0, 9, 0], sizes = [2, 1, 16], strides = [1, 1, 1]} : vector<2x64x16xf32> to vector<2x1x16xf32>
    %88 = vector.shape_cast %87 : vector<2x1x16xf32> to vector<2x16xf32>
    %89 = vector.extract_strided_slice %48 {offsets = [0, 10, 0], sizes = [2, 1, 16], strides = [1, 1, 1]} : vector<2x64x16xf32> to vector<2x1x16xf32>
    %90 = vector.shape_cast %89 : vector<2x1x16xf32> to vector<2x16xf32>
    %91 = vector.extract_strided_slice %48 {offsets = [0, 11, 0], sizes = [2, 1, 16], strides = [1, 1, 1]} : vector<2x64x16xf32> to vector<2x1x16xf32>
    %92 = vector.shape_cast %91 : vector<2x1x16xf32> to vector<2x16xf32>
    %93 = vector.extract_strided_slice %48 {offsets = [0, 12, 0], sizes = [2, 1, 16], strides = [1, 1, 1]} : vector<2x64x16xf32> to vector<2x1x16xf32>
    %94 = vector.shape_cast %93 : vector<2x1x16xf32> to vector<2x16xf32>
    %95 = vector.extract_strided_slice %48 {offsets = [0, 13, 0], sizes = [2, 1, 16], strides = [1, 1, 1]} : vector<2x64x16xf32> to vector<2x1x16xf32>
    %96 = vector.shape_cast %95 : vector<2x1x16xf32> to vector<2x16xf32>
    %97 = vector.extract_strided_slice %48 {offsets = [0, 14, 0], sizes = [2, 1, 16], strides = [1, 1, 1]} : vector<2x64x16xf32> to vector<2x1x16xf32>
    %98 = vector.shape_cast %97 : vector<2x1x16xf32> to vector<2x16xf32>
    %99 = vector.extract_strided_slice %48 {offsets = [0, 15, 0], sizes = [2, 1, 16], strides = [1, 1, 1]} : vector<2x64x16xf32> to vector<2x1x16xf32>
    %100 = vector.shape_cast %99 : vector<2x1x16xf32> to vector<2x16xf32>
    %101 = tpu.concatenate %86, %88, %90, %92, %94, %96, %98, %100 in 1 : vector<2x16xf32>, vector<2x16xf32>, vector<2x16xf32>, vector<2x16xf32>, vector<2x16xf32>, vector<2x16xf32>, vector<2x16xf32>, vector<2x16xf32> -> vector<2x128xf32>
    %c1 = arith.constant 1 : index
    %c0_40 = arith.constant 0 : index
    %c0_41 = arith.constant 0 : index
    %102 = vector.load %arg4[%c1, %c0_40, %c0_41] : memref<8x128x128xf32, #tpu.memory_space<vmem>>, vector<1x128x128xf32>
    %103 = vector.shape_cast %102 : vector<1x128x128xf32> to vector<128x128xf32>
    %cst_42 = arith.constant dense<0.000000e+00> : vector<2x128xf32>
    %104 = tpu.matmul %101, %103, %cst_42 {dimension_numbers = #tpu.dot_dimension_numbers<[1], [0], [0], [1], [0, 0, 1, 1], [], []>} : vector<2x128xf32>, vector<128x128xf32>, vector<2x128xf32> -> vector<2x128xf32>
    %c1_43 = arith.constant 1 : index
    %c0_44 = arith.constant 0 : index
    %c0_45 = arith.constant 0 : index
    %105 = vector.load %arg5[%c1_43, %c0_44, %c0_45] : memref<8x1x128xf32, #tpu.memory_space<vmem>>, vector<1x1x128xf32>
    %106 = vector.shape_cast %105 : vector<1x1x128xf32> to vector<1x128xf32>
    %107 = vector.broadcast %106 : vector<1x128xf32> to vector<2x128xf32>
    %108 = arith.addf %104, %107 : vector<2x128xf32>
    %cst_46 = arith.constant 0.000000e+00 : f32
    %109 = vector.broadcast %cst_46 : f32 to vector<2x128xf32>
    %110 = arith.maximumf %108, %109 : vector<2x128xf32>
    %c1_47 = arith.constant 1 : index
    %c0_48 = arith.constant 0 : index
    %c0_49 = arith.constant 0 : index
    %111 = vector.load %arg6[%c1_47, %c0_48, %c0_49] : memref<8x128x128xf32, #tpu.memory_space<vmem>>, vector<1x128x128xf32>
    %112 = vector.shape_cast %111 : vector<1x128x128xf32> to vector<128x128xf32>
    %cst_50 = arith.constant dense<0.000000e+00> : vector<2x128xf32>
    %113 = tpu.matmul %110, %112, %cst_50 {dimension_numbers = #tpu.dot_dimension_numbers<[1], [0], [0], [1], [0, 0, 1, 1], [], []>} : vector<2x128xf32>, vector<128x128xf32>, vector<2x128xf32> -> vector<2x128xf32>
    %c1_51 = arith.constant 1 : index
    %c0_52 = arith.constant 0 : index
    %c0_53 = arith.constant 0 : index
    %114 = vector.load %arg7[%c1_51, %c0_52, %c0_53] : memref<8x1x128xf32, #tpu.memory_space<vmem>>, vector<1x1x128xf32>
    %115 = vector.shape_cast %114 : vector<1x1x128xf32> to vector<1x128xf32>
    %116 = vector.broadcast %115 : vector<1x128xf32> to vector<2x128xf32>
    %117 = arith.addf %113, %116 : vector<2x128xf32>
    %cst_54 = arith.constant 0.000000e+00 : f32
    %118 = vector.broadcast %cst_54 : f32 to vector<2x128xf32>
    %119 = arith.maximumf %117, %118 : vector<2x128xf32>
    %120 = arith.addf %119, %101 : vector<2x128xf32>
    %121 = vector.extract_strided_slice %48 {offsets = [0, 16, 0], sizes = [2, 1, 16], strides = [1, 1, 1]} : vector<2x64x16xf32> to vector<2x1x16xf32>
    %122 = vector.shape_cast %121 : vector<2x1x16xf32> to vector<2x16xf32>
    %123 = vector.extract_strided_slice %48 {offsets = [0, 17, 0], sizes = [2, 1, 16], strides = [1, 1, 1]} : vector<2x64x16xf32> to vector<2x1x16xf32>
    %124 = vector.shape_cast %123 : vector<2x1x16xf32> to vector<2x16xf32>
    %125 = vector.extract_strided_slice %48 {offsets = [0, 18, 0], sizes = [2, 1, 16], strides = [1, 1, 1]} : vector<2x64x16xf32> to vector<2x1x16xf32>
    %126 = vector.shape_cast %125 : vector<2x1x16xf32> to vector<2x16xf32>
    %127 = vector.extract_strided_slice %48 {offsets = [0, 19, 0], sizes = [2, 1, 16], strides = [1, 1, 1]} : vector<2x64x16xf32> to vector<2x1x16xf32>
    %128 = vector.shape_cast %127 : vector<2x1x16xf32> to vector<2x16xf32>
    %129 = vector.extract_strided_slice %48 {offsets = [0, 20, 0], sizes = [2, 1, 16], strides = [1, 1, 1]} : vector<2x64x16xf32> to vector<2x1x16xf32>
    %130 = vector.shape_cast %129 : vector<2x1x16xf32> to vector<2x16xf32>
    %131 = vector.extract_strided_slice %48 {offsets = [0, 21, 0], sizes = [2, 1, 16], strides = [1, 1, 1]} : vector<2x64x16xf32> to vector<2x1x16xf32>
    %132 = vector.shape_cast %131 : vector<2x1x16xf32> to vector<2x16xf32>
    %133 = vector.extract_strided_slice %48 {offsets = [0, 22, 0], sizes = [2, 1, 16], strides = [1, 1, 1]} : vector<2x64x16xf32> to vector<2x1x16xf32>
    %134 = vector.shape_cast %133 : vector<2x1x16xf32> to vector<2x16xf32>
    %135 = vector.extract_strided_slice %48 {offsets = [0, 23, 0], sizes = [2, 1, 16], strides = [1, 1, 1]} : vector<2x64x16xf32> to vector<2x1x16xf32>
    %136 = vector.shape_cast %135 : vector<2x1x16xf32> to vector<2x16xf32>
    %137 = tpu.concatenate %122, %124, %126, %128, %130, %132, %134, %136 in 1 : vector<2x16xf32>, vector<2x16xf32>, vector<2x16xf32>, vector<2x16xf32>, vector<2x16xf32>, vector<2x16xf32>, vector<2x16xf32>, vector<2x16xf32> -> vector<2x128xf32>
    %c2 = arith.constant 2 : index
    %c0_55 = arith.constant 0 : index
    %c0_56 = arith.constant 0 : index
    %138 = vector.load %arg4[%c2, %c0_55, %c0_56] : memref<8x128x128xf32, #tpu.memory_space<vmem>>, vector<1x128x128xf32>
    %139 = vector.shape_cast %138 : vector<1x128x128xf32> to vector<128x128xf32>
    %cst_57 = arith.constant dense<0.000000e+00> : vector<2x128xf32>
    %140 = tpu.matmul %137, %139, %cst_57 {dimension_numbers = #tpu.dot_dimension_numbers<[1], [0], [0], [1], [0, 0, 1, 1], [], []>} : vector<2x128xf32>, vector<128x128xf32>, vector<2x128xf32> -> vector<2x128xf32>
    %c2_58 = arith.constant 2 : index
    %c0_59 = arith.constant 0 : index
    %c0_60 = arith.constant 0 : index
    %141 = vector.load %arg5[%c2_58, %c0_59, %c0_60] : memref<8x1x128xf32, #tpu.memory_space<vmem>>, vector<1x1x128xf32>
    %142 = vector.shape_cast %141 : vector<1x1x128xf32> to vector<1x128xf32>
    %143 = vector.broadcast %142 : vector<1x128xf32> to vector<2x128xf32>
    %144 = arith.addf %140, %143 : vector<2x128xf32>
    %cst_61 = arith.constant 0.000000e+00 : f32
    %145 = vector.broadcast %cst_61 : f32 to vector<2x128xf32>
    %146 = arith.maximumf %144, %145 : vector<2x128xf32>
    %c2_62 = arith.constant 2 : index
    %c0_63 = arith.constant 0 : index
    %c0_64 = arith.constant 0 : index
    %147 = vector.load %arg6[%c2_62, %c0_63, %c0_64] : memref<8x128x128xf32, #tpu.memory_space<vmem>>, vector<1x128x128xf32>
    %148 = vector.shape_cast %147 : vector<1x128x128xf32> to vector<128x128xf32>
    %cst_65 = arith.constant dense<0.000000e+00> : vector<2x128xf32>
    %149 = tpu.matmul %146, %148, %cst_65 {dimension_numbers = #tpu.dot_dimension_numbers<[1], [0], [0], [1], [0, 0, 1, 1], [], []>} : vector<2x128xf32>, vector<128x128xf32>, vector<2x128xf32> -> vector<2x128xf32>
    %c2_66 = arith.constant 2 : index
    %c0_67 = arith.constant 0 : index
    %c0_68 = arith.constant 0 : index
    %150 = vector.load %arg7[%c2_66, %c0_67, %c0_68] : memref<8x1x128xf32, #tpu.memory_space<vmem>>, vector<1x1x128xf32>
    %151 = vector.shape_cast %150 : vector<1x1x128xf32> to vector<1x128xf32>
    %152 = vector.broadcast %151 : vector<1x128xf32> to vector<2x128xf32>
    %153 = arith.addf %149, %152 : vector<2x128xf32>
    %cst_69 = arith.constant 0.000000e+00 : f32
    %154 = vector.broadcast %cst_69 : f32 to vector<2x128xf32>
    %155 = arith.maximumf %153, %154 : vector<2x128xf32>
    %156 = arith.addf %155, %137 : vector<2x128xf32>
    %157 = vector.extract_strided_slice %48 {offsets = [0, 24, 0], sizes = [2, 1, 16], strides = [1, 1, 1]} : vector<2x64x16xf32> to vector<2x1x16xf32>
    %158 = vector.shape_cast %157 : vector<2x1x16xf32> to vector<2x16xf32>
    %159 = vector.extract_strided_slice %48 {offsets = [0, 25, 0], sizes = [2, 1, 16], strides = [1, 1, 1]} : vector<2x64x16xf32> to vector<2x1x16xf32>
    %160 = vector.shape_cast %159 : vector<2x1x16xf32> to vector<2x16xf32>
    %161 = vector.extract_strided_slice %48 {offsets = [0, 26, 0], sizes = [2, 1, 16], strides = [1, 1, 1]} : vector<2x64x16xf32> to vector<2x1x16xf32>
    %162 = vector.shape_cast %161 : vector<2x1x16xf32> to vector<2x16xf32>
    %163 = vector.extract_strided_slice %48 {offsets = [0, 27, 0], sizes = [2, 1, 16], strides = [1, 1, 1]} : vector<2x64x16xf32> to vector<2x1x16xf32>
    %164 = vector.shape_cast %163 : vector<2x1x16xf32> to vector<2x16xf32>
    %165 = vector.extract_strided_slice %48 {offsets = [0, 28, 0], sizes = [2, 1, 16], strides = [1, 1, 1]} : vector<2x64x16xf32> to vector<2x1x16xf32>
    %166 = vector.shape_cast %165 : vector<2x1x16xf32> to vector<2x16xf32>
    %167 = vector.extract_strided_slice %48 {offsets = [0, 29, 0], sizes = [2, 1, 16], strides = [1, 1, 1]} : vector<2x64x16xf32> to vector<2x1x16xf32>
    %168 = vector.shape_cast %167 : vector<2x1x16xf32> to vector<2x16xf32>
    %169 = vector.extract_strided_slice %48 {offsets = [0, 30, 0], sizes = [2, 1, 16], strides = [1, 1, 1]} : vector<2x64x16xf32> to vector<2x1x16xf32>
    %170 = vector.shape_cast %169 : vector<2x1x16xf32> to vector<2x16xf32>
    %171 = vector.extract_strided_slice %48 {offsets = [0, 31, 0], sizes = [2, 1, 16], strides = [1, 1, 1]} : vector<2x64x16xf32> to vector<2x1x16xf32>
    %172 = vector.shape_cast %171 : vector<2x1x16xf32> to vector<2x16xf32>
    %173 = tpu.concatenate %158, %160, %162, %164, %166, %168, %170, %172 in 1 : vector<2x16xf32>, vector<2x16xf32>, vector<2x16xf32>, vector<2x16xf32>, vector<2x16xf32>, vector<2x16xf32>, vector<2x16xf32>, vector<2x16xf32> -> vector<2x128xf32>
    %c3 = arith.constant 3 : index
    %c0_70 = arith.constant 0 : index
    %c0_71 = arith.constant 0 : index
    %174 = vector.load %arg4[%c3, %c0_70, %c0_71] : memref<8x128x128xf32, #tpu.memory_space<vmem>>, vector<1x128x128xf32>
    %175 = vector.shape_cast %174 : vector<1x128x128xf32> to vector<128x128xf32>
    %cst_72 = arith.constant dense<0.000000e+00> : vector<2x128xf32>
    %176 = tpu.matmul %173, %175, %cst_72 {dimension_numbers = #tpu.dot_dimension_numbers<[1], [0], [0], [1], [0, 0, 1, 1], [], []>} : vector<2x128xf32>, vector<128x128xf32>, vector<2x128xf32> -> vector<2x128xf32>
    %c3_73 = arith.constant 3 : index
    %c0_74 = arith.constant 0 : index
    %c0_75 = arith.constant 0 : index
    %177 = vector.load %arg5[%c3_73, %c0_74, %c0_75] : memref<8x1x128xf32, #tpu.memory_space<vmem>>, vector<1x1x128xf32>
    %178 = vector.shape_cast %177 : vector<1x1x128xf32> to vector<1x128xf32>
    %179 = vector.broadcast %178 : vector<1x128xf32> to vector<2x128xf32>
    %180 = arith.addf %176, %179 : vector<2x128xf32>
    %cst_76 = arith.constant 0.000000e+00 : f32
    %181 = vector.broadcast %cst_76 : f32 to vector<2x128xf32>
    %182 = arith.maximumf %180, %181 : vector<2x128xf32>
    %c3_77 = arith.constant 3 : index
    %c0_78 = arith.constant 0 : index
    %c0_79 = arith.constant 0 : index
    %183 = vector.load %arg6[%c3_77, %c0_78, %c0_79] : memref<8x128x128xf32, #tpu.memory_space<vmem>>, vector<1x128x128xf32>
    %184 = vector.shape_cast %183 : vector<1x128x128xf32> to vector<128x128xf32>
    %cst_80 = arith.constant dense<0.000000e+00> : vector<2x128xf32>
    %185 = tpu.matmul %182, %184, %cst_80 {dimension_numbers = #tpu.dot_dimension_numbers<[1], [0], [0], [1], [0, 0, 1, 1], [], []>} : vector<2x128xf32>, vector<128x128xf32>, vector<2x128xf32> -> vector<2x128xf32>
    %c3_81 = arith.constant 3 : index
    %c0_82 = arith.constant 0 : index
    %c0_83 = arith.constant 0 : index
    %186 = vector.load %arg7[%c3_81, %c0_82, %c0_83] : memref<8x1x128xf32, #tpu.memory_space<vmem>>, vector<1x1x128xf32>
    %187 = vector.shape_cast %186 : vector<1x1x128xf32> to vector<1x128xf32>
    %188 = vector.broadcast %187 : vector<1x128xf32> to vector<2x128xf32>
    %189 = arith.addf %185, %188 : vector<2x128xf32>
    %cst_84 = arith.constant 0.000000e+00 : f32
    %190 = vector.broadcast %cst_84 : f32 to vector<2x128xf32>
    %191 = arith.maximumf %189, %190 : vector<2x128xf32>
    %192 = arith.addf %191, %173 : vector<2x128xf32>
    %193 = vector.extract_strided_slice %48 {offsets = [0, 32, 0], sizes = [2, 1, 16], strides = [1, 1, 1]} : vector<2x64x16xf32> to vector<2x1x16xf32>
    %194 = vector.shape_cast %193 : vector<2x1x16xf32> to vector<2x16xf32>
    %195 = vector.extract_strided_slice %48 {offsets = [0, 33, 0], sizes = [2, 1, 16], strides = [1, 1, 1]} : vector<2x64x16xf32> to vector<2x1x16xf32>
    %196 = vector.shape_cast %195 : vector<2x1x16xf32> to vector<2x16xf32>
    %197 = vector.extract_strided_slice %48 {offsets = [0, 34, 0], sizes = [2, 1, 16], strides = [1, 1, 1]} : vector<2x64x16xf32> to vector<2x1x16xf32>
    %198 = vector.shape_cast %197 : vector<2x1x16xf32> to vector<2x16xf32>
    %199 = vector.extract_strided_slice %48 {offsets = [0, 35, 0], sizes = [2, 1, 16], strides = [1, 1, 1]} : vector<2x64x16xf32> to vector<2x1x16xf32>
    %200 = vector.shape_cast %199 : vector<2x1x16xf32> to vector<2x16xf32>
    %201 = vector.extract_strided_slice %48 {offsets = [0, 36, 0], sizes = [2, 1, 16], strides = [1, 1, 1]} : vector<2x64x16xf32> to vector<2x1x16xf32>
    %202 = vector.shape_cast %201 : vector<2x1x16xf32> to vector<2x16xf32>
    %203 = vector.extract_strided_slice %48 {offsets = [0, 37, 0], sizes = [2, 1, 16], strides = [1, 1, 1]} : vector<2x64x16xf32> to vector<2x1x16xf32>
    %204 = vector.shape_cast %203 : vector<2x1x16xf32> to vector<2x16xf32>
    %205 = vector.extract_strided_slice %48 {offsets = [0, 38, 0], sizes = [2, 1, 16], strides = [1, 1, 1]} : vector<2x64x16xf32> to vector<2x1x16xf32>
    %206 = vector.shape_cast %205 : vector<2x1x16xf32> to vector<2x16xf32>
    %207 = vector.extract_strided_slice %48 {offsets = [0, 39, 0], sizes = [2, 1, 16], strides = [1, 1, 1]} : vector<2x64x16xf32> to vector<2x1x16xf32>
    %208 = vector.shape_cast %207 : vector<2x1x16xf32> to vector<2x16xf32>
    %209 = tpu.concatenate %194, %196, %198, %200, %202, %204, %206, %208 in 1 : vector<2x16xf32>, vector<2x16xf32>, vector<2x16xf32>, vector<2x16xf32>, vector<2x16xf32>, vector<2x16xf32>, vector<2x16xf32>, vector<2x16xf32> -> vector<2x128xf32>
    %c4 = arith.constant 4 : index
    %c0_85 = arith.constant 0 : index
    %c0_86 = arith.constant 0 : index
    %210 = vector.load %arg4[%c4, %c0_85, %c0_86] : memref<8x128x128xf32, #tpu.memory_space<vmem>>, vector<1x128x128xf32>
    %211 = vector.shape_cast %210 : vector<1x128x128xf32> to vector<128x128xf32>
    %cst_87 = arith.constant dense<0.000000e+00> : vector<2x128xf32>
    %212 = tpu.matmul %209, %211, %cst_87 {dimension_numbers = #tpu.dot_dimension_numbers<[1], [0], [0], [1], [0, 0, 1, 1], [], []>} : vector<2x128xf32>, vector<128x128xf32>, vector<2x128xf32> -> vector<2x128xf32>
    %c4_88 = arith.constant 4 : index
    %c0_89 = arith.constant 0 : index
    %c0_90 = arith.constant 0 : index
    %213 = vector.load %arg5[%c4_88, %c0_89, %c0_90] : memref<8x1x128xf32, #tpu.memory_space<vmem>>, vector<1x1x128xf32>
    %214 = vector.shape_cast %213 : vector<1x1x128xf32> to vector<1x128xf32>
    %215 = vector.broadcast %214 : vector<1x128xf32> to vector<2x128xf32>
    %216 = arith.addf %212, %215 : vector<2x128xf32>
    %cst_91 = arith.constant 0.000000e+00 : f32
    %217 = vector.broadcast %cst_91 : f32 to vector<2x128xf32>
    %218 = arith.maximumf %216, %217 : vector<2x128xf32>
    %c4_92 = arith.constant 4 : index
    %c0_93 = arith.constant 0 : index
    %c0_94 = arith.constant 0 : index
    %219 = vector.load %arg6[%c4_92, %c0_93, %c0_94] : memref<8x128x128xf32, #tpu.memory_space<vmem>>, vector<1x128x128xf32>
    %220 = vector.shape_cast %219 : vector<1x128x128xf32> to vector<128x128xf32>
    %cst_95 = arith.constant dense<0.000000e+00> : vector<2x128xf32>
    %221 = tpu.matmul %218, %220, %cst_95 {dimension_numbers = #tpu.dot_dimension_numbers<[1], [0], [0], [1], [0, 0, 1, 1], [], []>} : vector<2x128xf32>, vector<128x128xf32>, vector<2x128xf32> -> vector<2x128xf32>
    %c4_96 = arith.constant 4 : index
    %c0_97 = arith.constant 0 : index
    %c0_98 = arith.constant 0 : index
    %222 = vector.load %arg7[%c4_96, %c0_97, %c0_98] : memref<8x1x128xf32, #tpu.memory_space<vmem>>, vector<1x1x128xf32>
    %223 = vector.shape_cast %222 : vector<1x1x128xf32> to vector<1x128xf32>
    %224 = vector.broadcast %223 : vector<1x128xf32> to vector<2x128xf32>
    %225 = arith.addf %221, %224 : vector<2x128xf32>
    %cst_99 = arith.constant 0.000000e+00 : f32
    %226 = vector.broadcast %cst_99 : f32 to vector<2x128xf32>
    %227 = arith.maximumf %225, %226 : vector<2x128xf32>
    %228 = arith.addf %227, %209 : vector<2x128xf32>
    %229 = vector.extract_strided_slice %48 {offsets = [0, 40, 0], sizes = [2, 1, 16], strides = [1, 1, 1]} : vector<2x64x16xf32> to vector<2x1x16xf32>
    %230 = vector.shape_cast %229 : vector<2x1x16xf32> to vector<2x16xf32>
    %231 = vector.extract_strided_slice %48 {offsets = [0, 41, 0], sizes = [2, 1, 16], strides = [1, 1, 1]} : vector<2x64x16xf32> to vector<2x1x16xf32>
    %232 = vector.shape_cast %231 : vector<2x1x16xf32> to vector<2x16xf32>
    %233 = vector.extract_strided_slice %48 {offsets = [0, 42, 0], sizes = [2, 1, 16], strides = [1, 1, 1]} : vector<2x64x16xf32> to vector<2x1x16xf32>
    %234 = vector.shape_cast %233 : vector<2x1x16xf32> to vector<2x16xf32>
    %235 = vector.extract_strided_slice %48 {offsets = [0, 43, 0], sizes = [2, 1, 16], strides = [1, 1, 1]} : vector<2x64x16xf32> to vector<2x1x16xf32>
    %236 = vector.shape_cast %235 : vector<2x1x16xf32> to vector<2x16xf32>
    %237 = vector.extract_strided_slice %48 {offsets = [0, 44, 0], sizes = [2, 1, 16], strides = [1, 1, 1]} : vector<2x64x16xf32> to vector<2x1x16xf32>
    %238 = vector.shape_cast %237 : vector<2x1x16xf32> to vector<2x16xf32>
    %239 = vector.extract_strided_slice %48 {offsets = [0, 45, 0], sizes = [2, 1, 16], strides = [1, 1, 1]} : vector<2x64x16xf32> to vector<2x1x16xf32>
    %240 = vector.shape_cast %239 : vector<2x1x16xf32> to vector<2x16xf32>
    %241 = vector.extract_strided_slice %48 {offsets = [0, 46, 0], sizes = [2, 1, 16], strides = [1, 1, 1]} : vector<2x64x16xf32> to vector<2x1x16xf32>
    %242 = vector.shape_cast %241 : vector<2x1x16xf32> to vector<2x16xf32>
    %243 = vector.extract_strided_slice %48 {offsets = [0, 47, 0], sizes = [2, 1, 16], strides = [1, 1, 1]} : vector<2x64x16xf32> to vector<2x1x16xf32>
    %244 = vector.shape_cast %243 : vector<2x1x16xf32> to vector<2x16xf32>
    %245 = tpu.concatenate %230, %232, %234, %236, %238, %240, %242, %244 in 1 : vector<2x16xf32>, vector<2x16xf32>, vector<2x16xf32>, vector<2x16xf32>, vector<2x16xf32>, vector<2x16xf32>, vector<2x16xf32>, vector<2x16xf32> -> vector<2x128xf32>
    %c5 = arith.constant 5 : index
    %c0_100 = arith.constant 0 : index
    %c0_101 = arith.constant 0 : index
    %246 = vector.load %arg4[%c5, %c0_100, %c0_101] : memref<8x128x128xf32, #tpu.memory_space<vmem>>, vector<1x128x128xf32>
    %247 = vector.shape_cast %246 : vector<1x128x128xf32> to vector<128x128xf32>
    %cst_102 = arith.constant dense<0.000000e+00> : vector<2x128xf32>
    %248 = tpu.matmul %245, %247, %cst_102 {dimension_numbers = #tpu.dot_dimension_numbers<[1], [0], [0], [1], [0, 0, 1, 1], [], []>} : vector<2x128xf32>, vector<128x128xf32>, vector<2x128xf32> -> vector<2x128xf32>
    %c5_103 = arith.constant 5 : index
    %c0_104 = arith.constant 0 : index
    %c0_105 = arith.constant 0 : index
    %249 = vector.load %arg5[%c5_103, %c0_104, %c0_105] : memref<8x1x128xf32, #tpu.memory_space<vmem>>, vector<1x1x128xf32>
    %250 = vector.shape_cast %249 : vector<1x1x128xf32> to vector<1x128xf32>
    %251 = vector.broadcast %250 : vector<1x128xf32> to vector<2x128xf32>
    %252 = arith.addf %248, %251 : vector<2x128xf32>
    %cst_106 = arith.constant 0.000000e+00 : f32
    %253 = vector.broadcast %cst_106 : f32 to vector<2x128xf32>
    %254 = arith.maximumf %252, %253 : vector<2x128xf32>
    %c5_107 = arith.constant 5 : index
    %c0_108 = arith.constant 0 : index
    %c0_109 = arith.constant 0 : index
    %255 = vector.load %arg6[%c5_107, %c0_108, %c0_109] : memref<8x128x128xf32, #tpu.memory_space<vmem>>, vector<1x128x128xf32>
    %256 = vector.shape_cast %255 : vector<1x128x128xf32> to vector<128x128xf32>
    %cst_110 = arith.constant dense<0.000000e+00> : vector<2x128xf32>
    %257 = tpu.matmul %254, %256, %cst_110 {dimension_numbers = #tpu.dot_dimension_numbers<[1], [0], [0], [1], [0, 0, 1, 1], [], []>} : vector<2x128xf32>, vector<128x128xf32>, vector<2x128xf32> -> vector<2x128xf32>
    %c5_111 = arith.constant 5 : index
    %c0_112 = arith.constant 0 : index
    %c0_113 = arith.constant 0 : index
    %258 = vector.load %arg7[%c5_111, %c0_112, %c0_113] : memref<8x1x128xf32, #tpu.memory_space<vmem>>, vector<1x1x128xf32>
    %259 = vector.shape_cast %258 : vector<1x1x128xf32> to vector<1x128xf32>
    %260 = vector.broadcast %259 : vector<1x128xf32> to vector<2x128xf32>
    %261 = arith.addf %257, %260 : vector<2x128xf32>
    %cst_114 = arith.constant 0.000000e+00 : f32
    %262 = vector.broadcast %cst_114 : f32 to vector<2x128xf32>
    %263 = arith.maximumf %261, %262 : vector<2x128xf32>
    %264 = arith.addf %263, %245 : vector<2x128xf32>
    %265 = vector.extract_strided_slice %48 {offsets = [0, 48, 0], sizes = [2, 1, 16], strides = [1, 1, 1]} : vector<2x64x16xf32> to vector<2x1x16xf32>
    %266 = vector.shape_cast %265 : vector<2x1x16xf32> to vector<2x16xf32>
    %267 = vector.extract_strided_slice %48 {offsets = [0, 49, 0], sizes = [2, 1, 16], strides = [1, 1, 1]} : vector<2x64x16xf32> to vector<2x1x16xf32>
    %268 = vector.shape_cast %267 : vector<2x1x16xf32> to vector<2x16xf32>
    %269 = vector.extract_strided_slice %48 {offsets = [0, 50, 0], sizes = [2, 1, 16], strides = [1, 1, 1]} : vector<2x64x16xf32> to vector<2x1x16xf32>
    %270 = vector.shape_cast %269 : vector<2x1x16xf32> to vector<2x16xf32>
    %271 = vector.extract_strided_slice %48 {offsets = [0, 51, 0], sizes = [2, 1, 16], strides = [1, 1, 1]} : vector<2x64x16xf32> to vector<2x1x16xf32>
    %272 = vector.shape_cast %271 : vector<2x1x16xf32> to vector<2x16xf32>
    %273 = vector.extract_strided_slice %48 {offsets = [0, 52, 0], sizes = [2, 1, 16], strides = [1, 1, 1]} : vector<2x64x16xf32> to vector<2x1x16xf32>
    %274 = vector.shape_cast %273 : vector<2x1x16xf32> to vector<2x16xf32>
    %275 = vector.extract_strided_slice %48 {offsets = [0, 53, 0], sizes = [2, 1, 16], strides = [1, 1, 1]} : vector<2x64x16xf32> to vector<2x1x16xf32>
    %276 = vector.shape_cast %275 : vector<2x1x16xf32> to vector<2x16xf32>
    %277 = vector.extract_strided_slice %48 {offsets = [0, 54, 0], sizes = [2, 1, 16], strides = [1, 1, 1]} : vector<2x64x16xf32> to vector<2x1x16xf32>
    %278 = vector.shape_cast %277 : vector<2x1x16xf32> to vector<2x16xf32>
    %279 = vector.extract_strided_slice %48 {offsets = [0, 55, 0], sizes = [2, 1, 16], strides = [1, 1, 1]} : vector<2x64x16xf32> to vector<2x1x16xf32>
    %280 = vector.shape_cast %279 : vector<2x1x16xf32> to vector<2x16xf32>
    %281 = tpu.concatenate %266, %268, %270, %272, %274, %276, %278, %280 in 1 : vector<2x16xf32>, vector<2x16xf32>, vector<2x16xf32>, vector<2x16xf32>, vector<2x16xf32>, vector<2x16xf32>, vector<2x16xf32>, vector<2x16xf32> -> vector<2x128xf32>
    %c6 = arith.constant 6 : index
    %c0_115 = arith.constant 0 : index
    %c0_116 = arith.constant 0 : index
    %282 = vector.load %arg4[%c6, %c0_115, %c0_116] : memref<8x128x128xf32, #tpu.memory_space<vmem>>, vector<1x128x128xf32>
    %283 = vector.shape_cast %282 : vector<1x128x128xf32> to vector<128x128xf32>
    %cst_117 = arith.constant dense<0.000000e+00> : vector<2x128xf32>
    %284 = tpu.matmul %281, %283, %cst_117 {dimension_numbers = #tpu.dot_dimension_numbers<[1], [0], [0], [1], [0, 0, 1, 1], [], []>} : vector<2x128xf32>, vector<128x128xf32>, vector<2x128xf32> -> vector<2x128xf32>
    %c6_118 = arith.constant 6 : index
    %c0_119 = arith.constant 0 : index
    %c0_120 = arith.constant 0 : index
    %285 = vector.load %arg5[%c6_118, %c0_119, %c0_120] : memref<8x1x128xf32, #tpu.memory_space<vmem>>, vector<1x1x128xf32>
    %286 = vector.shape_cast %285 : vector<1x1x128xf32> to vector<1x128xf32>
    %287 = vector.broadcast %286 : vector<1x128xf32> to vector<2x128xf32>
    %288 = arith.addf %284, %287 : vector<2x128xf32>
    %cst_121 = arith.constant 0.000000e+00 : f32
    %289 = vector.broadcast %cst_121 : f32 to vector<2x128xf32>
    %290 = arith.maximumf %288, %289 : vector<2x128xf32>
    %c6_122 = arith.constant 6 : index
    %c0_123 = arith.constant 0 : index
    %c0_124 = arith.constant 0 : index
    %291 = vector.load %arg6[%c6_122, %c0_123, %c0_124] : memref<8x128x128xf32, #tpu.memory_space<vmem>>, vector<1x128x128xf32>
    %292 = vector.shape_cast %291 : vector<1x128x128xf32> to vector<128x128xf32>
    %cst_125 = arith.constant dense<0.000000e+00> : vector<2x128xf32>
    %293 = tpu.matmul %290, %292, %cst_125 {dimension_numbers = #tpu.dot_dimension_numbers<[1], [0], [0], [1], [0, 0, 1, 1], [], []>} : vector<2x128xf32>, vector<128x128xf32>, vector<2x128xf32> -> vector<2x128xf32>
    %c6_126 = arith.constant 6 : index
    %c0_127 = arith.constant 0 : index
    %c0_128 = arith.constant 0 : index
    %294 = vector.load %arg7[%c6_126, %c0_127, %c0_128] : memref<8x1x128xf32, #tpu.memory_space<vmem>>, vector<1x1x128xf32>
    %295 = vector.shape_cast %294 : vector<1x1x128xf32> to vector<1x128xf32>
    %296 = vector.broadcast %295 : vector<1x128xf32> to vector<2x128xf32>
    %297 = arith.addf %293, %296 : vector<2x128xf32>
    %cst_129 = arith.constant 0.000000e+00 : f32
    %298 = vector.broadcast %cst_129 : f32 to vector<2x128xf32>
    %299 = arith.maximumf %297, %298 : vector<2x128xf32>
    %300 = arith.addf %299, %281 : vector<2x128xf32>
    %301 = vector.extract_strided_slice %48 {offsets = [0, 56, 0], sizes = [2, 1, 16], strides = [1, 1, 1]} : vector<2x64x16xf32> to vector<2x1x16xf32>
    %302 = vector.shape_cast %301 : vector<2x1x16xf32> to vector<2x16xf32>
    %303 = vector.extract_strided_slice %48 {offsets = [0, 57, 0], sizes = [2, 1, 16], strides = [1, 1, 1]} : vector<2x64x16xf32> to vector<2x1x16xf32>
    %304 = vector.shape_cast %303 : vector<2x1x16xf32> to vector<2x16xf32>
    %305 = vector.extract_strided_slice %48 {offsets = [0, 58, 0], sizes = [2, 1, 16], strides = [1, 1, 1]} : vector<2x64x16xf32> to vector<2x1x16xf32>
    %306 = vector.shape_cast %305 : vector<2x1x16xf32> to vector<2x16xf32>
    %307 = vector.extract_strided_slice %48 {offsets = [0, 59, 0], sizes = [2, 1, 16], strides = [1, 1, 1]} : vector<2x64x16xf32> to vector<2x1x16xf32>
    %308 = vector.shape_cast %307 : vector<2x1x16xf32> to vector<2x16xf32>
    %309 = vector.extract_strided_slice %48 {offsets = [0, 60, 0], sizes = [2, 1, 16], strides = [1, 1, 1]} : vector<2x64x16xf32> to vector<2x1x16xf32>
    %310 = vector.shape_cast %309 : vector<2x1x16xf32> to vector<2x16xf32>
    %311 = vector.extract_strided_slice %48 {offsets = [0, 61, 0], sizes = [2, 1, 16], strides = [1, 1, 1]} : vector<2x64x16xf32> to vector<2x1x16xf32>
    %312 = vector.shape_cast %311 : vector<2x1x16xf32> to vector<2x16xf32>
    %313 = vector.extract_strided_slice %48 {offsets = [0, 62, 0], sizes = [2, 1, 16], strides = [1, 1, 1]} : vector<2x64x16xf32> to vector<2x1x16xf32>
    %314 = vector.shape_cast %313 : vector<2x1x16xf32> to vector<2x16xf32>
    %315 = vector.extract_strided_slice %48 {offsets = [0, 63, 0], sizes = [2, 1, 16], strides = [1, 1, 1]} : vector<2x64x16xf32> to vector<2x1x16xf32>
    %316 = vector.shape_cast %315 : vector<2x1x16xf32> to vector<2x16xf32>
    %317 = tpu.concatenate %302, %304, %306, %308, %310, %312, %314, %316 in 1 : vector<2x16xf32>, vector<2x16xf32>, vector<2x16xf32>, vector<2x16xf32>, vector<2x16xf32>, vector<2x16xf32>, vector<2x16xf32>, vector<2x16xf32> -> vector<2x128xf32>
    %c7 = arith.constant 7 : index
    %c0_130 = arith.constant 0 : index
    %c0_131 = arith.constant 0 : index
    %318 = vector.load %arg4[%c7, %c0_130, %c0_131] : memref<8x128x128xf32, #tpu.memory_space<vmem>>, vector<1x128x128xf32>
    %319 = vector.shape_cast %318 : vector<1x128x128xf32> to vector<128x128xf32>
    %cst_132 = arith.constant dense<0.000000e+00> : vector<2x128xf32>
    %320 = tpu.matmul %317, %319, %cst_132 {dimension_numbers = #tpu.dot_dimension_numbers<[1], [0], [0], [1], [0, 0, 1, 1], [], []>} : vector<2x128xf32>, vector<128x128xf32>, vector<2x128xf32> -> vector<2x128xf32>
    %c7_133 = arith.constant 7 : index
    %c0_134 = arith.constant 0 : index
    %c0_135 = arith.constant 0 : index
    %321 = vector.load %arg5[%c7_133, %c0_134, %c0_135] : memref<8x1x128xf32, #tpu.memory_space<vmem>>, vector<1x1x128xf32>
    %322 = vector.shape_cast %321 : vector<1x1x128xf32> to vector<1x128xf32>
    %323 = vector.broadcast %322 : vector<1x128xf32> to vector<2x128xf32>
    %324 = arith.addf %320, %323 : vector<2x128xf32>
    %cst_136 = arith.constant 0.000000e+00 : f32
    %325 = vector.broadcast %cst_136 : f32 to vector<2x128xf32>
    %326 = arith.maximumf %324, %325 : vector<2x128xf32>
    %c7_137 = arith.constant 7 : index
    %c0_138 = arith.constant 0 : index
    %c0_139 = arith.constant 0 : index
    %327 = vector.load %arg6[%c7_137, %c0_138, %c0_139] : memref<8x128x128xf32, #tpu.memory_space<vmem>>, vector<1x128x128xf32>
    %328 = vector.shape_cast %327 : vector<1x128x128xf32> to vector<128x128xf32>
    %cst_140 = arith.constant dense<0.000000e+00> : vector<2x128xf32>
    %329 = tpu.matmul %326, %328, %cst_140 {dimension_numbers = #tpu.dot_dimension_numbers<[1], [0], [0], [1], [0, 0, 1, 1], [], []>} : vector<2x128xf32>, vector<128x128xf32>, vector<2x128xf32> -> vector<2x128xf32>
    %c7_141 = arith.constant 7 : index
    %c0_142 = arith.constant 0 : index
    %c0_143 = arith.constant 0 : index
    %330 = vector.load %arg7[%c7_141, %c0_142, %c0_143] : memref<8x1x128xf32, #tpu.memory_space<vmem>>, vector<1x1x128xf32>
    %331 = vector.shape_cast %330 : vector<1x1x128xf32> to vector<1x128xf32>
    %332 = vector.broadcast %331 : vector<1x128xf32> to vector<2x128xf32>
    %333 = arith.addf %329, %332 : vector<2x128xf32>
    %cst_144 = arith.constant 0.000000e+00 : f32
    %334 = vector.broadcast %cst_144 : f32 to vector<2x128xf32>
    %335 = arith.maximumf %333, %334 : vector<2x128xf32>
    %336 = arith.addf %335, %317 : vector<2x128xf32>
    %337 = tpu.concatenate %84, %120, %156, %192, %228, %264, %300, %336 in 1 : vector<2x128xf32>, vector<2x128xf32>, vector<2x128xf32>, vector<2x128xf32>, vector<2x128xf32>, vector<2x128xf32>, vector<2x128xf32>, vector<2x128xf32> -> vector<2x1024xf32>
    %cst_145 = arith.constant dense<0.000000e+00> : vector<2xf32>
    %338 = vector.multi_reduction <add>, %337, %cst_145 [1] : vector<2x1024xf32> to vector<2xf32>
    %339 = vector.shape_cast %338 : vector<2xf32> to vector<2x1xf32>
    %cst_146 = arith.constant 1.024000e+03 : f32
    %340 = vector.broadcast %cst_146 : f32 to vector<2x1xf32>
    %341 = arith.divf %339, %340 : vector<2x1xf32>
    %342 = vector.broadcast %341 : vector<2x1xf32> to vector<2x1024xf32>
    %343 = arith.subf %337, %342 : vector<2x1024xf32>
    %344 = arith.mulf %343, %343 : vector<2x1024xf32>
    %cst_147 = arith.constant dense<0.000000e+00> : vector<2xf32>
    %345 = vector.multi_reduction <add>, %344, %cst_147 [1] : vector<2x1024xf32> to vector<2xf32>
    %346 = vector.shape_cast %345 : vector<2xf32> to vector<2x1xf32>
    %cst_148 = arith.constant 1.024000e+03 : f32
    %347 = vector.broadcast %cst_148 : f32 to vector<2x1xf32>
    %348 = arith.divf %346, %347 : vector<2x1xf32>
    %cst_149 = arith.constant 9.99999974E-6 : f32
    %349 = vector.broadcast %cst_149 : f32 to vector<2x1xf32>
    %350 = arith.addf %348, %349 : vector<2x1xf32>
    %351 = math.rsqrt %350 : vector<2x1xf32>
    %352 = vector.broadcast %351 : vector<2x1xf32> to vector<2x1024xf32>
    %353 = arith.mulf %343, %352 : vector<2x1024xf32>
    %c0_150 = arith.constant 0 : index
    %c0_151 = arith.constant 0 : index
    %354 = vector.load %arg8[%c0_150, %c0_151] : memref<2x1024xf32, #tpu.memory_space<vmem>>, vector<2x1024xf32>
    tpu.vector_store %arg8[%c0_150, %c0_151], %353 {strides = array<i32>} : memref<2x1024xf32, #tpu.memory_space<vmem>>, vector<2x1024xf32>,
    return
  }
}

</mosaic_0001>

<llo_original>
// kernel: encoder_forward.1
$region0: #{encoder_forward.1}
  #allocation0 [shape = 'u32[]', space=smem, size = 0x4, offset = 0x4, fixed_abs, tag = 'smem constant byte address 0x4 - core index']
  #allocation1 [shape = 'u32[144,128]{1,0:T(1,128)}', space=vmem, size = 0x12000, scoped, tag = 'internal scratch']
  %s0 = inlined_call_operand.vmem [shape: f32[2,64,16], index: 0, kind: input, shape index: {}]
  %s1 = inlined_call_operand.vmem [shape: f32[16,16], index: 1, kind: input, shape index: {}]
  %s2 = inlined_call_operand.vmem [shape: f32[16,16], index: 2, kind: input, shape index: {}]
  %s3 = inlined_call_operand.vmem [shape: f32[16,16], index: 3, kind: input, shape index: {}]
  %s4 = inlined_call_operand.hbm [shape: f32[8,128,128], index: 4, kind: input, shape index: {}]
  %s5 = inlined_call_operand.vmem [shape: f32[8,1,128], index: 5, kind: input, shape index: {}]
  %s6 = inlined_call_operand.hbm [shape: f32[8,128,128], index: 6, kind: input, shape index: {}]
  %s7 = inlined_call_operand.vmem [shape: f32[8,1,128], index: 7, kind: input, shape index: {}]
  %s8 = inlined_call_operand.vmem [shape: f32[2,1024], index: 8, kind: output, shape index: {}]
  %s9 = sld [smem:[#allocation0]]
  $region50: #{encoder_forward.1} parent=0
    _
  %s11 = ssub.s32 1, %s9
  %s12 = scalar_select 0, %s11, %s9
  $region1: #{encoder_forward.1} parent=0
    #allocation2 [shape = 'u8[524288]{0}', space=vmem, size = 0x80000, scoped, tag = 'input window, operand 4, single buffered']
    #allocation3 [shape = 's32[1]{0}', space=sflag, size = 0x4, scoped, tag = 'scoped memory for encoder_forward.1']
    #allocation4 [shape = 'u8[524288]{0}', space=vmem, size = 0x80000, scoped, tag = 'input window, operand 6, single buffered']
    #allocation5 [shape = 's32[1]{0}', space=sflag, size = 0x4, scoped, tag = 'scoped memory for encoder_forward.1']
    %13 = vsyncpa [#allocation3], 0
    %14 = vsyncpa [#allocation5], 0
    // Predicated region
    $region2: #{encoder_forward.1} parent=1 // pred_check
      _
    $region3: #{encoder_forward.1} parent=1 // pred_check_branch
      %16 = sbr.rel (0) target = $region5
    $region4: #{encoder_forward.1} parent=1 // pred_region
      _
    $region5: #{encoder_forward.1} parent=1 // pred_fallthru
      _
    // Predicated region
    $region6: #{encoder_forward.1} parent=1 // pred_check
      _
    $region7: #{encoder_forward.1} parent=1 // pred_check_branch
      %18 = sbr.rel (0) target = $region9
    $region8: #{encoder_forward.1} parent=1 // pred_region
      _
    $region9: #{encoder_forward.1} parent=1 // pred_fallthru
      _
    // Predicated region
    $region10: #{encoder_forward.1} parent=1 // pred_check
      _
    $region11: #{encoder_forward.1} parent=1 // pred_check_branch
      %20 = sbr.rel (0) target = $region13
    $region12: #{encoder_forward.1} parent=1 // pred_region
      _
    $region13: #{encoder_forward.1} parent=1 // pred_fallthru
      _
    // Predicated region
    $region14: #{encoder_forward.1} parent=1 // pred_check
      _
    $region15: #{encoder_forward.1} parent=1 // pred_check_branch
      %22 = sbr.rel (0) target = $region17
    $region16: #{encoder_forward.1} parent=1 // pred_region
      _
    $region17: #{encoder_forward.1} parent=1 // pred_fallthru
      _
    // Predicated region
    $region18: #{encoder_forward.1} parent=1 // pred_check
      _
    $region19: #{encoder_forward.1} parent=1 // pred_check_branch
      %24 = sbr.rel (0) target = $region21
    $region20: #{encoder_forward.1} parent=1 // pred_region
      %s26 = ssub.s32 16384, 16384
      %27 = vsyncadd [#allocation3], %s26
      %s28 = sshll.u32 [#allocation2], 4
      %s29 = int_to_ptr.vmem [resolvable:$true] %s28
      %34 = dma.hbm_to_vmem [thread:$0]  %s4, 16384, %s29, [#allocation3], 128, 128, 8
    $region21: #{encoder_forward.1} parent=1 // pred_fallthru
      _
    // Predicated region
    $region22: #{encoder_forward.1} parent=1 // pred_check
      _
    $region23: #{encoder_forward.1} parent=1 // pred_check_branch
      %36 = sbr.rel (0) target = $region25
    $region24: #{encoder_forward.1} parent=1 // pred_region
      _
    $region25: #{encoder_forward.1} parent=1 // pred_fallthru
      _
    // Predicated region
    $region26: #{encoder_forward.1} parent=1 // pred_check
      _
    $region27: #{encoder_forward.1} parent=1 // pred_check_branch
      %38 = sbr.rel (0) target = $region29
    $region28: #{encoder_forward.1} parent=1 // pred_region
      %s40 = ssub.s32 16384, 16384
      %41 = vsyncadd [#allocation5], %s40
      %s42 = sshll.u32 [#allocation4], 4
      %s43 = int_to_ptr.vmem [resolvable:$true] %s42
      %48 = dma.hbm_to_vmem [thread:$0]  %s6, 16384, %s43, [#allocation5], 128, 128, 8
    $region29: #{encoder_forward.1} parent=1 // pred_fallthru
      _
    // Predicated region
    $region30: #{encoder_forward.1} parent=1 // pred_check
      _
    $region31: #{encoder_forward.1} parent=1 // pred_check_branch
      %50 = sbr.rel (0) target = $region33
    $region32: #{encoder_forward.1} parent=1 // pred_region
      _
    $region33: #{encoder_forward.1} parent=1 // pred_fallthru
      _
    // Predicated region
    $region34: #{encoder_forward.1} parent=1 // pred_check
      _
    $region35: #{encoder_forward.1} parent=1 // pred_check_branch
      %52 = sbr.rel (0) target = $region37
    $region36: #{encoder_forward.1} parent=1 // pred_region
      %53 = dma.done [#allocation3], 16384
    $region37: #{encoder_forward.1} parent=1 // pred_fallthru
      _
    // Predicated region
    $region38: #{encoder_forward.1} parent=1 // pred_check
      _
    $region39: #{encoder_forward.1} parent=1 // pred_check_branch
      %55 = sbr.rel (0) target = $region41
    $region40: #{encoder_forward.1} parent=1 // pred_region
      %56 = dma.done [#allocation5], 16384
    $region41: #{encoder_forward.1} parent=1 // pred_fallthru
      _
    %v57 = vld [vmem:[%s0] sm:$0xff]
    %v58 = vld [vmem:[%s0 + $0x8] sm:$0xff]
    %v59 = vld [vmem:[%s0 + $0x10] sm:$0xff]
    %v60 = vld [vmem:[%s0 + $0x18] sm:$0xff]
    %v61 = vld [vmem:[%s0 + $0x20] sm:$0xff]
    %v62 = vld [vmem:[%s0 + $0x28] sm:$0xff]
    %v63 = vld [vmem:[%s0 + $0x30] sm:$0xff]
    %v64 = vld [vmem:[%s0 + $0x38] sm:$0xff]
    %v65 = vld [vmem:[%s0 + $0x40] sm:$0xff]
    %v66 = vld [vmem:[%s0 + $0x48] sm:$0xff]
    %v67 = vld [vmem:[%s0 + $0x50] sm:$0xff]
    %v68 = vld [vmem:[%s0 + $0x58] sm:$0xff]
    %v69 = vld [vmem:[%s0 + $0x60] sm:$0xff]
    %v70 = vld [vmem:[%s0 + $0x68] sm:$0xff]
    %v71 = vld [vmem:[%s0 + $0x70] sm:$0xff]
    %v72 = vld [vmem:[%s0 + $0x78] sm:$0xff]
    %v73 = vld [vmem:[%s1] sm:$0xff]
    %v74 = vld [vmem:[%s1 + $0x8] sm:$0xff]
    %vm75 = vcmask 130048
    %v77 = vsel %vm75, %v57, 0
    %v80 = vsel %vm75, %v58, 0
    %v83 = vsel %vm75, %v59, 0
    %v86 = vsel %vm75, %v60, 0
    %v89 = vsel %vm75, %v61, 0
    %v92 = vsel %vm75, %v62, 0
    %v95 = vsel %vm75, %v63, 0
    %v98 = vsel %vm75, %v64, 0
    %v101 = vsel %vm75, %v65, 0
    %v104 = vsel %vm75, %v66, 0
    %v107 = vsel %vm75, %v67, 0
    %v110 = vsel %vm75, %v68, 0
    %v113 = vsel %vm75, %v69, 0
    %v116 = vsel %vm75, %v70, 0
    %v119 = vsel %vm75, %v71, 0
    %v122 = vsel %vm75, %v72, 0
    %124 = vmatprep.subr.mxu0 0.0
    %125 = vmatpush1.msra.mxu0 %v73
    %126 = vmatprep.subr.mxu0 0.0
    %127 = vmatpush1.msra.mxu0 %v74
    %128 = vmatprep.subr.mxu0 0.0
    %129 = vmatpush1.msra.mxu0 0.0
    %130 = vmatprep.subr.mxu0 0.0
    %131 = vmatpush1.msra.mxu0 0.0
    %132 = vmatprep.subr.mxu0 0.0
    %133 = vmatpush1.msra.mxu0 0.0
    %134 = vmatprep.subr.mxu0 0.0
    %135 = vmatpush1.msra.mxu0 0.0
    %136 = vmatprep.subr.mxu0 0.0
    %137 = vmatpush1.msra.mxu0 0.0
    %138 = vmatprep.subr.mxu0 0.0
    %139 = vmatpush1.msra.mxu0 0.0
    %140 = vmatprep.subr.mxu0 0.0
    %141 = vmatpush1.msra.mxu0 0.0
    %142 = vmatprep.subr.mxu0 0.0
    %143 = vmatpush1.msra.mxu0 0.0
    %144 = vmatprep.subr.mxu0 0.0
    %145 = vmatpush1.msra.mxu0 0.0
    %146 = vmatprep.subr.mxu0 0.0
    %147 = vmatpush1.msra.mxu0 0.0
    %148 = vmatprep.subr.mxu0 0.0
    %149 = vmatpush1.msra.mxu0 0.0
    %150 = vmatprep.subr.mxu0 0.0
    %151 = vmatpush1.msra.mxu0 0.0
    %152 = vmatprep.subr.mxu0 0.0
    %153 = vmatpush1.msra.mxu0 0.0
    %154 = vmatprep.subr.mxu0 0.0
    %155 = vmatpush1.msra.mxu0 0.0
    %156 = vmatprep.subr.mxu0 0.0
    %157 = vmatpush1.msra.mxu0 0.0
    %158 = vmatprep.subr.mxu0 0.0
    %159 = vmatpush1.msra.mxu0 0.0
    %160 = vmatprep.subr.mxu0 0.0
    %161 = vmatpush1.msra.mxu0 0.0
    %162 = vmatprep.subr.mxu0 0.0
    %163 = vmatpush1.msra.mxu0 0.0
    %164 = vmatprep.subr.mxu0 0.0
    %165 = vmatpush1.msra.mxu0 0.0
    %166 = vmatprep.subr.mxu0 0.0
    %167 = vmatpush1.msra.mxu0 0.0
    %168 = vmatprep.subr.mxu0 0.0
    %169 = vmatpush1.msra.mxu0 0.0
    %170 = vmatprep.subr.mxu0 0.0
    %171 = vmatpush1.msra.mxu0 0.0
    %172 = vmatprep.subr.mxu0 0.0
    %173 = vmatpush1.msra.mxu0 0.0
    %174 = vmatprep.subr.mxu0 0.0
    %175 = vmatpush1.msra.mxu0 0.0
    %176 = vmatprep.subr.mxu0 0.0
    %177 = vmatpush1.msra.mxu0 0.0
    %178 = vmatprep.subr.mxu0 0.0
    %179 = vmatpush1.msra.mxu0 0.0
    %180 = vmatprep.subr.mxu0 0.0
    %181 = vmatpush1.msra.mxu0 0.0
    %182 = vmatprep.subr.mxu0 0.0
    %183 = vmatpush1.msra.mxu0 0.0
    %184 = vmatprep.subr.mxu0 0.0
    %185 = vmatpush1.msra.mxu0 0.0
    %186 = vmatprep.subr.mxu0 0.0
    %187 = vmatpush1.msra.mxu0 0.0
    %188 = vmatprep.mubr.f32.mxu0 0.0
    %189 = vmatmul.mubr.f32.gmra.mrb[0].mxu0 %v77
    %v190 = vpop.f32.mrb[0].mxu0
    %v191 = vadd.f32 0.0, %v190
    %v192 = vpop.f32.mrb[0].mxu0
    %193 = vmatprep.mubr.f32.mxu0 0.0
    %194 = vmatmul.mubr.f32.gmra.mrb[0].mxu0 %v80
    %v195 = vpop.f32.mrb[0].mxu0
    %v196 = vadd.f32 0.0, %v195
    %v197 = vpop.f32.mrb[0].mxu0
    %198 = vmatprep.mubr.f32.mxu0 0.0
    %199 = vmatmul.mubr.f32.gmra.mrb[0].mxu0 %v83
    %v200 = vpop.f32.mrb[0].mxu0
    %v201 = vadd.f32 0.0, %v200
    %v202 = vpop.f32.mrb[0].mxu0
    %203 = vmatprep.mubr.f32.mxu0 0.0
    %204 = vmatmul.mubr.f32.gmra.mrb[0].mxu0 %v86
    %v205 = vpop.f32.mrb[0].mxu0
    %v206 = vadd.f32 0.0, %v205
    %v207 = vpop.f32.mrb[0].mxu0
    %208 = vmatprep.mubr.f32.mxu0 0.0
    %209 = vmatmul.mubr.f32.gmra.mrb[0].mxu0 %v89
    %v210 = vpop.f32.mrb[0].mxu0
    %v211 = vadd.f32 0.0, %v210
    %v212 = vpop.f32.mrb[0].mxu0
    %213 = vmatprep.mubr.f32.mxu0 0.0
    %214 = vmatmul.mubr.f32.gmra.mrb[0].mxu0 %v92
    %v215 = vpop.f32.mrb[0].mxu0
    %v216 = vadd.f32 0.0, %v215
    %v217 = vpop.f32.mrb[0].mxu0
    %218 = vmatprep.mubr.f32.mxu0 0.0
    %219 = vmatmul.mubr.f32.gmra.mrb[0].mxu0 %v95
    %v220 = vpop.f32.mrb[0].mxu0
    %v221 = vadd.f32 0.0, %v220
    %v222 = vpop.f32.mrb[0].mxu0
    %223 = vmatprep.mubr.f32.mxu0 0.0
    %224 = vmatmul.mubr.f32.gmra.mrb[0].mxu0 %v98
    %v225 = vpop.f32.mrb[0].mxu0
    %v226 = vadd.f32 0.0, %v225
    %v227 = vpop.f32.mrb[0].mxu0
    %228 = vmatprep.mubr.f32.mxu0 0.0
    %229 = vmatmul.mubr.f32.gmra.mrb[0].mxu0 %v101
    %v230 = vpop.f32.mrb[0].mxu0
    %v231 = vadd.f32 0.0, %v230
    %v232 = vpop.f32.mrb[0].mxu0
    %233 = vmatprep.mubr.f32.mxu0 0.0
    %234 = vmatmul.mubr.f32.gmra.mrb[0].mxu0 %v104
    %v235 = vpop.f32.mrb[0].mxu0
    %v236 = vadd.f32 0.0, %v235
    %v237 = vpop.f32.mrb[0].mxu0
    %238 = vmatprep.mubr.f32.mxu0 0.0
    %239 = vmatmul.mubr.f32.gmra.mrb[0].mxu0 %v107
    %v240 = vpop.f32.mrb[0].mxu0
    %v241 = vadd.f32 0.0, %v240
    %v242 = vpop.f32.mrb[0].mxu0
    %243 = vmatprep.mubr.f32.mxu0 0.0
    %244 = vmatmul.mubr.f32.gmra.mrb[0].mxu0 %v110
    %v245 = vpop.f32.mrb[0].mxu0
    %v246 = vadd.f32 0.0, %v245
    %v247 = vpop.f32.mrb[0].mxu0
    %248 = vmatprep.mubr.f32.mxu0 0.0
    %249 = vmatmul.mubr.f32.gmra.mrb[0].mxu0 %v113
    %v250 = vpop.f32.mrb[0].mxu0
    %v251 = vadd.f32 0.0, %v250
    %v252 = vpop.f32.mrb[0].mxu0
    %253 = vmatprep.mubr.f32.mxu0 0.0
    %254 = vmatmul.mubr.f32.gmra.mrb[0].mxu0 %v116
    %v255 = vpop.f32.mrb[0].mxu0
    %v256 = vadd.f32 0.0, %v255
    %v257 = vpop.f32.mrb[0].mxu0
    %258 = vmatprep.mubr.f32.mxu0 0.0
    %259 = vmatmul.mubr.f32.gmra.mrb[0].mxu0 %v119
    %v260 = vpop.f32.mrb[0].mxu0
    %v261 = vadd.f32 0.0, %v260
    %v262 = vpop.f32.mrb[0].mxu0
    %263 = vmatprep.mubr.f32.mxu0 0.0
    %264 = vmatmul.mubr.f32.gmra.mrb[0].mxu0 %v122
    %v265 = vpop.f32.mrb[0].mxu0
    %v266 = vadd.f32 0.0, %v265
    %v267 = vpop.f32.mrb[0].mxu0
    %268 = vdwg.mxu0
    %v269 = vmul.f32 %v191, 0.33333334
    %v270 = vmul.f32 %v196, 0.33333334
    %v271 = vmul.f32 %v201, 0.33333334
    %v272 = vmul.f32 %v206, 0.33333334
    %v273 = vmul.f32 %v211, 0.33333334
    %v274 = vmul.f32 %v216, 0.33333334
    %v275 = vmul.f32 %v221, 0.33333334
    %v276 = vmul.f32 %v226, 0.33333334
    %v277 = vmul.f32 %v231, 0.33333334
    %v278 = vmul.f32 %v236, 0.33333334
    %v279 = vmul.f32 %v241, 0.33333334
    %v280 = vmul.f32 %v246, 0.33333334
    %v281 = vmul.f32 %v251, 0.33333334
    %v282 = vmul.f32 %v256, 0.33333334
    %v283 = vmul.f32 %v261, 0.33333334
    %v284 = vmul.f32 %v266, 0.33333334
    %v285 = vld [vmem:[%s2] sm:$0xff]
    %v286 = vld [vmem:[%s2 + $0x8] sm:$0xff]
    %287 = vmatprep.subr.mxu0 0.0
    %288 = vmatpush1.msra.mxu0 %v285
    %289 = vmatprep.subr.mxu0 0.0
    %290 = vmatpush1.msra.mxu0 %v286
    %291 = vmatprep.subr.mxu0 0.0
    %292 = vmatpush1.msra.mxu0 0.0
    %293 = vmatprep.subr.mxu0 0.0
    %294 = vmatpush1.msra.mxu0 0.0
    %295 = vmatprep.subr.mxu0 0.0
    %296 = vmatpush1.msra.mxu0 0.0
    %297 = vmatprep.subr.mxu0 0.0
    %298 = vmatpush1.msra.mxu0 0.0
    %299 = vmatprep.subr.mxu0 0.0
    %300 = vmatpush1.msra.mxu0 0.0
    %301 = vmatprep.subr.mxu0 0.0
    %302 = vmatpush1.msra.mxu0 0.0
    %303 = vmatprep.subr.mxu0 0.0
    %304 = vmatpush1.msra.mxu0 0.0
    %305 = vmatprep.subr.mxu0 0.0
    %306 = vmatpush1.msra.mxu0 0.0
    %307 = vmatprep.subr.mxu0 0.0
    %308 = vmatpush1.msra.mxu0 0.0
    %309 = vmatprep.subr.mxu0 0.0
    %310 = vmatpush1.msra.mxu0 0.0
    %311 = vmatprep.subr.mxu0 0.0
    %312 = vmatpush1.msra.mxu0 0.0
    %313 = vmatprep.subr.mxu0 0.0
    %314 = vmatpush1.msra.mxu0 0.0
    %315 = vmatprep.subr.mxu0 0.0
    %316 = vmatpush1.msra.mxu0 0.0
    %317 = vmatprep.subr.mxu0 0.0
    %318 = vmatpush1.msra.mxu0 0.0
    %319 = vmatprep.subr.mxu0 0.0
    %320 = vmatpush1.msra.mxu0 0.0
    %321 = vmatprep.subr.mxu0 0.0
    %322 = vmatpush1.msra.mxu0 0.0
    %323 = vmatprep.subr.mxu0 0.0
    %324 = vmatpush1.msra.mxu0 0.0
    %325 = vmatprep.subr.mxu0 0.0
    %326 = vmatpush1.msra.mxu0 0.0
    %327 = vmatprep.subr.mxu0 0.0
    %328 = vmatpush1.msra.mxu0 0.0
    %329 = vmatprep.subr.mxu0 0.0
    %330 = vmatpush1.msra.mxu0 0.0
    %331 = vmatprep.subr.mxu0 0.0
    %332 = vmatpush1.msra.mxu0 0.0
    %333 = vmatprep.subr.mxu0 0.0
    %334 = vmatpush1.msra.mxu0 0.0
    %335 = vmatprep.subr.mxu0 0.0
    %336 = vmatpush1.msra.mxu0 0.0
    %337 = vmatprep.subr.mxu0 0.0
    %338 = vmatpush1.msra.mxu0 0.0
    %339 = vmatprep.subr.mxu0 0.0
    %340 = vmatpush1.msra.mxu0 0.0
    %341 = vmatprep.subr.mxu0 0.0
    %342 = vmatpush1.msra.mxu0 0.0
    %343 = vmatprep.subr.mxu0 0.0
    %344 = vmatpush1.msra.mxu0 0.0
    %345 = vmatprep.subr.mxu0 0.0
    %346 = vmatpush1.msra.mxu0 0.0
    %347 = vmatprep.subr.mxu0 0.0
    %348 = vmatpush1.msra.mxu0 0.0
    %349 = vmatprep.subr.mxu0 0.0
    %350 = vmatpush1.msra.mxu0 0.0
    %351 = vmatprep.mubr.f32.mxu0 0.0
    %352 = vmatmul.mubr.f32.gmra.mrb[0].mxu0 %v77
    %v353 = vpop.f32.mrb[0].mxu0
    %v354 = vadd.f32 0.0, %v353
    %v355 = vpop.f32.mrb[0].mxu0
    %356 = vmatprep.mubr.f32.mxu0 0.0
    %357 = vmatmul.mubr.f32.gmra.mrb[0].mxu0 %v80
    %v358 = vpop.f32.mrb[0].mxu0
    %v359 = vadd.f32 0.0, %v358
    %v360 = vpop.f32.mrb[0].mxu0
    %361 = vmatprep.mubr.f32.mxu0 0.0
    %362 = vmatmul.mubr.f32.gmra.mrb[0].mxu0 %v83
    %v363 = vpop.f32.mrb[0].mxu0
    %v364 = vadd.f32 0.0, %v363
    %v365 = vpop.f32.mrb[0].mxu0
    %366 = vmatprep.mubr.f32.mxu0 0.0
    %367 = vmatmul.mubr.f32.gmra.mrb[0].mxu0 %v86
    %v368 = vpop.f32.mrb[0].mxu0
    %v369 = vadd.f32 0.0, %v368
    %v370 = vpop.f32.mrb[0].mxu0
    %371 = vmatprep.mubr.f32.mxu0 0.0
    %372 = vmatmul.mubr.f32.gmra.mrb[0].mxu0 %v89
    %v373 = vpop.f32.mrb[0].mxu0
    %v374 = vadd.f32 0.0, %v373
    %v375 = vpop.f32.mrb[0].mxu0
    %376 = vmatprep.mubr.f32.mxu0 0.0
    %377 = vmatmul.mubr.f32.gmra.mrb[0].mxu0 %v92
    %v378 = vpop.f32.mrb[0].mxu0
    %v379 = vadd.f32 0.0, %v378
    %v380 = vpop.f32.mrb[0].mxu0
    %381 = vmatprep.mubr.f32.mxu0 0.0
    %382 = vmatmul.mubr.f32.gmra.mrb[0].mxu0 %v95
    %v383 = vpop.f32.mrb[0].mxu0
    %v384 = vadd.f32 0.0, %v383
    %v385 = vpop.f32.mrb[0].mxu0
    %386 = vmatprep.mubr.f32.mxu0 0.0
    %387 = vmatmul.mubr.f32.gmra.mrb[0].mxu0 %v98
    %v388 = vpop.f32.mrb[0].mxu0
    %v389 = vadd.f32 0.0, %v388
    %v390 = vpop.f32.mrb[0].mxu0
    %391 = vmatprep.mubr.f32.mxu0 0.0
    %392 = vmatmul.mubr.f32.gmra.mrb[0].mxu0 %v101
    %v393 = vpop.f32.mrb[0].mxu0
    %v394 = vadd.f32 0.0, %v393
    %v395 = vpop.f32.mrb[0].mxu0
    %396 = vmatprep.mubr.f32.mxu0 0.0
    %397 = vmatmul.mubr.f32.gmra.mrb[0].mxu0 %v104
    %v398 = vpop.f32.mrb[0].mxu0
    %v399 = vadd.f32 0.0, %v398
    %v400 = vpop.f32.mrb[0].mxu0
    %401 = vmatprep.mubr.f32.mxu0 0.0
    %402 = vmatmul.mubr.f32.gmra.mrb[0].mxu0 %v107
    %v403 = vpop.f32.mrb[0].mxu0
    %v404 = vadd.f32 0.0, %v403
    %v405 = vpop.f32.mrb[0].mxu0
    %406 = vmatprep.mubr.f32.mxu0 0.0
    %407 = vmatmul.mubr.f32.gmra.mrb[0].mxu0 %v110
    %v408 = vpop.f32.mrb[0].mxu0
    %v409 = vadd.f32 0.0, %v408
    %v410 = vpop.f32.mrb[0].mxu0
    %411 = vmatprep.mubr.f32.mxu0 0.0
    %412 = vmatmul.mubr.f32.gmra.mrb[0].mxu0 %v113
    %v413 = vpop.f32.mrb[0].mxu0
    %v414 = vadd.f32 0.0, %v413
    %v415 = vpop.f32.mrb[0].mxu0
    %416 = vmatprep.mubr.f32.mxu0 0.0
    %417 = vmatmul.mubr.f32.gmra.mrb[0].mxu0 %v116
    %v418 = vpop.f32.mrb[0].mxu0
    %v419 = vadd.f32 0.0, %v418
    %v420 = vpop.f32.mrb[0].mxu0
    %421 = vmatprep.mubr.f32.mxu0 0.0
    %422 = vmatmul.mubr.f32.gmra.mrb[0].mxu0 %v119
    %v423 = vpop.f32.mrb[0].mxu0
    %v424 = vadd.f32 0.0, %v423
    %v425 = vpop.f32.mrb[0].mxu0
    %426 = vmatprep.mubr.f32.mxu0 0.0
    %427 = vmatmul.mubr.f32.gmra.mrb[0].mxu0 %v122
    %v428 = vpop.f32.mrb[0].mxu0
    %v429 = vadd.f32 0.0, %v428
    %v430 = vpop.f32.mrb[0].mxu0
    %431 = vdwg.mxu0
    %v432 = vld [vmem:[%s3] sm:$0xff]
    %v433 = vld [vmem:[%s3 + $0x8] sm:$0xff]
    %434 = vmatprep.subr.mxu0 0.0
    %435 = vmatpush1.msra.mxu0 %v432
    %436 = vmatprep.subr.mxu0 0.0
    %437 = vmatpush1.msra.mxu0 %v433
    %438 = vmatprep.subr.mxu0 0.0
    %439 = vmatpush1.msra.mxu0 0.0
    %440 = vmatprep.subr.mxu0 0.0
    %441 = vmatpush1.msra.mxu0 0.0
    %442 = vmatprep.subr.mxu0 0.0
    %443 = vmatpush1.msra.mxu0 0.0
    %444 = vmatprep.subr.mxu0 0.0
    %445 = vmatpush1.msra.mxu0 0.0
    %446 = vmatprep.subr.mxu0 0.0
    %447 = vmatpush1.msra.mxu0 0.0
    %448 = vmatprep.subr.mxu0 0.0
    %449 = vmatpush1.msra.mxu0 0.0
    %450 = vmatprep.subr.mxu0 0.0
    %451 = vmatpush1.msra.mxu0 0.0
    %452 = vmatprep.subr.mxu0 0.0
    %453 = vmatpush1.msra.mxu0 0.0
    %454 = vmatprep.subr.mxu0 0.0
    %455 = vmatpush1.msra.mxu0 0.0
    %456 = vmatprep.subr.mxu0 0.0
    %457 = vmatpush1.msra.mxu0 0.0
    %458 = vmatprep.subr.mxu0 0.0
    %459 = vmatpush1.msra.mxu0 0.0
    %460 = vmatprep.subr.mxu0 0.0
    %461 = vmatpush1.msra.mxu0 0.0
    %462 = vmatprep.subr.mxu0 0.0
    %463 = vmatpush1.msra.mxu0 0.0
    %464 = vmatprep.subr.mxu0 0.0
    %465 = vmatpush1.msra.mxu0 0.0
    %466 = vmatprep.subr.mxu0 0.0
    %467 = vmatpush1.msra.mxu0 0.0
    %468 = vmatprep.subr.mxu0 0.0
    %469 = vmatpush1.msra.mxu0 0.0
    %470 = vmatprep.subr.mxu0 0.0
    %471 = vmatpush1.msra.mxu0 0.0
    %472 = vmatprep.subr.mxu0 0.0
    %473 = vmatpush1.msra.mxu0 0.0
    %474 = vmatprep.subr.mxu0 0.0
    %475 = vmatpush1.msra.mxu0 0.0
    %476 = vmatprep.subr.mxu0 0.0
    %477 = vmatpush1.msra.mxu0 0.0
    %478 = vmatprep.subr.mxu0 0.0
    %479 = vmatpush1.msra.mxu0 0.0
    %480 = vmatprep.subr.mxu0 0.0
    %481 = vmatpush1.msra.mxu0 0.0
    %482 = vmatprep.subr.mxu0 0.0
    %483 = vmatpush1.msra.mxu0 0.0
    %484 = vmatprep.subr.mxu0 0.0
    %485 = vmatpush1.msra.mxu0 0.0
    %486 = vmatprep.subr.mxu0 0.0
    %487 = vmatpush1.msra.mxu0 0.0
    %488 = vmatprep.subr.mxu0 0.0
    %489 = vmatpush1.msra.mxu0 0.0
    %490 = vmatprep.subr.mxu0 0.0
    %491 = vmatpush1.msra.mxu0 0.0
    %492 = vmatprep.subr.mxu0 0.0
    %493 = vmatpush1.msra.mxu0 0.0
    %494 = vmatprep.subr.mxu0 0.0
    %495 = vmatpush1.msra.mxu0 0.0
    %496 = vmatprep.subr.mxu0 0.0
    %497 = vmatpush1.msra.mxu0 0.0
    %498 = vmatprep.mubr.f32.mxu0 0.0
    %499 = vmatmul.mubr.f32.gmra.mrb[0].mxu0 %v77
    %v500 = vpop.f32.mrb[0].mxu0
    %v501 = vadd.f32 0.0, %v500
    %v502 = vpop.f32.mrb[0].mxu0
    %503 = vmatprep.mubr.f32.mxu0 0.0
    %504 = vmatmul.mubr.f32.gmra.mrb[0].mxu0 %v80
    %v505 = vpop.f32.mrb[0].mxu0
    %v506 = vadd.f32 0.0, %v505
    %v507 = vpop.f32.mrb[0].mxu0
    %508 = vmatprep.mubr.f32.mxu0 0.0
    %509 = vmatmul.mubr.f32.gmra.mrb[0].mxu0 %v83
    %v510 = vpop.f32.mrb[0].mxu0
    %v511 = vadd.f32 0.0, %v510
    %v512 = vpop.f32.mrb[0].mxu0
    %513 = vmatprep.mubr.f32.mxu0 0.0
    %514 = vmatmul.mubr.f32.gmra.mrb[0].mxu0 %v86
    %v515 = vpop.f32.mrb[0].mxu0
    %v516 = vadd.f32 0.0, %v515
    %v517 = vpop.f32.mrb[0].mxu0
    %518 = vmatprep.mubr.f32.mxu0 0.0
    %519 = vmatmul.mubr.f32.gmra.mrb[0].mxu0 %v89
    %v520 = vpop.f32.mrb[0].mxu0
    %v521 = vadd.f32 0.0, %v520
    %v522 = vpop.f32.mrb[0].mxu0
    %523 = vmatprep.mubr.f32.mxu0 0.0
    %524 = vmatmul.mubr.f32.gmra.mrb[0].mxu0 %v92
    %v525 = vpop.f32.mrb[0].mxu0
    %v526 = vadd.f32 0.0, %v525
    %v527 = vpop.f32.mrb[0].mxu0
    %528 = vmatprep.mubr.f32.mxu0 0.0
    %529 = vmatmul.mubr.f32.gmra.mrb[0].mxu0 %v95
    %v530 = vpop.f32.mrb[0].mxu0
    %v531 = vadd.f32 0.0, %v530
    %v532 = vpop.f32.mrb[0].mxu0
    %533 = vmatprep.mubr.f32.mxu0 0.0
    %534 = vmatmul.mubr.f32.gmra.mrb[0].mxu0 %v98
    %v535 = vpop.f32.mrb[0].mxu0
    %v536 = vadd.f32 0.0, %v535
    %v537 = vpop.f32.mrb[0].mxu0
    %538 = vmatprep.mubr.f32.mxu0 0.0
    %539 = vmatmul.mubr.f32.gmra.mrb[0].mxu0 %v101
    %v540 = vpop.f32.mrb[0].mxu0
    %v541 = vadd.f32 0.0, %v540
    %v542 = vpop.f32.mrb[0].mxu0
    %543 = vmatprep.mubr.f32.mxu0 0.0
    %544 = vmatmul.mubr.f32.gmra.mrb[0].mxu0 %v104
    %v545 = vpop.f32.mrb[0].mxu0
    %v546 = vadd.f32 0.0, %v545
    %v547 = vpop.f32.mrb[0].mxu0
    %548 = vmatprep.mubr.f32.mxu0 0.0
    %549 = vmatmul.mubr.f32.gmra.mrb[0].mxu0 %v107
    %v550 = vpop.f32.mrb[0].mxu0
    %v551 = vadd.f32 0.0, %v550
    %v552 = vpop.f32.mrb[0].mxu0
    %553 = vmatprep.mubr.f32.mxu0 0.0
    %554 = vmatmul.mubr.f32.gmra.mrb[0].mxu0 %v110
    %v555 = vpop.f32.mrb[0].mxu0
    %v556 = vadd.f32 0.0, %v555
    %v557 = vpop.f32.mrb[0].mxu0
    %558 = vmatprep.mubr.f32.mxu0 0.0
    %559 = vmatmul.mubr.f32.gmra.mrb[0].mxu0 %v113
    %v560 = vpop.f32.mrb[0].mxu0
    %v561 = vadd.f32 0.0, %v560
    %v562 = vpop.f32.mrb[0].mxu0
    %563 = vmatprep.mubr.f32.mxu0 0.0
    %564 = vmatmul.mubr.f32.gmra.mrb[0].mxu0 %v116
    %v565 = vpop.f32.mrb[0].mxu0
    %v566 = vadd.f32 0.0, %v565
    %v567 = vpop.f32.mrb[0].mxu0
    %568 = vmatprep.mubr.f32.mxu0 0.0
    %569 = vmatmul.mubr.f32.gmra.mrb[0].mxu0 %v119
    %v570 = vpop.f32.mrb[0].mxu0
    %v571 = vadd.f32 0.0, %v570
    %v572 = vpop.f32.mrb[0].mxu0
    %573 = vmatprep.mubr.f32.mxu0 0.0
    %574 = vmatmul.mubr.f32.gmra.mrb[0].mxu0 %v122
    %v575 = vpop.f32.mrb[0].mxu0
    %v576 = vadd.f32 0.0, %v575
    %v577 = vpop.f32.mrb[0].mxu0
    %578 = vdwg.mxu0
    %v580 = vsel %vm75, %v269, 0
    %v583 = vsel %vm75, %v270, 0
    %v586 = vsel %vm75, %v271, 0
    %v589 = vsel %vm75, %v272, 0
    %v592 = vsel %vm75, %v273, 0
    %v595 = vsel %vm75, %v274, 0
    %v598 = vsel %vm75, %v275, 0
    %v601 = vsel %vm75, %v276, 0
    %v604 = vsel %vm75, %v354, 0
    %v607 = vsel %vm75, %v359, 0
    %v610 = vsel %vm75, %v364, 0
    %v613 = vsel %vm75, %v369, 0
    %v616 = vsel %vm75, %v374, 0
    %v619 = vsel %vm75, %v379, 0
    %v622 = vsel %vm75, %v384, 0
    %v625 = vsel %vm75, %v389, 0
    %627 = vmatprep.subr.mxu0 0.0
    %628 = vmatpush1.xpose.msra.mxu0 %v604
    %629 = vmatprep.subr.mxu0 0.0
    %630 = vmatpush1.xpose.msra.mxu0 %v607
    %631 = vmatprep.subr.mxu0 0.0
    %632 = vmatpush1.xpose.msra.mxu0 %v610
    %633 = vmatprep.subr.mxu0 0.0
    %634 = vmatpush1.xpose.msra.mxu0 %v613
    %635 = vmatprep.subr.mxu0 0.0
    %636 = vmatpush1.xpose.msra.mxu0 %v616
    %637 = vmatprep.subr.mxu0 0.0
    %638 = vmatpush1.xpose.msra.mxu0 %v619
    %639 = vmatprep.subr.mxu0 0.0
    %640 = vmatpush1.xpose.msra.mxu0 %v622
    %641 = vmatprep.subr.mxu0 0.0
    %642 = vmatpush1.xpose.msra.mxu0 %v625
    %643 = vmatprep.subr.mxu0 0.0
    %644 = vmatpush1.xpose.msra.mxu0 0.0
    %645 = vmatprep.subr.mxu0 0.0
    %646 = vmatpush1.xpose.msra.mxu0 0.0
    %647 = vmatprep.subr.mxu0 0.0
    %648 = vmatpush1.xpose.msra.mxu0 0.0
    %649 = vmatprep.subr.mxu0 0.0
    %650 = vmatpush1.xpose.msra.mxu0 0.0
    %651 = vmatprep.subr.mxu0 0.0
    %652 = vmatpush1.xpose.msra.mxu0 0.0
    %653 = vmatprep.subr.mxu0 0.0
    %654 = vmatpush1.xpose.msra.mxu0 0.0
    %655 = vmatprep.subr.mxu0 0.0
    %656 = vmatpush1.xpose.msra.mxu0 0.0
    %657 = vmatprep.subr.mxu0 0.0
    %658 = vmatpush1.xpose.msra.mxu0 0.0
    %659 = vmatprep.subr.mxu0 0.0
    %660 = vmatpush1.xpose.msra.mxu0 0.0
    %661 = vmatprep.subr.mxu0 0.0
    %662 = vmatpush1.xpose.msra.mxu0 0.0
    %663 = vmatprep.subr.mxu0 0.0
    %664 = vmatpush1.xpose.msra.mxu0 0.0
    %665 = vmatprep.subr.mxu0 0.0
    %666 = vmatpush1.xpose.msra.mxu0 0.0
    %667 = vmatprep.subr.mxu0 0.0
    %668 = vmatpush1.xpose.msra.mxu0 0.0
    %669 = vmatprep.subr.mxu0 0.0
    %670 = vmatpush1.xpose.msra.mxu0 0.0
    %671 = vmatprep.subr.mxu0 0.0
    %672 = vmatpush1.xpose.msra.mxu0 0.0
    %673 = vmatprep.subr.mxu0 0.0
    %674 = vmatpush1.xpose.msra.mxu0 0.0
    %675 = vmatprep.subr.mxu0 0.0
    %676 = vmatpush1.xpose.msra.mxu0 0.0
    %677 = vmatprep.subr.mxu0 0.0
    %678 = vmatpush1.xpose.msra.mxu0 0.0
    %679 = vmatprep.subr.mxu0 0.0
    %680 = vmatpush1.xpose.msra.mxu0 0.0
    %681 = vmatprep.subr.mxu0 0.0
    %682 = vmatpush1.xpose.msra.mxu0 0.0
    %683 = vmatprep.subr.mxu0 0.0
    %684 = vmatpush1.xpose.msra.mxu0 0.0
    %685 = vmatprep.subr.mxu0 0.0
    %686 = vmatpush1.xpose.msra.mxu0 0.0
    %687 = vmatprep.subr.mxu0 0.0
    %688 = vmatpush1.xpose.msra.mxu0 0.0
    %689 = vmatprep.subr.mxu0 0.0
    %690 = vmatpush1.xpose.msra.mxu0 0.0
    %691 = vmatprep.mubr.f32.mxu0 0.0
    %692 = vmatmul.mubr.f32.gmra.mrb[0].mxu0 %v580
    %v693 = vpop.f32.mrb[0].mxu0
    %v694 = vadd.f32 0.0, %v693
    %v695 = vpop.f32.mrb[0].mxu0
    %696 = vmatprep.mubr.f32.mxu0 0.0
    %697 = vmatmul.mubr.f32.gmra.mrb[0].mxu0 %v583
    %v698 = vpop.f32.mrb[0].mxu0
    %v699 = vadd.f32 0.0, %v698
    %v700 = vpop.f32.mrb[0].mxu0
    %701 = vmatprep.mubr.f32.mxu0 0.0
    %702 = vmatmul.mubr.f32.gmra.mrb[0].mxu0 %v586
    %v703 = vpop.f32.mrb[0].mxu0
    %v704 = vadd.f32 0.0, %v703
    %v705 = vpop.f32.mrb[0].mxu0
    %706 = vmatprep.mubr.f32.mxu0 0.0
    %707 = vmatmul.mubr.f32.gmra.mrb[0].mxu0 %v589
    %v708 = vpop.f32.mrb[0].mxu0
    %v709 = vadd.f32 0.0, %v708
    %v710 = vpop.f32.mrb[0].mxu0
    %711 = vmatprep.mubr.f32.mxu0 0.0
    %712 = vmatmul.mubr.f32.gmra.mrb[0].mxu0 %v592
    %v713 = vpop.f32.mrb[0].mxu0
    %v714 = vadd.f32 0.0, %v713
    %v715 = vpop.f32.mrb[0].mxu0
    %716 = vmatprep.mubr.f32.mxu0 0.0
    %717 = vmatmul.mubr.f32.gmra.mrb[0].mxu0 %v595
    %v718 = vpop.f32.mrb[0].mxu0
    %v719 = vadd.f32 0.0, %v718
    %v720 = vpop.f32.mrb[0].mxu0
    %721 = vmatprep.mubr.f32.mxu0 0.0
    %722 = vmatmul.mubr.f32.gmra.mrb[0].mxu0 %v598
    %v723 = vpop.f32.mrb[0].mxu0
    %v724 = vadd.f32 0.0, %v723
    %v725 = vpop.f32.mrb[0].mxu0
    %726 = vmatprep.mubr.f32.mxu0 0.0
    %727 = vmatmul.mubr.f32.gmra.mrb[0].mxu0 %v601
    %v728 = vpop.f32.mrb[0].mxu0
    %v729 = vadd.f32 0.0, %v728
    %v730 = vpop.f32.mrb[0].mxu0
    %731 = vdwg.mxu0
    %v733 = vsel %vm75, %v277, 0
    %v736 = vsel %vm75, %v278, 0
    %v739 = vsel %vm75, %v279, 0
    %v742 = vsel %vm75, %v280, 0
    %v745 = vsel %vm75, %v281, 0
    %v748 = vsel %vm75, %v282, 0
    %v751 = vsel %vm75, %v283, 0
    %v754 = vsel %vm75, %v284, 0
    %v757 = vsel %vm75, %v394, 0
    %v760 = vsel %vm75, %v399, 0
    %v763 = vsel %vm75, %v404, 0
    %v766 = vsel %vm75, %v409, 0
    %v769 = vsel %vm75, %v414, 0
    %v772 = vsel %vm75, %v419, 0
    %v775 = vsel %vm75, %v424, 0
    %v778 = vsel %vm75, %v429, 0
    %780 = vmatprep.subr.mxu0 0.0
    %781 = vmatpush1.xpose.msra.mxu0 %v757
    %782 = vmatprep.subr.mxu0 0.0
    %783 = vmatpush1.xpose.msra.mxu0 %v760
    %784 = vmatprep.subr.mxu0 0.0
    %785 = vmatpush1.xpose.msra.mxu0 %v763
    %786 = vmatprep.subr.mxu0 0.0
    %787 = vmatpush1.xpose.msra.mxu0 %v766
    %788 = vmatprep.subr.mxu0 0.0
    %789 = vmatpush1.xpose.msra.mxu0 %v769
    %790 = vmatprep.subr.mxu0 0.0
    %791 = vmatpush1.xpose.msra.mxu0 %v772
    %792 = vmatprep.subr.mxu0 0.0
    %793 = vmatpush1.xpose.msra.mxu0 %v775
    %794 = vmatprep.subr.mxu0 0.0
    %795 = vmatpush1.xpose.msra.mxu0 %v778
    %796 = vmatprep.subr.mxu0 0.0
    %797 = vmatpush1.xpose.msra.mxu0 0.0
    %798 = vmatprep.subr.mxu0 0.0
    %799 = vmatpush1.xpose.msra.mxu0 0.0
    %800 = vmatprep.subr.mxu0 0.0
    %801 = vmatpush1.xpose.msra.mxu0 0.0
    %802 = vmatprep.subr.mxu0 0.0
    %803 = vmatpush1.xpose.msra.mxu0 0.0
    %804 = vmatprep.subr.mxu0 0.0
    %805 = vmatpush1.xpose.msra.mxu0 0.0
    %806 = vmatprep.subr.mxu0 0.0
    %807 = vmatpush1.xpose.msra.mxu0 0.0
    %808 = vmatprep.subr.mxu0 0.0
    %809 = vmatpush1.xpose.msra.mxu0 0.0
    %810 = vmatprep.subr.mxu0 0.0
    %811 = vmatpush1.xpose.msra.mxu0 0.0
    %812 = vmatprep.subr.mxu0 0.0
    %813 = vmatpush1.xpose.msra.mxu0 0.0
    %814 = vmatprep.subr.mxu0 0.0
    %815 = vmatpush1.xpose.msra.mxu0 0.0
    %816 = vmatprep.subr.mxu0 0.0
    %817 = vmatpush1.xpose.msra.mxu0 0.0
    %818 = vmatprep.subr.mxu0 0.0
    %819 = vmatpush1.xpose.msra.mxu0 0.0
    %820 = vmatprep.subr.mxu0 0.0
    %821 = vmatpush1.xpose.msra.mxu0 0.0
    %822 = vmatprep.subr.mxu0 0.0
    %823 = vmatpush1.xpose.msra.mxu0 0.0
    %824 = vmatprep.subr.mxu0 0.0
    %825 = vmatpush1.xpose.msra.mxu0 0.0
    %826 = vmatprep.subr.mxu0 0.0
    %827 = vmatpush1.xpose.msra.mxu0 0.0
    %828 = vmatprep.subr.mxu0 0.0
    %829 = vmatpush1.xpose.msra.mxu0 0.0
    %830 = vmatprep.subr.mxu0 0.0
    %831 = vmatpush1.xpose.msra.mxu0 0.0
    %832 = vmatprep.subr.mxu0 0.0
    %833 = vmatpush1.xpose.msra.mxu0 0.0
    %834 = vmatprep.subr.mxu0 0.0
    %835 = vmatpush1.xpose.msra.mxu0 0.0
    %836 = vmatprep.subr.mxu0 0.0
    %837 = vmatpush1.xpose.msra.mxu0 0.0
    %838 = vmatprep.subr.mxu0 0.0
    %839 = vmatpush1.xpose.msra.mxu0 0.0
    %840 = vmatprep.subr.mxu0 0.0
    %841 = vmatpush1.xpose.msra.mxu0 0.0
    %842 = vmatprep.subr.mxu0 0.0
    %843 = vmatpush1.xpose.msra.mxu0 0.0
    %844 = vmatprep.mubr.f32.mxu0 0.0
    %845 = vmatmul.mubr.f32.gmra.mrb[0].mxu0 %v733
    %v846 = vpop.f32.mrb[0].mxu0
    %v847 = vadd.f32 0.0, %v846
    %v848 = vpop.f32.mrb[0].mxu0
    %849 = vmatprep.mubr.f32.mxu0 0.0
    %850 = vmatmul.mubr.f32.gmra.mrb[0].mxu0 %v736
    %v851 = vpop.f32.mrb[0].mxu0
    %v852 = vadd.f32 0.0, %v851
    %v853 = vpop.f32.mrb[0].mxu0
    %854 = vmatprep.mubr.f32.mxu0 0.0
    %855 = vmatmul.mubr.f32.gmra.mrb[0].mxu0 %v739
    %v856 = vpop.f32.mrb[0].mxu0
    %v857 = vadd.f32 0.0, %v856
    %v858 = vpop.f32.mrb[0].mxu0
    %859 = vmatprep.mubr.f32.mxu0 0.0
    %860 = vmatmul.mubr.f32.gmra.mrb[0].mxu0 %v742
    %v861 = vpop.f32.mrb[0].mxu0
    %v862 = vadd.f32 0.0, %v861
    %v863 = vpop.f32.mrb[0].mxu0
    %864 = vmatprep.mubr.f32.mxu0 0.0
    %865 = vmatmul.mubr.f32.gmra.mrb[0].mxu0 %v745
    %v866 = vpop.f32.mrb[0].mxu0
    %v867 = vadd.f32 0.0, %v866
    %v868 = vpop.f32.mrb[0].mxu0
    %869 = vmatprep.mubr.f32.mxu0 0.0
    %870 = vmatmul.mubr.f32.gmra.mrb[0].mxu0 %v748
    %v871 = vpop.f32.mrb[0].mxu0
    %v872 = vadd.f32 0.0, %v871
    %v873 = vpop.f32.mrb[0].mxu0
    %874 = vmatprep.mubr.f32.mxu0 0.0
    %875 = vmatmul.mubr.f32.gmra.mrb[0].mxu0 %v751
    %v876 = vpop.f32.mrb[0].mxu0
    %v877 = vadd.f32 0.0, %v876
    %v878 = vpop.f32.mrb[0].mxu0
    %879 = vmatprep.mubr.f32.mxu0 0.0
    %880 = vmatmul.mubr.f32.gmra.mrb[0].mxu0 %v754
    %v881 = vpop.f32.mrb[0].mxu0
    %v882 = vadd.f32 0.0, %v881
    %v883 = vpop.f32.mrb[0].mxu0
    %884 = vdwg.mxu0
    %vm885 = vcmask 523264
    %v886 = vsel %vm885, %v694, -inf
    %v887 = vsel %vm885, %v847, -inf
    %v888 = vmax.f32 %v886, %v887
    %v889 = vsel %vm885, %v699, -inf
    %v890 = vsel %vm885, %v852, -inf
    %v891 = vmax.f32 %v889, %v890
    %v892 = vsel %vm885, %v704, -inf
    %v893 = vsel %vm885, %v857, -inf
    %v894 = vmax.f32 %v892, %v893
    %v895 = vsel %vm885, %v709, -inf
    %v896 = vsel %vm885, %v862, -inf
    %v897 = vmax.f32 %v895, %v896
    %v898 = vsel %vm885, %v714, -inf
    %v899 = vsel %vm885, %v867, -inf
    %v900 = vmax.f32 %v898, %v899
    %v901 = vsel %vm885, %v719, -inf
    %v902 = vsel %vm885, %v872, -inf
    %v903 = vmax.f32 %v901, %v902
    %v904 = vsel %vm885, %v724, -inf
    %v905 = vsel %vm885, %v877, -inf
    %v906 = vmax.f32 %v904, %v905
    %v907 = vsel %vm885, %v729, -inf
    %v908 = vsel %vm885, %v882, -inf
    %v909 = vmax.f32 %v907, %v908
    %v910 = vsub.f32 %v694, %v888
    %v911 = vsub.f32 %v699, %v891
    %v912 = vsub.f32 %v704, %v894
    %v913 = vsub.f32 %v709, %v897
    %v914 = vsub.f32 %v714, %v900
    %v915 = vsub.f32 %v719, %v903
    %v916 = vsub.f32 %v724, %v906
    %v917 = vsub.f32 %v729, %v909
    %v918 = vsub.f32 %v847, %v888
    %v919 = vsub.f32 %v852, %v891
    %v920 = vsub.f32 %v857, %v894
    %v921 = vsub.f32 %v862, %v897
    %v922 = vsub.f32 %v867, %v900
    %v923 = vsub.f32 %v872, %v903
    %v924 = vsub.f32 %v877, %v906
    %v925 = vsub.f32 %v882, %v909
    %v926 = vmul.f32 %v910, 1.442695
    %v927 = vpow.pop %v926
    %v928 = vmul.f32 %v911, 1.442695
    %v929 = vpow.pop %v928
    %v930 = vmul.f32 %v912, 1.442695
    %v931 = vpow.pop %v930
    %v932 = vmul.f32 %v913, 1.442695
    %v933 = vpow.pop %v932
    %v934 = vmul.f32 %v914, 1.442695
    %v935 = vpow.pop %v934
    %v936 = vmul.f32 %v915, 1.442695
    %v937 = vpow.pop %v936
    %v938 = vmul.f32 %v916, 1.442695
    %v939 = vpow.pop %v938
    %v940 = vmul.f32 %v917, 1.442695
    %v941 = vpow.pop %v940
    %v942 = vmul.f32 %v918, 1.442695
    %v943 = vpow.pop %v942
    %v944 = vmul.f32 %v919, 1.442695
    %v945 = vpow.pop %v944
    %v946 = vmul.f32 %v920, 1.442695
    %v947 = vpow.pop %v946
    %v948 = vmul.f32 %v921, 1.442695
    %v949 = vpow.pop %v948
    %v950 = vmul.f32 %v922, 1.442695
    %v951 = vpow.pop %v950
    %v952 = vmul.f32 %v923, 1.442695
    %v953 = vpow.pop %v952
    %v954 = vmul.f32 %v924, 1.442695
    %v955 = vpow.pop %v954
    %v956 = vmul.f32 %v925, 1.442695
    %v957 = vpow.pop %v956
    %v958 = vsel %vm885, %v927, 0.0
    %v959 = vsel %vm885, %v943, 0.0
    %v960 = vadd.f32 %v958, %v959
    %v961 = vsel %vm885, %v929, 0.0
    %v962 = vsel %vm885, %v945, 0.0
    %v963 = vadd.f32 %v961, %v962
    %v964 = vsel %vm885, %v931, 0.0
    %v965 = vsel %vm885, %v947, 0.0
    %v966 = vadd.f32 %v964, %v965
    %v967 = vsel %vm885, %v933, 0.0
    %v968 = vsel %vm885, %v949, 0.0
    %v969 = vadd.f32 %v967, %v968
    %v970 = vsel %vm885, %v935, 0.0
    %v971 = vsel %vm885, %v951, 0.0
    %v972 = vadd.f32 %v970, %v971
    %v973 = vsel %vm885, %v937, 0.0
    %v974 = vsel %vm885, %v953, 0.0
    %v975 = vadd.f32 %v973, %v974
    %v976 = vsel %vm885, %v939, 0.0
    %v977 = vsel %vm885, %v955, 0.0
    %v978 = vadd.f32 %v976, %v977
    %v979 = vsel %vm885, %v941, 0.0
    %v980 = vsel %vm885, %v957, 0.0
    %v981 = vadd.f32 %v979, %v980
    %v982 = vrcp.pop %v960
    %v983 = vmul.f32 %v927, %v982
    %v984 = vrcp.pop %v963
    %v985 = vmul.f32 %v929, %v984
    %v986 = vrcp.pop %v966
    %v987 = vmul.f32 %v931, %v986
    %v988 = vrcp.pop %v969
    %v989 = vmul.f32 %v933, %v988
    %v990 = vrcp.pop %v972
    %v991 = vmul.f32 %v935, %v990
    %v992 = vrcp.pop %v975
    %v993 = vmul.f32 %v937, %v992
    %v994 = vrcp.pop %v978
    %v995 = vmul.f32 %v939, %v994
    %v996 = vrcp.pop %v981
    %v997 = vmul.f32 %v941, %v996
    %v998 = vmul.f32 %v943, %v982
    %v999 = vmul.f32 %v945, %v984
    %v1000 = vmul.f32 %v947, %v986
    %v1001 = vmul.f32 %v949, %v988
    %v1002 = vmul.f32 %v951, %v990
    %v1003 = vmul.f32 %v953, %v992
    %v1004 = vmul.f32 %v955, %v994
    %v1005 = vmul.f32 %v957, %v996
    %v1007 = vsel %vm885, %v983, 0
    %v1010 = vsel %vm885, %v985, 0
    %v1013 = vsel %vm885, %v987, 0
    %v1016 = vsel %vm885, %v989, 0
    %v1019 = vsel %vm885, %v991, 0
    %v1022 = vsel %vm885, %v993, 0
    %v1025 = vsel %vm885, %v995, 0
    %v1028 = vsel %vm885, %v997, 0
    %1030 = vmatprep.subr.mxu0 0.0
    %1031 = vmatpush1.msra.mxu0 %v501
    %1032 = vmatprep.subr.mxu0 0.0
    %1033 = vmatpush1.msra.mxu0 %v506
    %1034 = vmatprep.subr.mxu0 0.0
    %1035 = vmatpush1.msra.mxu0 %v511
    %1036 = vmatprep.subr.mxu0 0.0
    %1037 = vmatpush1.msra.mxu0 %v516
    %1038 = vmatprep.subr.mxu0 0.0
    %1039 = vmatpush1.msra.mxu0 %v521
    %1040 = vmatprep.subr.mxu0 0.0
    %1041 = vmatpush1.msra.mxu0 %v526
    %1042 = vmatprep.subr.mxu0 0.0
    %1043 = vmatpush1.msra.mxu0 %v531
    %1044 = vmatprep.subr.mxu0 0.0
    %1045 = vmatpush1.msra.mxu0 %v536
    %1046 = vmatprep.subr.mxu0 0.0
    %1047 = vmatpush1.msra.mxu0 0.0
    %1048 = vmatprep.subr.mxu0 0.0
    %1049 = vmatpush1.msra.mxu0 0.0
    %1050 = vmatprep.subr.mxu0 0.0
    %1051 = vmatpush1.msra.mxu0 0.0
    %1052 = vmatprep.subr.mxu0 0.0
    %1053 = vmatpush1.msra.mxu0 0.0
    %1054 = vmatprep.subr.mxu0 0.0
    %1055 = vmatpush1.msra.mxu0 0.0
    %1056 = vmatprep.subr.mxu0 0.0
    %1057 = vmatpush1.msra.mxu0 0.0
    %1058 = vmatprep.subr.mxu0 0.0
    %1059 = vmatpush1.msra.mxu0 0.0
    %1060 = vmatprep.subr.mxu0 0.0
    %1061 = vmatpush1.msra.mxu0 0.0
    %1062 = vmatprep.subr.mxu0 0.0
    %1063 = vmatpush1.msra.mxu0 0.0
    %1064 = vmatprep.subr.mxu0 0.0
    %1065 = vmatpush1.msra.mxu0 0.0
    %1066 = vmatprep.subr.mxu0 0.0
    %1067 = vmatpush1.msra.mxu0 0.0
    %1068 = vmatprep.subr.mxu0 0.0
    %1069 = vmatpush1.msra.mxu0 0.0
    %1070 = vmatprep.subr.mxu0 0.0
    %1071 = vmatpush1.msra.mxu0 0.0
    %1072 = vmatprep.subr.mxu0 0.0
    %1073 = vmatpush1.msra.mxu0 0.0
    %1074 = vmatprep.subr.mxu0 0.0
    %1075 = vmatpush1.msra.mxu0 0.0
    %1076 = vmatprep.subr.mxu0 0.0
    %1077 = vmatpush1.msra.mxu0 0.0
    %1078 = vmatprep.subr.mxu0 0.0
    %1079 = vmatpush1.msra.mxu0 0.0
    %1080 = vmatprep.subr.mxu0 0.0
    %1081 = vmatpush1.msra.mxu0 0.0
    %1082 = vmatprep.subr.mxu0 0.0
    %1083 = vmatpush1.msra.mxu0 0.0
    %1084 = vmatprep.subr.mxu0 0.0
    %1085 = vmatpush1.msra.mxu0 0.0
    %1086 = vmatprep.subr.mxu0 0.0
    %1087 = vmatpush1.msra.mxu0 0.0
    %1088 = vmatprep.subr.mxu0 0.0
    %1089 = vmatpush1.msra.mxu0 0.0
    %1090 = vmatprep.subr.mxu0 0.0
    %1091 = vmatpush1.msra.mxu0 0.0
    %1092 = vmatprep.subr.mxu0 0.0
    %1093 = vmatpush1.msra.mxu0 0.0
    %1094 = vmatprep.mubr.f32.mxu0 0.0
    %1095 = vmatmul.mubr.f32.gmra.mrb[0].mxu0 %v1007
    %v1096 = vpop.f32.mrb[0].mxu0
    %v1097 = vadd.f32 0.0, %v1096
    %v1098 = vpop.f32.mrb[0].mxu0
    %1099 = vmatprep.mubr.f32.mxu0 0.0
    %1100 = vmatmul.mubr.f32.gmra.mrb[0].mxu0 %v1010
    %v1101 = vpop.f32.mrb[0].mxu0
    %v1102 = vadd.f32 0.0, %v1101
    %v1103 = vpop.f32.mrb[0].mxu0
    %1104 = vmatprep.mubr.f32.mxu0 0.0
    %1105 = vmatmul.mubr.f32.gmra.mrb[0].mxu0 %v1013
    %v1106 = vpop.f32.mrb[0].mxu0
    %v1107 = vadd.f32 0.0, %v1106
    %v1108 = vpop.f32.mrb[0].mxu0
    %1109 = vmatprep.mubr.f32.mxu0 0.0
    %1110 = vmatmul.mubr.f32.gmra.mrb[0].mxu0 %v1016
    %v1111 = vpop.f32.mrb[0].mxu0
    %v1112 = vadd.f32 0.0, %v1111
    %v1113 = vpop.f32.mrb[0].mxu0
    %1114 = vmatprep.mubr.f32.mxu0 0.0
    %1115 = vmatmul.mubr.f32.gmra.mrb[0].mxu0 %v1019
    %v1116 = vpop.f32.mrb[0].mxu0
    %v1117 = vadd.f32 0.0, %v1116
    %v1118 = vpop.f32.mrb[0].mxu0
    %1119 = vmatprep.mubr.f32.mxu0 0.0
    %1120 = vmatmul.mubr.f32.gmra.mrb[0].mxu0 %v1022
    %v1121 = vpop.f32.mrb[0].mxu0
    %v1122 = vadd.f32 0.0, %v1121
    %v1123 = vpop.f32.mrb[0].mxu0
    %1124 = vmatprep.mubr.f32.mxu0 0.0
    %1125 = vmatmul.mubr.f32.gmra.mrb[0].mxu0 %v1025
    %v1126 = vpop.f32.mrb[0].mxu0
    %v1127 = vadd.f32 0.0, %v1126
    %v1128 = vpop.f32.mrb[0].mxu0
    %1129 = vmatprep.mubr.f32.mxu0 0.0
    %1130 = vmatmul.mubr.f32.gmra.mrb[0].mxu0 %v1028
    %v1131 = vpop.f32.mrb[0].mxu0
    %v1132 = vadd.f32 0.0, %v1131
    %v1133 = vpop.f32.mrb[0].mxu0
    %1134 = vdwg.mxu0
    %v1136 = vsel %vm885, %v998, 0
    %v1139 = vsel %vm885, %v999, 0
    %v1142 = vsel %vm885, %v1000, 0
    %v1145 = vsel %vm885, %v1001, 0
    %v1148 = vsel %vm885, %v1002, 0
    %v1151 = vsel %vm885, %v1003, 0
    %v1154 = vsel %vm885, %v1004, 0
    %v1157 = vsel %vm885, %v1005, 0
    %1159 = vmatprep.subr.mxu0 0.0
    %1160 = vmatpush1.msra.mxu0 %v541
    %1161 = vmatprep.subr.mxu0 0.0
    %1162 = vmatpush1.msra.mxu0 %v546
    %1163 = vmatprep.subr.mxu0 0.0
    %1164 = vmatpush1.msra.mxu0 %v551
    %1165 = vmatprep.subr.mxu0 0.0
    %1166 = vmatpush1.msra.mxu0 %v556
    %1167 = vmatprep.subr.mxu0 0.0
    %1168 = vmatpush1.msra.mxu0 %v561
    %1169 = vmatprep.subr.mxu0 0.0
    %1170 = vmatpush1.msra.mxu0 %v566
    %1171 = vmatprep.subr.mxu0 0.0
    %1172 = vmatpush1.msra.mxu0 %v571
    %1173 = vmatprep.subr.mxu0 0.0
    %1174 = vmatpush1.msra.mxu0 %v576
    %1175 = vmatprep.subr.mxu0 0.0
    %1176 = vmatpush1.msra.mxu0 0.0
    %1177 = vmatprep.subr.mxu0 0.0
    %1178 = vmatpush1.msra.mxu0 0.0
    %1179 = vmatprep.subr.mxu0 0.0
    %1180 = vmatpush1.msra.mxu0 0.0
    %1181 = vmatprep.subr.mxu0 0.0
    %1182 = vmatpush1.msra.mxu0 0.0
    %1183 = vmatprep.subr.mxu0 0.0
    %1184 = vmatpush1.msra.mxu0 0.0
    %1185 = vmatprep.subr.mxu0 0.0
    %1186 = vmatpush1.msra.mxu0 0.0
    %1187 = vmatprep.subr.mxu0 0.0
    %1188 = vmatpush1.msra.mxu0 0.0
    %1189 = vmatprep.subr.mxu0 0.0
    %1190 = vmatpush1.msra.mxu0 0.0
    %1191 = vmatprep.subr.mxu0 0.0
    %1192 = vmatpush1.msra.mxu0 0.0
    %1193 = vmatprep.subr.mxu0 0.0
    %1194 = vmatpush1.msra.mxu0 0.0
    %1195 = vmatprep.subr.mxu0 0.0
    %1196 = vmatpush1.msra.mxu0 0.0
    %1197 = vmatprep.subr.mxu0 0.0
    %1198 = vmatpush1.msra.mxu0 0.0
    %1199 = vmatprep.subr.mxu0 0.0
    %1200 = vmatpush1.msra.mxu0 0.0
    %1201 = vmatprep.subr.mxu0 0.0
    %1202 = vmatpush1.msra.mxu0 0.0
    %1203 = vmatprep.subr.mxu0 0.0
    %1204 = vmatpush1.msra.mxu0 0.0
    %1205 = vmatprep.subr.mxu0 0.0
    %1206 = vmatpush1.msra.mxu0 0.0
    %1207 = vmatprep.subr.mxu0 0.0
    %1208 = vmatpush1.msra.mxu0 0.0
    %1209 = vmatprep.subr.mxu0 0.0
    %1210 = vmatpush1.msra.mxu0 0.0
    %1211 = vmatprep.subr.mxu0 0.0
    %1212 = vmatpush1.msra.mxu0 0.0
    %1213 = vmatprep.subr.mxu0 0.0
    %1214 = vmatpush1.msra.mxu0 0.0
    %1215 = vmatprep.subr.mxu0 0.0
    %1216 = vmatpush1.msra.mxu0 0.0
    %1217 = vmatprep.subr.mxu0 0.0
    %1218 = vmatpush1.msra.mxu0 0.0
    %1219 = vmatprep.subr.mxu0 0.0
    %1220 = vmatpush1.msra.mxu0 0.0
    %1221 = vmatprep.subr.mxu0 0.0
    %1222 = vmatpush1.msra.mxu0 0.0
    %1223 = vmatprep.mubr.f32.mxu0 0.0
    %1224 = vmatmul.mubr.f32.gmra.mrb[0].mxu0 %v1136
    %v1225 = vpop.f32.mrb[0].mxu0
    %v1226 = vadd.f32 0.0, %v1225
    %v1227 = vpop.f32.mrb[0].mxu0
    %1228 = vmatprep.mubr.f32.mxu0 0.0
    %1229 = vmatmul.mubr.f32.gmra.mrb[0].mxu0 %v1139
    %v1230 = vpop.f32.mrb[0].mxu0
    %v1231 = vadd.f32 0.0, %v1230
    %v1232 = vpop.f32.mrb[0].mxu0
    %1233 = vmatprep.mubr.f32.mxu0 0.0
    %1234 = vmatmul.mubr.f32.gmra.mrb[0].mxu0 %v1142
    %v1235 = vpop.f32.mrb[0].mxu0
    %v1236 = vadd.f32 0.0, %v1235
    %v1237 = vpop.f32.mrb[0].mxu0
    %1238 = vmatprep.mubr.f32.mxu0 0.0
    %1239 = vmatmul.mubr.f32.gmra.mrb[0].mxu0 %v1145
    %v1240 = vpop.f32.mrb[0].mxu0
    %v1241 = vadd.f32 0.0, %v1240
    %v1242 = vpop.f32.mrb[0].mxu0
    %1243 = vmatprep.mubr.f32.mxu0 0.0
    %1244 = vmatmul.mubr.f32.gmra.mrb[0].mxu0 %v1148
    %v1245 = vpop.f32.mrb[0].mxu0
    %v1246 = vadd.f32 0.0, %v1245
    %v1247 = vpop.f32.mrb[0].mxu0
    %1248 = vmatprep.mubr.f32.mxu0 0.0
    %1249 = vmatmul.mubr.f32.gmra.mrb[0].mxu0 %v1151
    %v1250 = vpop.f32.mrb[0].mxu0
    %v1251 = vadd.f32 0.0, %v1250
    %v1252 = vpop.f32.mrb[0].mxu0
    %1253 = vmatprep.mubr.f32.mxu0 0.0
    %1254 = vmatmul.mubr.f32.gmra.mrb[0].mxu0 %v1154
    %v1255 = vpop.f32.mrb[0].mxu0
    %v1256 = vadd.f32 0.0, %v1255
    %v1257 = vpop.f32.mrb[0].mxu0
    %1258 = vmatprep.mubr.f32.mxu0 0.0
    %1259 = vmatmul.mubr.f32.gmra.mrb[0].mxu0 %v1157
    %v1260 = vpop.f32.mrb[0].mxu0
    %v1261 = vadd.f32 0.0, %v1260
    %v1262 = vpop.f32.mrb[0].mxu0
    %1263 = vdwg.mxu0
    %v1264 = vadd.f32 %v57, %v1097
    %v1265 = vadd.f32 %v58, %v1102
    %v1266 = vadd.f32 %v59, %v1107
    %v1267 = vadd.f32 %v60, %v1112
    %v1268 = vadd.f32 %v61, %v1117
    %v1269 = vadd.f32 %v62, %v1122
    %v1270 = vadd.f32 %v63, %v1127
    %v1271 = vadd.f32 %v64, %v1132
    %v1272 = vadd.f32 %v65, %v1226
    %v1273 = vadd.f32 %v66, %v1231
    %v1274 = vadd.f32 %v67, %v1236
    %v1275 = vadd.f32 %v68, %v1241
    %v1276 = vadd.f32 %v69, %v1246
    %v1277 = vadd.f32 %v70, %v1251
    %v1278 = vadd.f32 %v71, %v1256
    %v1279 = vadd.f32 %v72, %v1261
    %v1280 = vsel %vm75, %v1264, 0.0
    %1281 = vadd.xlane.f32.xlu0 %v1280
    %v1282 = vpop.xlane.xlu0 %1281
    %v1283 = vsel %vm75, %v1265, 0.0
    %1284 = vadd.xlane.f32.xlu0 %v1283
    %v1285 = vpop.xlane.xlu0 %1284
    %v1286 = vsel %vm75, %v1266, 0.0
    %1287 = vadd.xlane.f32.xlu0 %v1286
    %v1288 = vpop.xlane.xlu0 %1287
    %v1289 = vsel %vm75, %v1267, 0.0
    %1290 = vadd.xlane.f32.xlu0 %v1289
    %v1291 = vpop.xlane.xlu0 %1290
    %v1292 = vsel %vm75, %v1268, 0.0
    %1293 = vadd.xlane.f32.xlu0 %v1292
    %v1294 = vpop.xlane.xlu0 %1293
    %v1295 = vsel %vm75, %v1269, 0.0
    %1296 = vadd.xlane.f32.xlu0 %v1295
    %v1297 = vpop.xlane.xlu0 %1296
    %v1298 = vsel %vm75, %v1270, 0.0
    %1299 = vadd.xlane.f32.xlu0 %v1298
    %v1300 = vpop.xlane.xlu0 %1299
    %v1301 = vsel %vm75, %v1271, 0.0
    %1302 = vadd.xlane.f32.xlu0 %v1301
    %v1303 = vpop.xlane.xlu0 %1302
    %v1304 = vsel %vm75, %v1272, 0.0
    %1305 = vadd.xlane.f32.xlu0 %v1304
    %v1306 = vpop.xlane.xlu0 %1305
    %v1307 = vsel %vm75, %v1273, 0.0
    %1308 = vadd.xlane.f32.xlu0 %v1307
    %v1309 = vpop.xlane.xlu0 %1308
    %v1310 = vsel %vm75, %v1274, 0.0
    %1311 = vadd.xlane.f32.xlu0 %v1310
    %v1312 = vpop.xlane.xlu0 %1311
    %v1313 = vsel %vm75, %v1275, 0.0
    %1314 = vadd.xlane.f32.xlu0 %v1313
    %v1315 = vpop.xlane.xlu0 %1314
    %v1316 = vsel %vm75, %v1276, 0.0
    %1317 = vadd.xlane.f32.xlu0 %v1316
    %v1318 = vpop.xlane.xlu0 %1317
    %v1319 = vsel %vm75, %v1277, 0.0
    %1320 = vadd.xlane.f32.xlu0 %v1319
    %v1321 = vpop.xlane.xlu0 %1320
    %v1322 = vsel %vm75, %v1278, 0.0
    %1323 = vadd.xlane.f32.xlu0 %v1322
    %v1324 = vpop.xlane.xlu0 %1323
    %v1325 = vsel %vm75, %v1279, 0.0
    %1326 = vadd.xlane.f32.xlu0 %v1325
    %v1327 = vpop.xlane.xlu0 %1326
    %v1328 = vrcp.pop 16.0
    %v1329 = vmul.f32 %v1282, %v1328
    %v1330 = vmul.f32 %v1285, %v1328
    %v1331 = vmul.f32 %v1288, %v1328
    %v1332 = vmul.f32 %v1291, %v1328
    %v1333 = vmul.f32 %v1294, %v1328
    %v1334 = vmul.f32 %v1297, %v1328
    %v1335 = vmul.f32 %v1300, %v1328
    %v1336 = vmul.f32 %v1303, %v1328
    %v1337 = vmul.f32 %v1306, %v1328
    %v1338 = vmul.f32 %v1309, %v1328
    %v1339 = vmul.f32 %v1312, %v1328
    %v1340 = vmul.f32 %v1315, %v1328
    %v1341 = vmul.f32 %v1318, %v1328
    %v1342 = vmul.f32 %v1321, %v1328
    %v1343 = vmul.f32 %v1324, %v1328
    %v1344 = vmul.f32 %v1327, %v1328
    %v1345 = vadd.f32 %v1329, %v1330
    %v1346 = vadd.f32 %v1345, %v1331
    %v1347 = vadd.f32 %v1346, %v1332
    %v1348 = vadd.f32 %v1347, %v1333
    %v1349 = vadd.f32 %v1348, %v1334
    %v1350 = vadd.f32 %v1349, %v1335
    %v1351 = vadd.f32 %v1350, %v1336
    %v1352 = vrot.slane %v1351, 4
    %v1353 = vadd.f32 %v1351, %v1352
    %v1354 = vrot.slane %v1353, 2
    %v1355 = vadd.f32 %v1353, %v1354
    %v1356 = vrot.slane %v1355, 1
    %v1357 = vadd.f32 %v1355, %v1356
    %v1358 = vadd.f32 %v1337, %v1338
    %v1359 = vadd.f32 %v1358, %v1339
    %v1360 = vadd.f32 %v1359, %v1340
    %v1361 = vadd.f32 %v1360, %v1341
    %v1362 = vadd.f32 %v1361, %v1342
    %v1363 = vadd.f32 %v1362, %v1343
    %v1364 = vadd.f32 %v1363, %v1344
    %v1365 = vrot.slane %v1364, 4
    %v1366 = vadd.f32 %v1364, %v1365
    %v1367 = vrot.slane %v1366, 2
    %v1368 = vadd.f32 %v1366, %v1367
    %v1369 = vrot.slane %v1368, 1
    %v1370 = vadd.f32 %v1368, %v1369
    %v1371 = vrcp.pop 64.0
    %v1372 = vmul.f32 %v1357, %v1371
    %v1373 = vmul.f32 %v1370, %v1371
    %v1374 = vsub.f32 %v1264, %v1372
    %v1375 = vsub.f32 %v1265, %v1372
    %v1376 = vsub.f32 %v1266, %v1372
    %v1377 = vsub.f32 %v1267, %v1372
    %v1378 = vsub.f32 %v1268, %v1372
    %v1379 = vsub.f32 %v1269, %v1372
    %v1380 = vsub.f32 %v1270, %v1372
    %v1381 = vsub.f32 %v1271, %v1372
    %v1382 = vsub.f32 %v1272, %v1373
    %v1383 = vsub.f32 %v1273, %v1373
    %v1384 = vsub.f32 %v1274, %v1373
    %v1385 = vsub.f32 %v1275, %v1373
    %v1386 = vsub.f32 %v1276, %v1373
    %v1387 = vsub.f32 %v1277, %v1373
    %v1388 = vsub.f32 %v1278, %v1373
    %v1389 = vsub.f32 %v1279, %v1373
    %v1390 = vmul.f32 %v1374, %v1374
    %v1391 = vmul.f32 %v1375, %v1375
    %v1392 = vmul.f32 %v1376, %v1376
    %v1393 = vmul.f32 %v1377, %v1377
    %v1394 = vmul.f32 %v1378, %v1378
    %v1395 = vmul.f32 %v1379, %v1379
    %v1396 = vmul.f32 %v1380, %v1380
    %v1397 = vmul.f32 %v1381, %v1381
    %v1398 = vmul.f32 %v1382, %v1382
    %v1399 = vmul.f32 %v1383, %v1383
    %v1400 = vmul.f32 %v1384, %v1384
    %v1401 = vmul.f32 %v1385, %v1385
    %v1402 = vmul.f32 %v1386, %v1386
    %v1403 = vmul.f32 %v1387, %v1387
    %v1404 = vmul.f32 %v1388, %v1388
    %v1405 = vmul.f32 %v1389, %v1389
    %v1406 = vsel %vm75, %v1390, 0.0
    %1407 = vadd.xlane.f32.xlu0 %v1406
    %v1408 = vpop.xlane.xlu0 %1407
    %v1409 = vsel %vm75, %v1391, 0.0
    %1410 = vadd.xlane.f32.xlu0 %v1409
    %v1411 = vpop.xlane.xlu0 %1410
    %v1412 = vsel %vm75, %v1392, 0.0
    %1413 = vadd.xlane.f32.xlu0 %v1412
    %v1414 = vpop.xlane.xlu0 %1413
    %v1415 = vsel %vm75, %v1393, 0.0
    %1416 = vadd.xlane.f32.xlu0 %v1415
    %v1417 = vpop.xlane.xlu0 %1416
    %v1418 = vsel %vm75, %v1394, 0.0
    %1419 = vadd.xlane.f32.xlu0 %v1418
    %v1420 = vpop.xlane.xlu0 %1419
    %v1421 = vsel %vm75, %v1395, 0.0
    %1422 = vadd.xlane.f32.xlu0 %v1421
    %v1423 = vpop.xlane.xlu0 %1422
    %v1424 = vsel %vm75, %v1396, 0.0
    %1425 = vadd.xlane.f32.xlu0 %v1424
    %v1426 = vpop.xlane.xlu0 %1425
    %v1427 = vsel %vm75, %v1397, 0.0
    %1428 = vadd.xlane.f32.xlu0 %v1427
    %v1429 = vpop.xlane.xlu0 %1428
    %v1430 = vsel %vm75, %v1398, 0.0
    %1431 = vadd.xlane.f32.xlu0 %v1430
    %v1432 = vpop.xlane.xlu0 %1431
    %v1433 = vsel %vm75, %v1399, 0.0
    %1434 = vadd.xlane.f32.xlu0 %v1433
    %v1435 = vpop.xlane.xlu0 %1434
    %v1436 = vsel %vm75, %v1400, 0.0
    %1437 = vadd.xlane.f32.xlu0 %v1436
    %v1438 = vpop.xlane.xlu0 %1437
    %v1439 = vsel %vm75, %v1401, 0.0
    %1440 = vadd.xlane.f32.xlu0 %v1439
    %v1441 = vpop.xlane.xlu0 %1440
    %v1442 = vsel %vm75, %v1402, 0.0
    %1443 = vadd.xlane.f32.xlu0 %v1442
    %v1444 = vpop.xlane.xlu0 %1443
    %v1445 = vsel %vm75, %v1403, 0.0
    %1446 = vadd.xlane.f32.xlu0 %v1445
    %v1447 = vpop.xlane.xlu0 %1446
    %v1448 = vsel %vm75, %v1404, 0.0
    %1449 = vadd.xlane.f32.xlu0 %v1448
    %v1450 = vpop.xlane.xlu0 %1449
    %v1451 = vsel %vm75, %v1405, 0.0
    %1452 = vadd.xlane.f32.xlu0 %v1451
    %v1453 = vpop.xlane.xlu0 %1452
    %v1454 = vmul.f32 %v1408, %v1328
    %v1455 = vmul.f32 %v1411, %v1328
    %v1456 = vmul.f32 %v1414, %v1328
    %v1457 = vmul.f32 %v1417, %v1328
    %v1458 = vmul.f32 %v1420, %v1328
    %v1459 = vmul.f32 %v1423, %v1328
    %v1460 = vmul.f32 %v1426, %v1328
    %v1461 = vmul.f32 %v1429, %v1328
    %v1462 = vmul.f32 %v1432, %v1328
    %v1463 = vmul.f32 %v1435, %v1328
    %v1464 = vmul.f32 %v1438, %v1328
    %v1465 = vmul.f32 %v1441, %v1328
    %v1466 = vmul.f32 %v1444, %v1328
    %v1467 = vmul.f32 %v1447, %v1328
    %v1468 = vmul.f32 %v1450, %v1328
    %v1469 = vmul.f32 %v1453, %v1328
    %v1470 = vadd.f32 %v1454, %v1455
    %v1471 = vadd.f32 %v1470, %v1456
    %v1472 = vadd.f32 %v1471, %v1457
    %v1473 = vadd.f32 %v1472, %v1458
    %v1474 = vadd.f32 %v1473, %v1459
    %v1475 = vadd.f32 %v1474, %v1460
    %v1476 = vadd.f32 %v1475, %v1461
    %v1477 = vrot.slane %v1476, 4
    %v1478 = vadd.f32 %v1476, %v1477
    %v1479 = vrot.slane %v1478, 2
    %v1480 = vadd.f32 %v1478, %v1479
    %v1481 = vrot.slane %v1480, 1
    %v1482 = vadd.f32 %v1480, %v1481
    %v1483 = vadd.f32 %v1462, %v1463
    %v1484 = vadd.f32 %v1483, %v1464
    %v1485 = vadd.f32 %v1484, %v1465
    %v1486 = vadd.f32 %v1485, %v1466
    %v1487 = vadd.f32 %v1486, %v1467
    %v1488 = vadd.f32 %v1487, %v1468
    %v1489 = vadd.f32 %v1488, %v1469
    %v1490 = vrot.slane %v1489, 4
    %v1491 = vadd.f32 %v1489, %v1490
    %v1492 = vrot.slane %v1491, 2
    %v1493 = vadd.f32 %v1491, %v1492
    %v1494 = vrot.slane %v1493, 1
    %v1495 = vadd.f32 %v1493, %v1494
    %v1496 = vmul.f32 %v1482, %v1371
    %v1497 = vmul.f32 %v1495, %v1371
    %v1498 = vadd.f32 %v1496, 1e-05
    %v1499 = vadd.f32 %v1497, 1e-05
    %v1500 = vrsqrt.pop %v1498
    %v1501 = vrsqrt.pop %v1499
    %v1502 = vmul.f32 %v1374, %v1500
    %v1503 = vmul.f32 %v1375, %v1500
    %v1504 = vmul.f32 %v1376, %v1500
    %v1505 = vmul.f32 %v1377, %v1500
    %v1506 = vmul.f32 %v1378, %v1500
    %v1507 = vmul.f32 %v1379, %v1500
    %v1508 = vmul.f32 %v1380, %v1500
    %v1509 = vmul.f32 %v1381, %v1500
    %v1510 = vmul.f32 %v1382, %v1501
    %v1511 = vmul.f32 %v1383, %v1501
    %v1512 = vmul.f32 %v1384, %v1501
    %v1513 = vmul.f32 %v1385, %v1501
    %v1514 = vmul.f32 %v1386, %v1501
    %v1515 = vmul.f32 %v1387, %v1501
    %v1516 = vmul.f32 %v1388, %v1501
    %v1517 = vmul.f32 %v1389, %v1501
    %v1520 = vrot.slane %v1510, 7
    %vm1521 = vcmask 1041409
    %v1522 = vsel %vm1521, %v1520, %v1502
    %v1524 = vrot.slane %v1502, 1
    %v1525 = vsel %vm1521, %v1510, %v1524
    %1526 = vrot.lane.b32.xlu0 %v1525, 16
    %v1527 = vpop.permute.xlu0 %1526
    %v1529 = vrot.slane %v1502, 2
    %v1530 = vrot.slane %v1510, 1
    %v1531 = vsel %vm1521, %v1530, %v1529
    %1532 = vrot.lane.b32.xlu0 %v1531, 32
    %v1533 = vpop.permute.xlu0 %1532
    %v1535 = vrot.slane %v1502, 3
    %v1536 = vrot.slane %v1510, 2
    %v1537 = vsel %vm1521, %v1536, %v1535
    %1538 = vrot.lane.b32.xlu0 %v1537, 48
    %v1539 = vpop.permute.xlu0 %1538
    %v1541 = vrot.slane %v1502, 4
    %v1542 = vrot.slane %v1510, 3
    %v1543 = vsel %vm1521, %v1542, %v1541
    %1544 = vrot.lane.b32.xlu0 %v1543, 64
    %v1545 = vpop.permute.xlu0 %1544
    %v1547 = vrot.slane %v1502, 5
    %v1548 = vrot.slane %v1510, 4
    %v1549 = vsel %vm1521, %v1548, %v1547
    %1550 = vrot.lane.b32.xlu0 %v1549, 80
    %v1551 = vpop.permute.xlu0 %1550
    %v1553 = vrot.slane %v1502, 6
    %v1554 = vrot.slane %v1510, 5
    %v1555 = vsel %vm1521, %v1554, %v1553
    %1556 = vrot.lane.b32.xlu0 %v1555, 96
    %v1557 = vpop.permute.xlu0 %1556
    %v1559 = vrot.slane %v1502, 7
    %v1560 = vrot.slane %v1510, 6
    %v1561 = vsel %vm1521, %v1560, %v1559
    %1562 = vrot.lane.b32.xlu0 %v1561, 112
    %v1563 = vpop.permute.xlu0 %1562
    %v1565 = vsel %vm75, %v1522, %v1527
    %vm1566 = vcmask 261120
    %v1567 = vsel %vm1566, %v1565, %v1533
    %vm1568 = vcmask 392192
    %v1569 = vsel %vm1568, %v1567, %v1539
    %v1570 = vsel %vm885, %v1569, %v1545
    %vm1571 = vcmask 654336
    %v1572 = vsel %vm1571, %v1570, %v1551
    %vm1573 = vcmask 785408
    %v1574 = vsel %vm1573, %v1572, %v1557
    %vm1575 = vcmask 916480
    %v1576 = vsel %vm1575, %v1574, %v1563
    %v1577 = vld [vmem:[#allocation2] sm:$0xff]
    %v1578 = vld [vmem:[#allocation2 + $0x8] sm:$0xff]
    %v1579 = vld [vmem:[#allocation2 + $0x10] sm:$0xff]
    %v1580 = vld [vmem:[#allocation2 + $0x18] sm:$0xff]
    %v1581 = vld [vmem:[#allocation2 + $0x20] sm:$0xff]
    %v1582 = vld [vmem:[#allocation2 + $0x28] sm:$0xff]
    %v1583 = vld [vmem:[#allocation2 + $0x30] sm:$0xff]
    %v1584 = vld [vmem:[#allocation2 + $0x38] sm:$0xff]
    %v1585 = vld [vmem:[#allocation2 + $0x40] sm:$0xff]
    %v1586 = vld [vmem:[#allocation2 + $0x48] sm:$0xff]
    %v1587 = vld [vmem:[#allocation2 + $0x50] sm:$0xff]
    %v1588 = vld [vmem:[#allocation2 + $0x58] sm:$0xff]
    %v1589 = vld [vmem:[#allocation2 + $0x60] sm:$0xff]
    %v1590 = vld [vmem:[#allocation2 + $0x68] sm:$0xff]
    %v1591 = vld [vmem:[#allocation2 + $0x70] sm:$0xff]
    %v1592 = vld [vmem:[#allocation2 + $0x78] sm:$0xff]
    %v1593 = vld [vmem:[%s5] sm:$0x1]
    %v1595 = vlaneseq
    %v1596 = vshrl.u32 %v1595, 7
    %v1597 = vsub.s32 0, %v1596
    %v1598 = vrot.slane %v1593, %v1597
    %1600 = vmatprep.subr.mxu0 0.0
    %1601 = vmatpush1.msra.mxu0 %v1577
    %1602 = vmatprep.subr.mxu0 0.0
    %1603 = vmatpush1.msra.mxu0 %v1578
    %1604 = vmatprep.subr.mxu0 0.0
    %1605 = vmatpush1.msra.mxu0 %v1579
    %1606 = vmatprep.subr.mxu0 0.0
    %1607 = vmatpush1.msra.mxu0 %v1580
    %1608 = vmatprep.subr.mxu0 0.0
    %1609 = vmatpush1.msra.mxu0 %v1581
    %1610 = vmatprep.subr.mxu0 0.0
    %1611 = vmatpush1.msra.mxu0 %v1582
    %1612 = vmatprep.subr.mxu0 0.0
    %1613 = vmatpush1.msra.mxu0 %v1583
    %1614 = vmatprep.subr.mxu0 0.0
    %1615 = vmatpush1.msra.mxu0 %v1584
    %1616 = vmatprep.subr.mxu0 0.0
    %1617 = vmatpush1.msra.mxu0 %v1585
    %1618 = vmatprep.subr.mxu0 0.0
    %1619 = vmatpush1.msra.mxu0 %v1586
    %1620 = vmatprep.subr.mxu0 0.0
    %1621 = vmatpush1.msra.mxu0 %v1587
    %1622 = vmatprep.subr.mxu0 0.0
    %1623 = vmatpush1.msra.mxu0 %v1588
    %1624 = vmatprep.subr.mxu0 0.0
    %1625 = vmatpush1.msra.mxu0 %v1589
    %1626 = vmatprep.subr.mxu0 0.0
    %1627 = vmatpush1.msra.mxu0 %v1590
    %1628 = vmatprep.subr.mxu0 0.0
    %1629 = vmatpush1.msra.mxu0 %v1591
    %1630 = vmatprep.subr.mxu0 0.0
    %1631 = vmatpush1.msra.mxu0 %v1592
    %1632 = vmatprep.subr.mxu0 0.0
    %1633 = vmatpush1.msra.mxu0 0.0
    %1634 = vmatprep.subr.mxu0 0.0
    %1635 = vmatpush1.msra.mxu0 0.0
    %1636 = vmatprep.subr.mxu0 0.0
    %1637 = vmatpush1.msra.mxu0 0.0
    %1638 = vmatprep.subr.mxu0 0.0
    %1639 = vmatpush1.msra.mxu0 0.0
    %1640 = vmatprep.subr.mxu0 0.0
    %1641 = vmatpush1.msra.mxu0 0.0
    %1642 = vmatprep.subr.mxu0 0.0
    %1643 = vmatpush1.msra.mxu0 0.0
    %1644 = vmatprep.subr.mxu0 0.0
    %1645 = vmatpush1.msra.mxu0 0.0
    %1646 = vmatprep.subr.mxu0 0.0
    %1647 = vmatpush1.msra.mxu0 0.0
    %1648 = vmatprep.subr.mxu0 0.0
    %1649 = vmatpush1.msra.mxu0 0.0
    %1650 = vmatprep.subr.mxu0 0.0
    %1651 = vmatpush1.msra.mxu0 0.0
    %1652 = vmatprep.subr.mxu0 0.0
    %1653 = vmatpush1.msra.mxu0 0.0
    %1654 = vmatprep.subr.mxu0 0.0
    %1655 = vmatpush1.msra.mxu0 0.0
    %1656 = vmatprep.subr.mxu0 0.0
    %1657 = vmatpush1.msra.mxu0 0.0
    %1658 = vmatprep.subr.mxu0 0.0
    %1659 = vmatpush1.msra.mxu0 0.0
    %1660 = vmatprep.subr.mxu0 0.0
    %1661 = vmatpush1.msra.mxu0 0.0
    %1662 = vmatprep.subr.mxu0 0.0
    %1663 = vmatpush1.msra.mxu0 0.0
    %1664 = vmatprep.mubr.f32.mxu0 0.0
    %1665 = vmatmul.mubr.f32.gmra.mrb[0].mxu0 %v1576
    %v1666 = vpop.f32.mrb[0].mxu0
    %v1667 = vadd.f32 %v1598, %v1666
    %v1668 = vpop.f32.mrb[0].mxu0
    %1669 = vdwg.mxu0
    %v1670 = vmax.f32 %v1667, 0.0
    %v1671 = vld [vmem:[#allocation4] sm:$0xff]
    %v1672 = vld [vmem:[#allocation4 + $0x8] sm:$0xff]
    %v1673 = vld [vmem:[#allocation4 + $0x10] sm:$0xff]
    %v1674 = vld [vmem:[#allocation4 + $0x18] sm:$0xff]
    %v1675 = vld [vmem:[#allocation4 + $0x20] sm:$0xff]
    %v1676 = vld [vmem:[#allocation4 + $0x28] sm:$0xff]
    %v1677 = vld [vmem:[#allocation4 + $0x30] sm:$0xff]
    %v1678 = vld [vmem:[#allocation4 + $0x38] sm:$0xff]
    %v1679 = vld [vmem:[#allocation4 + $0x40] sm:$0xff]
    %v1680 = vld [vmem:[#allocation4 + $0x48] sm:$0xff]
    %v1681 = vld [vmem:[#allocation4 + $0x50] sm:$0xff]
    %v1682 = vld [vmem:[#allocation4 + $0x58] sm:$0xff]
    %v1683 = vld [vmem:[#allocation4 + $0x60] sm:$0xff]
    %v1684 = vld [vmem:[#allocation4 + $0x68] sm:$0xff]
    %v1685 = vld [vmem:[#allocation4 + $0x70] sm:$0xff]
    %v1686 = vld [vmem:[#allocation4 + $0x78] sm:$0xff]
    %v1687 = vld [vmem:[%s7] sm:$0x1]
    %v1689 = vlaneseq
    %v1690 = vshrl.u32 %v1689, 7
    %v1691 = vsub.s32 0, %v1690
    %v1692 = vrot.slane %v1687, %v1691
    %1694 = vmatprep.subr.mxu0 0.0
    %1695 = vmatpush1.msra.mxu0 %v1671
    %1696 = vmatprep.subr.mxu0 0.0
    %1697 = vmatpush1.msra.mxu0 %v1672
    %1698 = vmatprep.subr.mxu0 0.0
    %1699 = vmatpush1.msra.mxu0 %v1673
    %1700 = vmatprep.subr.mxu0 0.0
    %1701 = vmatpush1.msra.mxu0 %v1674
    %1702 = vmatprep.subr.mxu0 0.0
    %1703 = vmatpush1.msra.mxu0 %v1675
    %1704 = vmatprep.subr.mxu0 0.0
    %1705 = vmatpush1.msra.mxu0 %v1676
    %1706 = vmatprep.subr.mxu0 0.0
    %1707 = vmatpush1.msra.mxu0 %v1677
    %1708 = vmatprep.subr.mxu0 0.0
    %1709 = vmatpush1.msra.mxu0 %v1678
    %1710 = vmatprep.subr.mxu0 0.0
    %1711 = vmatpush1.msra.mxu0 %v1679
    %1712 = vmatprep.subr.mxu0 0.0
    %1713 = vmatpush1.msra.mxu0 %v1680
    %1714 = vmatprep.subr.mxu0 0.0
    %1715 = vmatpush1.msra.mxu0 %v1681
    %1716 = vmatprep.subr.mxu0 0.0
    %1717 = vmatpush1.msra.mxu0 %v1682
    %1718 = vmatprep.subr.mxu0 0.0
    %1719 = vmatpush1.msra.mxu0 %v1683
    %1720 = vmatprep.subr.mxu0 0.0
    %1721 = vmatpush1.msra.mxu0 %v1684
    %1722 = vmatprep.subr.mxu0 0.0
    %1723 = vmatpush1.msra.mxu0 %v1685
    %1724 = vmatprep.subr.mxu0 0.0
    %1725 = vmatpush1.msra.mxu0 %v1686
    %1726 = vmatprep.subr.mxu0 0.0
    %1727 = vmatpush1.msra.mxu0 0.0
    %1728 = vmatprep.subr.mxu0 0.0
    %1729 = vmatpush1.msra.mxu0 0.0
    %1730 = vmatprep.subr.mxu0 0.0
    %1731 = vmatpush1.msra.mxu0 0.0
    %1732 = vmatprep.subr.mxu0 0.0
    %1733 = vmatpush1.msra.mxu0 0.0
    %1734 = vmatprep.subr.mxu0 0.0
    %1735 = vmatpush1.msra.mxu0 0.0
    %1736 = vmatprep.subr.mxu0 0.0
    %1737 = vmatpush1.msra.mxu0 0.0
    %1738 = vmatprep.subr.mxu0 0.0
    %1739 = vmatpush1.msra.mxu0 0.0
    %1740 = vmatprep.subr.mxu0 0.0
    %1741 = vmatpush1.msra.mxu0 0.0
    %1742 = vmatprep.subr.mxu0 0.0
    %1743 = vmatpush1.msra.mxu0 0.0
    %1744 = vmatprep.subr.mxu0 0.0
    %1745 = vmatpush1.msra.mxu0 0.0
    %1746 = vmatprep.subr.mxu0 0.0
    %1747 = vmatpush1.msra.mxu0 0.0
    %1748 = vmatprep.subr.mxu0 0.0
    %1749 = vmatpush1.msra.mxu0 0.0
    %1750 = vmatprep.subr.mxu0 0.0
    %1751 = vmatpush1.msra.mxu0 0.0
    %1752 = vmatprep.subr.mxu0 0.0
    %1753 = vmatpush1.msra.mxu0 0.0
    %1754 = vmatprep.subr.mxu0 0.0
    %1755 = vmatpush1.msra.mxu0 0.0
    %1756 = vmatprep.subr.mxu0 0.0
    %1757 = vmatpush1.msra.mxu0 0.0
    %1758 = vmatprep.mubr.f32.mxu0 0.0
    %1759 = vmatmul.mubr.f32.gmra.mrb[0].mxu0 %v1670
    %v1760 = vpop.f32.mrb[0].mxu0
    %v1761 = vadd.f32 %v1692, %v1760
    %v1762 = vpop.f32.mrb[0].mxu0
    %1763 = vdwg.mxu0
    %v1764 = vmax.f32 %v1761, 0.0
    %v1765 = vadd.f32 %v1764, %v1576
    %v1768 = vrot.slane %v1511, 7
    %v1769 = vsel %vm1521, %v1768, %v1503
    %v1771 = vrot.slane %v1503, 1
    %v1772 = vsel %vm1521, %v1511, %v1771
    %1773 = vrot.lane.b32.xlu0 %v1772, 16
    %v1774 = vpop.permute.xlu0 %1773
    %v1776 = vrot.slane %v1503, 2
    %v1777 = vrot.slane %v1511, 1
    %v1778 = vsel %vm1521, %v1777, %v1776
    %1779 = vrot.lane.b32.xlu0 %v1778, 32
    %v1780 = vpop.permute.xlu0 %1779
    %v1782 = vrot.slane %v1503, 3
    %v1783 = vrot.slane %v1511, 2
    %v1784 = vsel %vm1521, %v1783, %v1782
    %1785 = vrot.lane.b32.xlu0 %v1784, 48
    %v1786 = vpop.permute.xlu0 %1785
    %v1788 = vrot.slane %v1503, 4
    %v1789 = vrot.slane %v1511, 3
    %v1790 = vsel %vm1521, %v1789, %v1788
    %1791 = vrot.lane.b32.xlu0 %v1790, 64
    %v1792 = vpop.permute.xlu0 %1791
    %v1794 = vrot.slane %v1503, 5
    %v1795 = vrot.slane %v1511, 4
    %v1796 = vsel %vm1521, %v1795, %v1794
    %1797 = vrot.lane.b32.xlu0 %v1796, 80
    %v1798 = vpop.permute.xlu0 %1797
    %v1800 = vrot.slane %v1503, 6
    %v1801 = vrot.slane %v1511, 5
    %v1802 = vsel %vm1521, %v1801, %v1800
    %1803 = vrot.lane.b32.xlu0 %v1802, 96
    %v1804 = vpop.permute.xlu0 %1803
    %v1806 = vrot.slane %v1503, 7
    %v1807 = vrot.slane %v1511, 6
    %v1808 = vsel %vm1521, %v1807, %v1806
    %1809 = vrot.lane.b32.xlu0 %v1808, 112
    %v1810 = vpop.permute.xlu0 %1809
    %v1812 = vsel %vm75, %v1769, %v1774
    %v1813 = vsel %vm1566, %v1812, %v1780
    %v1814 = vsel %vm1568, %v1813, %v1786
    %v1815 = vsel %vm885, %v1814, %v1792
    %v1816 = vsel %vm1571, %v1815, %v1798
    %v1817 = vsel %vm1573, %v1816, %v1804
    %v1818 = vsel %vm1575, %v1817, %v1810
    %s1819 = scalar_lea.vmem [#allocation2], 128
    %v1820 = vld [vmem:[%s1819] sm:$0xff]
    %v1821 = vld [vmem:[%s1819 + $0x8] sm:$0xff]
    %v1822 = vld [vmem:[%s1819 + $0x10] sm:$0xff]
    %v1823 = vld [vmem:[%s1819 + $0x18] sm:$0xff]
    %v1824 = vld [vmem:[%s1819 + $0x20] sm:$0xff]
    %v1825 = vld [vmem:[%s1819 + $0x28] sm:$0xff]
    %v1826 = vld [vmem:[%s1819 + $0x30] sm:$0xff]
    %v1827 = vld [vmem:[%s1819 + $0x38] sm:$0xff]
    %v1828 = vld [vmem:[%s1819 + $0x40] sm:$0xff]
    %v1829 = vld [vmem:[%s1819 + $0x48] sm:$0xff]
    %v1830 = vld [vmem:[%s1819 + $0x50] sm:$0xff]
    %v1831 = vld [vmem:[%s1819 + $0x58] sm:$0xff]
    %v1832 = vld [vmem:[%s1819 + $0x60] sm:$0xff]
    %v1833 = vld [vmem:[%s1819 + $0x68] sm:$0xff]
    %v1834 = vld [vmem:[%s1819 + $0x70] sm:$0xff]
    %v1835 = vld [vmem:[%s1819 + $0x78] sm:$0xff]
    %s1836 = scalar_lea.vmem %s5, 1
    %v1837 = vld [vmem:[%s1836] sm:$0x1]
    %v1839 = vlaneseq
    %v1840 = vshrl.u32 %v1839, 7
    %v1841 = vsub.s32 0, %v1840
    %v1842 = vrot.slane %v1837, %v1841
    %1844 = vmatprep.subr.mxu0 0.0
    %1845 = vmatpush1.msra.mxu0 %v1820
    %1846 = vmatprep.subr.mxu0 0.0
    %1847 = vmatpush1.msra.mxu0 %v1821
    %1848 = vmatprep.subr.mxu0 0.0
    %1849 = vmatpush1.msra.mxu0 %v1822
    %1850 = vmatprep.subr.mxu0 0.0
    %1851 = vmatpush1.msra.mxu0 %v1823
    %1852 = vmatprep.subr.mxu0 0.0
    %1853 = vmatpush1.msra.mxu0 %v1824
    %1854 = vmatprep.subr.mxu0 0.0
    %1855 = vmatpush1.msra.mxu0 %v1825
    %1856 = vmatprep.subr.mxu0 0.0
    %1857 = vmatpush1.msra.mxu0 %v1826
    %1858 = vmatprep.subr.mxu0 0.0
    %1859 = vmatpush1.msra.mxu0 %v1827
    %1860 = vmatprep.subr.mxu0 0.0
    %1861 = vmatpush1.msra.mxu0 %v1828
    %1862 = vmatprep.subr.mxu0 0.0
    %1863 = vmatpush1.msra.mxu0 %v1829
    %1864 = vmatprep.subr.mxu0 0.0
    %1865 = vmatpush1.msra.mxu0 %v1830
    %1866 = vmatprep.subr.mxu0 0.0
    %1867 = vmatpush1.msra.mxu0 %v1831
    %1868 = vmatprep.subr.mxu0 0.0
    %1869 = vmatpush1.msra.mxu0 %v1832
    %1870 = vmatprep.subr.mxu0 0.0
    %1871 = vmatpush1.msra.mxu0 %v1833
    %1872 = vmatprep.subr.mxu0 0.0
    %1873 = vmatpush1.msra.mxu0 %v1834
    %1874 = vmatprep.subr.mxu0 0.0
    %1875 = vmatpush1.msra.mxu0 %v1835
    %1876 = vmatprep.subr.mxu0 0.0
    %1877 = vmatpush1.msra.mxu0 0.0
    %1878 = vmatprep.subr.mxu0 0.0
    %1879 = vmatpush1.msra.mxu0 0.0
    %1880 = vmatprep.subr.mxu0 0.0
    %1881 = vmatpush1.msra.mxu0 0.0
    %1882 = vmatprep.subr.mxu0 0.0
    %1883 = vmatpush1.msra.mxu0 0.0
    %1884 = vmatprep.subr.mxu0 0.0
    %1885 = vmatpush1.msra.mxu0 0.0
    %1886 = vmatprep.subr.mxu0 0.0
    %1887 = vmatpush1.msra.mxu0 0.0
    %1888 = vmatprep.subr.mxu0 0.0
    %1889 = vmatpush1.msra.mxu0 0.0
    %1890 = vmatprep.subr.mxu0 0.0
    %1891 = vmatpush1.msra.mxu0 0.0
    %1892 = vmatprep.subr.mxu0 0.0
    %1893 = vmatpush1.msra.mxu0 0.0
    %1894 = vmatprep.subr.mxu0 0.0
    %1895 = vmatpush1.msra.mxu0 0.0
    %1896 = vmatprep.subr.mxu0 0.0
    %1897 = vmatpush1.msra.mxu0 0.0
    %1898 = vmatprep.subr.mxu0 0.0
    %1899 = vmatpush1.msra.mxu0 0.0
    %1900 = vmatprep.subr.mxu0 0.0
    %1901 = vmatpush1.msra.mxu0 0.0
    %1902 = vmatprep.subr.mxu0 0.0
    %1903 = vmatpush1.msra.mxu0 0.0
    %1904 = vmatprep.subr.mxu0 0.0
    %1905 = vmatpush1.msra.mxu0 0.0
    %1906 = vmatprep.subr.mxu0 0.0
    %1907 = vmatpush1.msra.mxu0 0.0
    %1908 = vmatprep.mubr.f32.mxu0 0.0
    %1909 = vmatmul.mubr.f32.gmra.mrb[0].mxu0 %v1818
    %v1910 = vpop.f32.mrb[0].mxu0
    %v1911 = vadd.f32 %v1842, %v1910
    %v1912 = vpop.f32.mrb[0].mxu0
    %1913 = vdwg.mxu0
    %v1914 = vmax.f32 %v1911, 0.0
    %s1915 = scalar_lea.vmem [#allocation4], 128
    %v1916 = vld [vmem:[%s1915] sm:$0xff]
    %v1917 = vld [vmem:[%s1915 + $0x8] sm:$0xff]
    %v1918 = vld [vmem:[%s1915 + $0x10] sm:$0xff]
    %v1919 = vld [vmem:[%s1915 + $0x18] sm:$0xff]
    %v1920 = vld [vmem:[%s1915 + $0x20] sm:$0xff]
    %v1921 = vld [vmem:[%s1915 + $0x28] sm:$0xff]
    %v1922 = vld [vmem:[%s1915 + $0x30] sm:$0xff]
    %v1923 = vld [vmem:[%s1915 + $0x38] sm:$0xff]
    %v1924 = vld [vmem:[%s1915 + $0x40] sm:$0xff]
    %v1925 = vld [vmem:[%s1915 + $0x48] sm:$0xff]
    %v1926 = vld [vmem:[%s1915 + $0x50] sm:$0xff]
    %v1927 = vld [vmem:[%s1915 + $0x58] sm:$0xff]
    %v1928 = vld [vmem:[%s1915 + $0x60] sm:$0xff]
    %v1929 = vld [vmem:[%s1915 + $0x68] sm:$0xff]
    %v1930 = vld [vmem:[%s1915 + $0x70] sm:$0xff]
    %v1931 = vld [vmem:[%s1915 + $0x78] sm:$0xff]
    %s1932 = scalar_lea.vmem %s7, 1
    %v1933 = vld [vmem:[%s1932] sm:$0x1]
    %v1935 = vlaneseq
    %v1936 = vshrl.u32 %v1935, 7
    %v1937 = vsub.s32 0, %v1936
    %v1938 = vrot.slane %v1933, %v1937
    %1940 = vmatprep.subr.mxu0 0.0
    %1941 = vmatpush1.msra.mxu0 %v1916
    %1942 = vmatprep.subr.mxu0 0.0
    %1943 = vmatpush1.msra.mxu0 %v1917
    %1944 = vmatprep.subr.mxu0 0.0
    %1945 = vmatpush1.msra.mxu0 %v1918
    %1946 = vmatprep.subr.mxu0 0.0
    %1947 = vmatpush1.msra.mxu0 %v1919
    %1948 = vmatprep.subr.mxu0 0.0
    %1949 = vmatpush1.msra.mxu0 %v1920
    %1950 = vmatprep.subr.mxu0 0.0
    %1951 = vmatpush1.msra.mxu0 %v1921
    %1952 = vmatprep.subr.mxu0 0.0
    %1953 = vmatpush1.msra.mxu0 %v1922
    %1954 = vmatprep.subr.mxu0 0.0
    %1955 = vmatpush1.msra.mxu0 %v1923
    %1956 = vmatprep.subr.mxu0 0.0
    %1957 = vmatpush1.msra.mxu0 %v1924
    %1958 = vmatprep.subr.mxu0 0.0
    %1959 = vmatpush1.msra.mxu0 %v1925
    %1960 = vmatprep.subr.mxu0 0.0
    %1961 = vmatpush1.msra.mxu0 %v1926
    %1962 = vmatprep.subr.mxu0 0.0
    %1963 = vmatpush1.msra.mxu0 %v1927
    %1964 = vmatprep.subr.mxu0 0.0
    %1965 = vmatpush1.msra.mxu0 %v1928
    %1966 = vmatprep.subr.mxu0 0.0
    %1967 = vmatpush1.msra.mxu0 %v1929
    %1968 = vmatprep.subr.mxu0 0.0
    %1969 = vmatpush1.msra.mxu0 %v1930
    %1970 = vmatprep.subr.mxu0 0.0
    %1971 = vmatpush1.msra.mxu0 %v1931
    %1972 = vmatprep.subr.mxu0 0.0
    %1973 = vmatpush1.msra.mxu0 0.0
    %1974 = vmatprep.subr.mxu0 0.0
    %1975 = vmatpush1.msra.mxu0 0.0
    %1976 = vmatprep.subr.mxu0 0.0
    %1977 = vmatpush1.msra.mxu0 0.0
    %1978 = vmatprep.subr.mxu0 0.0
    %1979 = vmatpush1.msra.mxu0 0.0
    %1980 = vmatprep.subr.mxu0 0.0
    %1981 = vmatpush1.msra.mxu0 0.0
    %1982 = vmatprep.subr.mxu0 0.0
    %1983 = vmatpush1.msra.mxu0 0.0
    %1984 = vmatprep.subr.mxu0 0.0
    %1985 = vmatpush1.msra.mxu0 0.0
    %1986 = vmatprep.subr.mxu0 0.0
    %1987 = vmatpush1.msra.mxu0 0.0
    %1988 = vmatprep.subr.mxu0 0.0
    %1989 = vmatpush1.msra.mxu0 0.0
    %1990 = vmatprep.subr.mxu0 0.0
    %1991 = vmatpush1.msra.mxu0 0.0
    %1992 = vmatprep.subr.mxu0 0.0
    %1993 = vmatpush1.msra.mxu0 0.0
    %1994 = vmatprep.subr.mxu0 0.0
    %1995 = vmatpush1.msra.mxu0 0.0
    %1996 = vmatprep.subr.mxu0 0.0
    %1997 = vmatpush1.msra.mxu0 0.0
    %1998 = vmatprep.subr.mxu0 0.0
    %1999 = vmatpush1.msra.mxu0 0.0
    %2000 = vmatprep.subr.mxu0 0.0
    %2001 = vmatpush1.msra.mxu0 0.0
    %2002 = vmatprep.subr.mxu0 0.0
    %2003 = vmatpush1.msra.mxu0 0.0
    %2004 = vmatprep.mubr.f32.mxu0 0.0
    %2005 = vmatmul.mubr.f32.gmra.mrb[0].mxu0 %v1914
    %v2006 = vpop.f32.mrb[0].mxu0
    %v2007 = vadd.f32 %v1938, %v2006
    %v2008 = vpop.f32.mrb[0].mxu0
    %2009 = vdwg.mxu0
    %v2010 = vmax.f32 %v2007, 0.0
    %v2011 = vadd.f32 %v2010, %v1818
    %v2014 = vrot.slane %v1512, 7
    %v2015 = vsel %vm1521, %v2014, %v1504
    %v2017 = vrot.slane %v1504, 1
    %v2018 = vsel %vm1521, %v1512, %v2017
    %2019 = vrot.lane.b32.xlu0 %v2018, 16
    %v2020 = vpop.permute.xlu0 %2019
    %v2022 = vrot.slane %v1504, 2
    %v2023 = vrot.slane %v1512, 1
    %v2024 = vsel %vm1521, %v2023, %v2022
    %2025 = vrot.lane.b32.xlu0 %v2024, 32
    %v2026 = vpop.permute.xlu0 %2025
    %v2028 = vrot.slane %v1504, 3
    %v2029 = vrot.slane %v1512, 2
    %v2030 = vsel %vm1521, %v2029, %v2028
    %2031 = vrot.lane.b32.xlu0 %v2030, 48
    %v2032 = vpop.permute.xlu0 %2031
    %v2034 = vrot.slane %v1504, 4
    %v2035 = vrot.slane %v1512, 3
    %v2036 = vsel %vm1521, %v2035, %v2034
    %2037 = vrot.lane.b32.xlu0 %v2036, 64
    %v2038 = vpop.permute.xlu0 %2037
    %v2040 = vrot.slane %v1504, 5
    %v2041 = vrot.slane %v1512, 4
    %v2042 = vsel %vm1521, %v2041, %v2040
    %2043 = vrot.lane.b32.xlu0 %v2042, 80
    %v2044 = vpop.permute.xlu0 %2043
    %v2046 = vrot.slane %v1504, 6
    %v2047 = vrot.slane %v1512, 5
    %v2048 = vsel %vm1521, %v2047, %v2046
    %2049 = vrot.lane.b32.xlu0 %v2048, 96
    %v2050 = vpop.permute.xlu0 %2049
    %v2052 = vrot.slane %v1504, 7
    %v2053 = vrot.slane %v1512, 6
    %v2054 = vsel %vm1521, %v2053, %v2052
    %2055 = vrot.lane.b32.xlu0 %v2054, 112
    %v2056 = vpop.permute.xlu0 %2055
    %v2058 = vsel %vm75, %v2015, %v2020
    %v2059 = vsel %vm1566, %v2058, %v2026
    %v2060 = vsel %vm1568, %v2059, %v2032
    %v2061 = vsel %vm885, %v2060, %v2038
    %v2062 = vsel %vm1571, %v2061, %v2044
    %v2063 = vsel %vm1573, %v2062, %v2050
    %v2064 = vsel %vm1575, %v2063, %v2056
    %s2065 = scalar_lea.vmem [#allocation2], 256
    %v2066 = vld [vmem:[%s2065] sm:$0xff]
    %v2067 = vld [vmem:[%s2065 + $0x8] sm:$0xff]
    %v2068 = vld [vmem:[%s2065 + $0x10] sm:$0xff]
    %v2069 = vld [vmem:[%s2065 + $0x18] sm:$0xff]
    %v2070 = vld [vmem:[%s2065 + $0x20] sm:$0xff]
    %v2071 = vld [vmem:[%s2065 + $0x28] sm:$0xff]
    %v2072 = vld [vmem:[%s2065 + $0x30] sm:$0xff]
    %v2073 = vld [vmem:[%s2065 + $0x38] sm:$0xff]
    %v2074 = vld [vmem:[%s2065 + $0x40] sm:$0xff]
    %v2075 = vld [vmem:[%s2065 + $0x48] sm:$0xff]
    %v2076 = vld [vmem:[%s2065 + $0x50] sm:$0xff]
    %v2077 = vld [vmem:[%s2065 + $0x58] sm:$0xff]
    %v2078 = vld [vmem:[%s2065 + $0x60] sm:$0xff]
    %v2079 = vld [vmem:[%s2065 + $0x68] sm:$0xff]
    %v2080 = vld [vmem:[%s2065 + $0x70] sm:$0xff]
    %v2081 = vld [vmem:[%s2065 + $0x78] sm:$0xff]
    %s2082 = scalar_lea.vmem %s5, 2
    %v2083 = vld [vmem:[%s2082] sm:$0x1]
    %v2085 = vlaneseq
    %v2086 = vshrl.u32 %v2085, 7
    %v2087 = vsub.s32 0, %v2086
    %v2088 = vrot.slane %v2083, %v2087
    %2090 = vmatprep.subr.mxu0 0.0
    %2091 = vmatpush1.msra.mxu0 %v2066
    %2092 = vmatprep.subr.mxu0 0.0
    %2093 = vmatpush1.msra.mxu0 %v2067
    %2094 = vmatprep.subr.mxu0 0.0
    %2095 = vmatpush1.msra.mxu0 %v2068
    %2096 = vmatprep.subr.mxu0 0.0
    %2097 = vmatpush1.msra.mxu0 %v2069
    %2098 = vmatprep.subr.mxu0 0.0
    %2099 = vmatpush1.msra.mxu0 %v2070
    %2100 = vmatprep.subr.mxu0 0.0
    %2101 = vmatpush1.msra.mxu0 %v2071
    %2102 = vmatprep.subr.mxu0 0.0
    %2103 = vmatpush1.msra.mxu0 %v2072
    %2104 = vmatprep.subr.mxu0 0.0
    %2105 = vmatpush1.msra.mxu0 %v2073
    %2106 = vmatprep.subr.mxu0 0.0
    %2107 = vmatpush1.msra.mxu0 %v2074
    %2108 = vmatprep.subr.mxu0 0.0
    %2109 = vmatpush1.msra.mxu0 %v2075
    %2110 = vmatprep.subr.mxu0 0.0
    %2111 = vmatpush1.msra.mxu0 %v2076
    %2112 = vmatprep.subr.mxu0 0.0
    %2113 = vmatpush1.msra.mxu0 %v2077
    %2114 = vmatprep.subr.mxu0 0.0
    %2115 = vmatpush1.msra.mxu0 %v2078
    %2116 = vmatprep.subr.mxu0 0.0
    %2117 = vmatpush1.msra.mxu0 %v2079
    %2118 = vmatprep.subr.mxu0 0.0
    %2119 = vmatpush1.msra.mxu0 %v2080
    %2120 = vmatprep.subr.mxu0 0.0
    %2121 = vmatpush1.msra.mxu0 %v2081
    %2122 = vmatprep.subr.mxu0 0.0
    %2123 = vmatpush1.msra.mxu0 0.0
    %2124 = vmatprep.subr.mxu0 0.0
    %2125 = vmatpush1.msra.mxu0 0.0
    %2126 = vmatprep.subr.mxu0 0.0
    %2127 = vmatpush1.msra.mxu0 0.0
    %2128 = vmatprep.subr.mxu0 0.0
    %2129 = vmatpush1.msra.mxu0 0.0
    %2130 = vmatprep.subr.mxu0 0.0
    %2131 = vmatpush1.msra.mxu0 0.0
    %2132 = vmatprep.subr.mxu0 0.0
    %2133 = vmatpush1.msra.mxu0 0.0
    %2134 = vmatprep.subr.mxu0 0.0
    %2135 = vmatpush1.msra.mxu0 0.0
    %2136 = vmatprep.subr.mxu0 0.0
    %2137 = vmatpush1.msra.mxu0 0.0
    %2138 = vmatprep.subr.mxu0 0.0
    %2139 = vmatpush1.msra.mxu0 0.0
    %2140 = vmatprep.subr.mxu0 0.0
    %2141 = vmatpush1.msra.mxu0 0.0
    %2142 = vmatprep.subr.mxu0 0.0
    %2143 = vmatpush1.msra.mxu0 0.0
    %2144 = vmatprep.subr.mxu0 0.0
    %2145 = vmatpush1.msra.mxu0 0.0
    %2146 = vmatprep.subr.mxu0 0.0
    %2147 = vmatpush1.msra.mxu0 0.0
    %2148 = vmatprep.subr.mxu0 0.0
    %2149 = vmatpush1.msra.mxu0 0.0
    %2150 = vmatprep.subr.mxu0 0.0
    %2151 = vmatpush1.msra.mxu0 0.0
    %2152 = vmatprep.subr.mxu0 0.0
    %2153 = vmatpush1.msra.mxu0 0.0
    %2154 = vmatprep.mubr.f32.mxu0 0.0
    %2155 = vmatmul.mubr.f32.gmra.mrb[0].mxu0 %v2064
    %v2156 = vpop.f32.mrb[0].mxu0
    %v2157 = vadd.f32 %v2088, %v2156
    %v2158 = vpop.f32.mrb[0].mxu0
    %2159 = vdwg.mxu0
    %v2160 = vmax.f32 %v2157, 0.0
    %s2161 = scalar_lea.vmem [#allocation4], 256
    %v2162 = vld [vmem:[%s2161] sm:$0xff]
    %v2163 = vld [vmem:[%s2161 + $0x8] sm:$0xff]
    %v2164 = vld [vmem:[%s2161 + $0x10] sm:$0xff]
    %v2165 = vld [vmem:[%s2161 + $0x18] sm:$0xff]
    %v2166 = vld [vmem:[%s2161 + $0x20] sm:$0xff]
    %v2167 = vld [vmem:[%s2161 + $0x28] sm:$0xff]
    %v2168 = vld [vmem:[%s2161 + $0x30] sm:$0xff]
    %v2169 = vld [vmem:[%s2161 + $0x38] sm:$0xff]
    %v2170 = vld [vmem:[%s2161 + $0x40] sm:$0xff]
    %v2171 = vld [vmem:[%s2161 + $0x48] sm:$0xff]
    %v2172 = vld [vmem:[%s2161 + $0x50] sm:$0xff]
    %v2173 = vld [vmem:[%s2161 + $0x58] sm:$0xff]
    %v2174 = vld [vmem:[%s2161 + $0x60] sm:$0xff]
    %v2175 = vld [vmem:[%s2161 + $0x68] sm:$0xff]
    %v2176 = vld [vmem:[%s2161 + $0x70] sm:$0xff]
    %v2177 = vld [vmem:[%s2161 + $0x78] sm:$0xff]
    %s2178 = scalar_lea.vmem %s7, 2
    %v2179 = vld [vmem:[%s2178] sm:$0x1]
    %v2181 = vlaneseq
    %v2182 = vshrl.u32 %v2181, 7
    %v2183 = vsub.s32 0, %v2182
    %v2184 = vrot.slane %v2179, %v2183
    %2186 = vmatprep.subr.mxu0 0.0
    %2187 = vmatpush1.msra.mxu0 %v2162
    %2188 = vmatprep.subr.mxu0 0.0
    %2189 = vmatpush1.msra.mxu0 %v2163
    %2190 = vmatprep.subr.mxu0 0.0
    %2191 = vmatpush1.msra.mxu0 %v2164
    %2192 = vmatprep.subr.mxu0 0.0
    %2193 = vmatpush1.msra.mxu0 %v2165
    %2194 = vmatprep.subr.mxu0 0.0
    %2195 = vmatpush1.msra.mxu0 %v2166
    %2196 = vmatprep.subr.mxu0 0.0
    %2197 = vmatpush1.msra.mxu0 %v2167
    %2198 = vmatprep.subr.mxu0 0.0
    %2199 = vmatpush1.msra.mxu0 %v2168
    %2200 = vmatprep.subr.mxu0 0.0
    %2201 = vmatpush1.msra.mxu0 %v2169
    %2202 = vmatprep.subr.mxu0 0.0
    %2203 = vmatpush1.msra.mxu0 %v2170
    %2204 = vmatprep.subr.mxu0 0.0
    %2205 = vmatpush1.msra.mxu0 %v2171
    %2206 = vmatprep.subr.mxu0 0.0
    %2207 = vmatpush1.msra.mxu0 %v2172
    %2208 = vmatprep.subr.mxu0 0.0
    %2209 = vmatpush1.msra.mxu0 %v2173
    %2210 = vmatprep.subr.mxu0 0.0
    %2211 = vmatpush1.msra.mxu0 %v2174
    %2212 = vmatprep.subr.mxu0 0.0
    %2213 = vmatpush1.msra.mxu0 %v2175
    %2214 = vmatprep.subr.mxu0 0.0
    %2215 = vmatpush1.msra.mxu0 %v2176
    %2216 = vmatprep.subr.mxu0 0.0
    %2217 = vmatpush1.msra.mxu0 %v2177
    %2218 = vmatprep.subr.mxu0 0.0
    %2219 = vmatpush1.msra.mxu0 0.0
    %2220 = vmatprep.subr.mxu0 0.0
    %2221 = vmatpush1.msra.mxu0 0.0
    %2222 = vmatprep.subr.mxu0 0.0
    %2223 = vmatpush1.msra.mxu0 0.0
    %2224 = vmatprep.subr.mxu0 0.0
    %2225 = vmatpush1.msra.mxu0 0.0
    %2226 = vmatprep.subr.mxu0 0.0
    %2227 = vmatpush1.msra.mxu0 0.0
    %2228 = vmatprep.subr.mxu0 0.0
    %2229 = vmatpush1.msra.mxu0 0.0
    %2230 = vmatprep.subr.mxu0 0.0
    %2231 = vmatpush1.msra.mxu0 0.0
    %2232 = vmatprep.subr.mxu0 0.0
    %2233 = vmatpush1.msra.mxu0 0.0
    %2234 = vmatprep.subr.mxu0 0.0
    %2235 = vmatpush1.msra.mxu0 0.0
    %2236 = vmatprep.subr.mxu0 0.0
    %2237 = vmatpush1.msra.mxu0 0.0
    %2238 = vmatprep.subr.mxu0 0.0
    %2239 = vmatpush1.msra.mxu0 0.0
    %2240 = vmatprep.subr.mxu0 0.0
    %2241 = vmatpush1.msra.mxu0 0.0
    %2242 = vmatprep.subr.mxu0 0.0
    %2243 = vmatpush1.msra.mxu0 0.0
    %2244 = vmatprep.subr.mxu0 0.0
    %2245 = vmatpush1.msra.mxu0 0.0
    %2246 = vmatprep.subr.mxu0 0.0
    %2247 = vmatpush1.msra.mxu0 0.0
    %2248 = vmatprep.subr.mxu0 0.0
    %2249 = vmatpush1.msra.mxu0 0.0
    %2250 = vmatprep.mubr.f32.mxu0 0.0
    %2251 = vmatmul.mubr.f32.gmra.mrb[0].mxu0 %v2160
    %v2252 = vpop.f32.mrb[0].mxu0
    %v2253 = vadd.f32 %v2184, %v2252
    %v2254 = vpop.f32.mrb[0].mxu0
    %2255 = vdwg.mxu0
    %v2256 = vmax.f32 %v2253, 0.0
    %v2257 = vadd.f32 %v2256, %v2064
    %v2260 = vrot.slane %v1513, 7
    %v2261 = vsel %vm1521, %v2260, %v1505
    %v2263 = vrot.slane %v1505, 1
    %v2264 = vsel %vm1521, %v1513, %v2263
    %2265 = vrot.lane.b32.xlu0 %v2264, 16
    %v2266 = vpop.permute.xlu0 %2265
    %v2268 = vrot.slane %v1505, 2
    %v2269 = vrot.slane %v1513, 1
    %v2270 = vsel %vm1521, %v2269, %v2268
    %2271 = vrot.lane.b32.xlu0 %v2270, 32
    %v2272 = vpop.permute.xlu0 %2271
    %v2274 = vrot.slane %v1505, 3
    %v2275 = vrot.slane %v1513, 2
    %v2276 = vsel %vm1521, %v2275, %v2274
    %2277 = vrot.lane.b32.xlu0 %v2276, 48
    %v2278 = vpop.permute.xlu0 %2277
    %v2280 = vrot.slane %v1505, 4
    %v2281 = vrot.slane %v1513, 3
    %v2282 = vsel %vm1521, %v2281, %v2280
    %2283 = vrot.lane.b32.xlu0 %v2282, 64
    %v2284 = vpop.permute.xlu0 %2283
    %v2286 = vrot.slane %v1505, 5
    %v2287 = vrot.slane %v1513, 4
    %v2288 = vsel %vm1521, %v2287, %v2286
    %2289 = vrot.lane.b32.xlu0 %v2288, 80
    %v2290 = vpop.permute.xlu0 %2289
    %v2292 = vrot.slane %v1505, 6
    %v2293 = vrot.slane %v1513, 5
    %v2294 = vsel %vm1521, %v2293, %v2292
    %2295 = vrot.lane.b32.xlu0 %v2294, 96
    %v2296 = vpop.permute.xlu0 %2295
    %v2298 = vrot.slane %v1505, 7
    %v2299 = vrot.slane %v1513, 6
    %v2300 = vsel %vm1521, %v2299, %v2298
    %2301 = vrot.lane.b32.xlu0 %v2300, 112
    %v2302 = vpop.permute.xlu0 %2301
    %v2304 = vsel %vm75, %v2261, %v2266
    %v2305 = vsel %vm1566, %v2304, %v2272
    %v2306 = vsel %vm1568, %v2305, %v2278
    %v2307 = vsel %vm885, %v2306, %v2284
    %v2308 = vsel %vm1571, %v2307, %v2290
    %v2309 = vsel %vm1573, %v2308, %v2296
    %v2310 = vsel %vm1575, %v2309, %v2302
    %s2311 = scalar_lea.vmem [#allocation2], 384
    %v2312 = vld [vmem:[%s2311] sm:$0xff]
    %v2313 = vld [vmem:[%s2311 + $0x8] sm:$0xff]
    %v2314 = vld [vmem:[%s2311 + $0x10] sm:$0xff]
    %v2315 = vld [vmem:[%s2311 + $0x18] sm:$0xff]
    %v2316 = vld [vmem:[%s2311 + $0x20] sm:$0xff]
    %v2317 = vld [vmem:[%s2311 + $0x28] sm:$0xff]
    %v2318 = vld [vmem:[%s2311 + $0x30] sm:$0xff]
    %v2319 = vld [vmem:[%s2311 + $0x38] sm:$0xff]
    %v2320 = vld [vmem:[%s2311 + $0x40] sm:$0xff]
    %v2321 = vld [vmem:[%s2311 + $0x48] sm:$0xff]
    %v2322 = vld [vmem:[%s2311 + $0x50] sm:$0xff]
    %v2323 = vld [vmem:[%s2311 + $0x58] sm:$0xff]
    %v2324 = vld [vmem:[%s2311 + $0x60] sm:$0xff]
    %v2325 = vld [vmem:[%s2311 + $0x68] sm:$0xff]
    %v2326 = vld [vmem:[%s2311 + $0x70] sm:$0xff]
    %v2327 = vld [vmem:[%s2311 + $0x78] sm:$0xff]
    %s2328 = scalar_lea.vmem %s5, 3
    %v2329 = vld [vmem:[%s2328] sm:$0x1]
    %v2331 = vlaneseq
    %v2332 = vshrl.u32 %v2331, 7
    %v2333 = vsub.s32 0, %v2332
    %v2334 = vrot.slane %v2329, %v2333
    %2336 = vmatprep.subr.mxu0 0.0
    %2337 = vmatpush1.msra.mxu0 %v2312
    %2338 = vmatprep.subr.mxu0 0.0
    %2339 = vmatpush1.msra.mxu0 %v2313
    %2340 = vmatprep.subr.mxu0 0.0
    %2341 = vmatpush1.msra.mxu0 %v2314
    %2342 = vmatprep.subr.mxu0 0.0
    %2343 = vmatpush1.msra.mxu0 %v2315
    %2344 = vmatprep.subr.mxu0 0.0
    %2345 = vmatpush1.msra.mxu0 %v2316
    %2346 = vmatprep.subr.mxu0 0.0
    %2347 = vmatpush1.msra.mxu0 %v2317
    %2348 = vmatprep.subr.mxu0 0.0
    %2349 = vmatpush1.msra.mxu0 %v2318
    %2350 = vmatprep.subr.mxu0 0.0
    %2351 = vmatpush1.msra.mxu0 %v2319
    %2352 = vmatprep.subr.mxu0 0.0
    %2353 = vmatpush1.msra.mxu0 %v2320
    %2354 = vmatprep.subr.mxu0 0.0
    %2355 = vmatpush1.msra.mxu0 %v2321
    %2356 = vmatprep.subr.mxu0 0.0
    %2357 = vmatpush1.msra.mxu0 %v2322
    %2358 = vmatprep.subr.mxu0 0.0
    %2359 = vmatpush1.msra.mxu0 %v2323
    %2360 = vmatprep.subr.mxu0 0.0
    %2361 = vmatpush1.msra.mxu0 %v2324
    %2362 = vmatprep.subr.mxu0 0.0
    %2363 = vmatpush1.msra.mxu0 %v2325
    %2364 = vmatprep.subr.mxu0 0.0
    %2365 = vmatpush1.msra.mxu0 %v2326
    %2366 = vmatprep.subr.mxu0 0.0
    %2367 = vmatpush1.msra.mxu0 %v2327
    %2368 = vmatprep.subr.mxu0 0.0
    %2369 = vmatpush1.msra.mxu0 0.0
    %2370 = vmatprep.subr.mxu0 0.0
    %2371 = vmatpush1.msra.mxu0 0.0
    %2372 = vmatprep.subr.mxu0 0.0
    %2373 = vmatpush1.msra.mxu0 0.0
    %2374 = vmatprep.subr.mxu0 0.0
    %2375 = vmatpush1.msra.mxu0 0.0
    %2376 = vmatprep.subr.mxu0 0.0
    %2377 = vmatpush1.msra.mxu0 0.0
    %2378 = vmatprep.subr.mxu0 0.0
    %2379 = vmatpush1.msra.mxu0 0.0
    %2380 = vmatprep.subr.mxu0 0.0
    %2381 = vmatpush1.msra.mxu0 0.0
    %2382 = vmatprep.subr.mxu0 0.0
    %2383 = vmatpush1.msra.mxu0 0.0
    %2384 = vmatprep.subr.mxu0 0.0
    %2385 = vmatpush1.msra.mxu0 0.0
    %2386 = vmatprep.subr.mxu0 0.0
    %2387 = vmatpush1.msra.mxu0 0.0
    %2388 = vmatprep.subr.mxu0 0.0
    %2389 = vmatpush1.msra.mxu0 0.0
    %2390 = vmatprep.subr.mxu0 0.0
    %2391 = vmatpush1.msra.mxu0 0.0
    %2392 = vmatprep.subr.mxu0 0.0
    %2393 = vmatpush1.msra.mxu0 0.0
    %2394 = vmatprep.subr.mxu0 0.0
    %2395 = vmatpush1.msra.mxu0 0.0
    %2396 = vmatprep.subr.mxu0 0.0
    %2397 = vmatpush1.msra.mxu0 0.0
    %2398 = vmatprep.subr.mxu0 0.0
    %2399 = vmatpush1.msra.mxu0 0.0
    %2400 = vmatprep.mubr.f32.mxu0 0.0
    %2401 = vmatmul.mubr.f32.gmra.mrb[0].mxu0 %v2310
    %v2402 = vpop.f32.mrb[0].mxu0
    %v2403 = vadd.f32 %v2334, %v2402
    %v2404 = vpop.f32.mrb[0].mxu0
    %2405 = vdwg.mxu0
    %v2406 = vmax.f32 %v2403, 0.0
    %s2407 = scalar_lea.vmem [#allocation4], 384
    %v2408 = vld [vmem:[%s2407] sm:$0xff]
    %v2409 = vld [vmem:[%s2407 + $0x8] sm:$0xff]
    %v2410 = vld [vmem:[%s2407 + $0x10] sm:$0xff]
    %v2411 = vld [vmem:[%s2407 + $0x18] sm:$0xff]
    %v2412 = vld [vmem:[%s2407 + $0x20] sm:$0xff]
    %v2413 = vld [vmem:[%s2407 + $0x28] sm:$0xff]
    %v2414 = vld [vmem:[%s2407 + $0x30] sm:$0xff]
    %v2415 = vld [vmem:[%s2407 + $0x38] sm:$0xff]
    %v2416 = vld [vmem:[%s2407 + $0x40] sm:$0xff]
    %v2417 = vld [vmem:[%s2407 + $0x48] sm:$0xff]
    %v2418 = vld [vmem:[%s2407 + $0x50] sm:$0xff]
    %v2419 = vld [vmem:[%s2407 + $0x58] sm:$0xff]
    %v2420 = vld [vmem:[%s2407 + $0x60] sm:$0xff]
    %v2421 = vld [vmem:[%s2407 + $0x68] sm:$0xff]
    %v2422 = vld [vmem:[%s2407 + $0x70] sm:$0xff]
    %v2423 = vld [vmem:[%s2407 + $0x78] sm:$0xff]
    %s2424 = scalar_lea.vmem %s7, 3
    %v2425 = vld [vmem:[%s2424] sm:$0x1]
    %v2427 = vlaneseq
    %v2428 = vshrl.u32 %v2427, 7
    %v2429 = vsub.s32 0, %v2428
    %v2430 = vrot.slane %v2425, %v2429
    %2432 = vmatprep.subr.mxu0 0.0
    %2433 = vmatpush1.msra.mxu0 %v2408
    %2434 = vmatprep.subr.mxu0 0.0
    %2435 = vmatpush1.msra.mxu0 %v2409
    %2436 = vmatprep.subr.mxu0 0.0
    %2437 = vmatpush1.msra.mxu0 %v2410
    %2438 = vmatprep.subr.mxu0 0.0
    %2439 = vmatpush1.msra.mxu0 %v2411
    %2440 = vmatprep.subr.mxu0 0.0
    %2441 = vmatpush1.msra.mxu0 %v2412
    %2442 = vmatprep.subr.mxu0 0.0
    %2443 = vmatpush1.msra.mxu0 %v2413
    %2444 = vmatprep.subr.mxu0 0.0
    %2445 = vmatpush1.msra.mxu0 %v2414
    %2446 = vmatprep.subr.mxu0 0.0
    %2447 = vmatpush1.msra.mxu0 %v2415
    %2448 = vmatprep.subr.mxu0 0.0
    %2449 = vmatpush1.msra.mxu0 %v2416
    %2450 = vmatprep.subr.mxu0 0.0
    %2451 = vmatpush1.msra.mxu0 %v2417
    %2452 = vmatprep.subr.mxu0 0.0
    %2453 = vmatpush1.msra.mxu0 %v2418
    %2454 = vmatprep.subr.mxu0 0.0
    %2455 = vmatpush1.msra.mxu0 %v2419
    %2456 = vmatprep.subr.mxu0 0.0
    %2457 = vmatpush1.msra.mxu0 %v2420
    %2458 = vmatprep.subr.mxu0 0.0
    %2459 = vmatpush1.msra.mxu0 %v2421
    %2460 = vmatprep.subr.mxu0 0.0
    %2461 = vmatpush1.msra.mxu0 %v2422
    %2462 = vmatprep.subr.mxu0 0.0
    %2463 = vmatpush1.msra.mxu0 %v2423
    %2464 = vmatprep.subr.mxu0 0.0
    %2465 = vmatpush1.msra.mxu0 0.0
    %2466 = vmatprep.subr.mxu0 0.0
    %2467 = vmatpush1.msra.mxu0 0.0
    %2468 = vmatprep.subr.mxu0 0.0
    %2469 = vmatpush1.msra.mxu0 0.0
    %2470 = vmatprep.subr.mxu0 0.0
    %2471 = vmatpush1.msra.mxu0 0.0
    %2472 = vmatprep.subr.mxu0 0.0
    %2473 = vmatpush1.msra.mxu0 0.0
    %2474 = vmatprep.subr.mxu0 0.0
    %2475 = vmatpush1.msra.mxu0 0.0
    %2476 = vmatprep.subr.mxu0 0.0
    %2477 = vmatpush1.msra.mxu0 0.0
    %2478 = vmatprep.subr.mxu0 0.0
    %2479 = vmatpush1.msra.mxu0 0.0
    %2480 = vmatprep.subr.mxu0 0.0
    %2481 = vmatpush1.msra.mxu0 0.0
    %2482 = vmatprep.subr.mxu0 0.0
    %2483 = vmatpush1.msra.mxu0 0.0
    %2484 = vmatprep.subr.mxu0 0.0
    %2485 = vmatpush1.msra.mxu0 0.0
    %2486 = vmatprep.subr.mxu0 0.0
    %2487 = vmatpush1.msra.mxu0 0.0
    %2488 = vmatprep.subr.mxu0 0.0
    %2489 = vmatpush1.msra.mxu0 0.0
    %2490 = vmatprep.subr.mxu0 0.0
    %2491 = vmatpush1.msra.mxu0 0.0
    %2492 = vmatprep.subr.mxu0 0.0
    %2493 = vmatpush1.msra.mxu0 0.0
    %2494 = vmatprep.subr.mxu0 0.0
    %2495 = vmatpush1.msra.mxu0 0.0
    %2496 = vmatprep.mubr.f32.mxu0 0.0
    %2497 = vmatmul.mubr.f32.gmra.mrb[0].mxu0 %v2406
    %v2498 = vpop.f32.mrb[0].mxu0
    %v2499 = vadd.f32 %v2430, %v2498
    %v2500 = vpop.f32.mrb[0].mxu0
    %2501 = vdwg.mxu0
    %v2502 = vmax.f32 %v2499, 0.0
    %v2503 = vadd.f32 %v2502, %v2310
    %v2506 = vrot.slane %v1514, 7
    %v2507 = vsel %vm1521, %v2506, %v1506
    %v2509 = vrot.slane %v1506, 1
    %v2510 = vsel %vm1521, %v1514, %v2509
    %2511 = vrot.lane.b32.xlu0 %v2510, 16
    %v2512 = vpop.permute.xlu0 %2511
    %v2514 = vrot.slane %v1506, 2
    %v2515 = vrot.slane %v1514, 1
    %v2516 = vsel %vm1521, %v2515, %v2514
    %2517 = vrot.lane.b32.xlu0 %v2516, 32
    %v2518 = vpop.permute.xlu0 %2517
    %v2520 = vrot.slane %v1506, 3
    %v2521 = vrot.slane %v1514, 2
    %v2522 = vsel %vm1521, %v2521, %v2520
    %2523 = vrot.lane.b32.xlu0 %v2522, 48
    %v2524 = vpop.permute.xlu0 %2523
    %v2526 = vrot.slane %v1506, 4
    %v2527 = vrot.slane %v1514, 3
    %v2528 = vsel %vm1521, %v2527, %v2526
    %2529 = vrot.lane.b32.xlu0 %v2528, 64
    %v2530 = vpop.permute.xlu0 %2529
    %v2532 = vrot.slane %v1506, 5
    %v2533 = vrot.slane %v1514, 4
    %v2534 = vsel %vm1521, %v2533, %v2532
    %2535 = vrot.lane.b32.xlu0 %v2534, 80
    %v2536 = vpop.permute.xlu0 %2535
    %v2538 = vrot.slane %v1506, 6
    %v2539 = vrot.slane %v1514, 5
    %v2540 = vsel %vm1521, %v2539, %v2538
    %2541 = vrot.lane.b32.xlu0 %v2540, 96
    %v2542 = vpop.permute.xlu0 %2541
    %v2544 = vrot.slane %v1506, 7
    %v2545 = vrot.slane %v1514, 6
    %v2546 = vsel %vm1521, %v2545, %v2544
    %2547 = vrot.lane.b32.xlu0 %v2546, 112
    %v2548 = vpop.permute.xlu0 %2547
    %v2550 = vsel %vm75, %v2507, %v2512
    %v2551 = vsel %vm1566, %v2550, %v2518
    %v2552 = vsel %vm1568, %v2551, %v2524
    %v2553 = vsel %vm885, %v2552, %v2530
    %v2554 = vsel %vm1571, %v2553, %v2536
    %v2555 = vsel %vm1573, %v2554, %v2542
    %v2556 = vsel %vm1575, %v2555, %v2548
    %s2557 = scalar_lea.vmem [#allocation2], 512
    %v2558 = vld [vmem:[%s2557] sm:$0xff]
    %v2559 = vld [vmem:[%s2557 + $0x8] sm:$0xff]
    %v2560 = vld [vmem:[%s2557 + $0x10] sm:$0xff]
    %v2561 = vld [vmem:[%s2557 + $0x18] sm:$0xff]
    %v2562 = vld [vmem:[%s2557 + $0x20] sm:$0xff]
    %v2563 = vld [vmem:[%s2557 + $0x28] sm:$0xff]
    %v2564 = vld [vmem:[%s2557 + $0x30] sm:$0xff]
    %v2565 = vld [vmem:[%s2557 + $0x38] sm:$0xff]
    %v2566 = vld [vmem:[%s2557 + $0x40] sm:$0xff]
    %v2567 = vld [vmem:[%s2557 + $0x48] sm:$0xff]
    %v2568 = vld [vmem:[%s2557 + $0x50] sm:$0xff]
    %v2569 = vld [vmem:[%s2557 + $0x58] sm:$0xff]
    %v2570 = vld [vmem:[%s2557 + $0x60] sm:$0xff]
    %v2571 = vld [vmem:[%s2557 + $0x68] sm:$0xff]
    %v2572 = vld [vmem:[%s2557 + $0x70] sm:$0xff]
    %v2573 = vld [vmem:[%s2557 + $0x78] sm:$0xff]
    %s2574 = scalar_lea.vmem %s5, 4
    %v2575 = vld [vmem:[%s2574] sm:$0x1]
    %v2577 = vlaneseq
    %v2578 = vshrl.u32 %v2577, 7
    %v2579 = vsub.s32 0, %v2578
    %v2580 = vrot.slane %v2575, %v2579
    %2582 = vmatprep.subr.mxu0 0.0
    %2583 = vmatpush1.msra.mxu0 %v2558
    %2584 = vmatprep.subr.mxu0 0.0
    %2585 = vmatpush1.msra.mxu0 %v2559
    %2586 = vmatprep.subr.mxu0 0.0
    %2587 = vmatpush1.msra.mxu0 %v2560
    %2588 = vmatprep.subr.mxu0 0.0
    %2589 = vmatpush1.msra.mxu0 %v2561
    %2590 = vmatprep.subr.mxu0 0.0
    %2591 = vmatpush1.msra.mxu0 %v2562
    %2592 = vmatprep.subr.mxu0 0.0
    %2593 = vmatpush1.msra.mxu0 %v2563
    %2594 = vmatprep.subr.mxu0 0.0
    %2595 = vmatpush1.msra.mxu0 %v2564
    %2596 = vmatprep.subr.mxu0 0.0
    %2597 = vmatpush1.msra.mxu0 %v2565
    %2598 = vmatprep.subr.mxu0 0.0
    %2599 = vmatpush1.msra.mxu0 %v2566
    %2600 = vmatprep.subr.mxu0 0.0
    %2601 = vmatpush1.msra.mxu0 %v2567
    %2602 = vmatprep.subr.mxu0 0.0
    %2603 = vmatpush1.msra.mxu0 %v2568
    %2604 = vmatprep.subr.mxu0 0.0
    %2605 = vmatpush1.msra.mxu0 %v2569
    %2606 = vmatprep.subr.mxu0 0.0
    %2607 = vmatpush1.msra.mxu0 %v2570
    %2608 = vmatprep.subr.mxu0 0.0
    %2609 = vmatpush1.msra.mxu0 %v2571
    %2610 = vmatprep.subr.mxu0 0.0
    %2611 = vmatpush1.msra.mxu0 %v2572
    %2612 = vmatprep.subr.mxu0 0.0
    %2613 = vmatpush1.msra.mxu0 %v2573
    %2614 = vmatprep.subr.mxu0 0.0
    %2615 = vmatpush1.msra.mxu0 0.0
    %2616 = vmatprep.subr.mxu0 0.0
    %2617 = vmatpush1.msra.mxu0 0.0
    %2618 = vmatprep.subr.mxu0 0.0
    %2619 = vmatpush1.msra.mxu0 0.0
    %2620 = vmatprep.subr.mxu0 0.0
    %2621 = vmatpush1.msra.mxu0 0.0
    %2622 = vmatprep.subr.mxu0 0.0
    %2623 = vmatpush1.msra.mxu0 0.0
    %2624 = vmatprep.subr.mxu0 0.0
    %2625 = vmatpush1.msra.mxu0 0.0
    %2626 = vmatprep.subr.mxu0 0.0
    %2627 = vmatpush1.msra.mxu0 0.0
    %2628 = vmatprep.subr.mxu0 0.0
    %2629 = vmatpush1.msra.mxu0 0.0
    %2630 = vmatprep.subr.mxu0 0.0
    %2631 = vmatpush1.msra.mxu0 0.0
    %2632 = vmatprep.subr.mxu0 0.0
    %2633 = vmatpush1.msra.mxu0 0.0
    %2634 = vmatprep.subr.mxu0 0.0
    %2635 = vmatpush1.msra.mxu0 0.0
    %2636 = vmatprep.subr.mxu0 0.0
    %2637 = vmatpush1.msra.mxu0 0.0
    %2638 = vmatprep.subr.mxu0 0.0
    %2639 = vmatpush1.msra.mxu0 0.0
    %2640 = vmatprep.subr.mxu0 0.0
    %2641 = vmatpush1.msra.mxu0 0.0
    %2642 = vmatprep.subr.mxu0 0.0
    %2643 = vmatpush1.msra.mxu0 0.0
    %2644 = vmatprep.subr.mxu0 0.0
    %2645 = vmatpush1.msra.mxu0 0.0
    %2646 = vmatprep.mubr.f32.mxu0 0.0
    %2647 = vmatmul.mubr.f32.gmra.mrb[0].mxu0 %v2556
    %v2648 = vpop.f32.mrb[0].mxu0
    %v2649 = vadd.f32 %v2580, %v2648
    %v2650 = vpop.f32.mrb[0].mxu0
    %2651 = vdwg.mxu0
    %v2652 = vmax.f32 %v2649, 0.0
    %s2653 = scalar_lea.vmem [#allocation4], 512
    %v2654 = vld [vmem:[%s2653] sm:$0xff]
    %v2655 = vld [vmem:[%s2653 + $0x8] sm:$0xff]
    %v2656 = vld [vmem:[%s2653 + $0x10] sm:$0xff]
    %v2657 = vld [vmem:[%s2653 + $0x18] sm:$0xff]
    %v2658 = vld [vmem:[%s2653 + $0x20] sm:$0xff]
    %v2659 = vld [vmem:[%s2653 + $0x28] sm:$0xff]
    %v2660 = vld [vmem:[%s2653 + $0x30] sm:$0xff]
    %v2661 = vld [vmem:[%s2653 + $0x38] sm:$0xff]
    %v2662 = vld [vmem:[%s2653 + $0x40] sm:$0xff]
    %v2663 = vld [vmem:[%s2653 + $0x48] sm:$0xff]
    %v2664 = vld [vmem:[%s2653 + $0x50] sm:$0xff]
    %v2665 = vld [vmem:[%s2653 + $0x58] sm:$0xff]
    %v2666 = vld [vmem:[%s2653 + $0x60] sm:$0xff]
    %v2667 = vld [vmem:[%s2653 + $0x68] sm:$0xff]
    %v2668 = vld [vmem:[%s2653 + $0x70] sm:$0xff]
    %v2669 = vld [vmem:[%s2653 + $0x78] sm:$0xff]
    %s2670 = scalar_lea.vmem %s7, 4
    %v2671 = vld [vmem:[%s2670] sm:$0x1]
    %v2673 = vlaneseq
    %v2674 = vshrl.u32 %v2673, 7
    %v2675 = vsub.s32 0, %v2674
    %v2676 = vrot.slane %v2671, %v2675
    %2678 = vmatprep.subr.mxu0 0.0
    %2679 = vmatpush1.msra.mxu0 %v2654
    %2680 = vmatprep.subr.mxu0 0.0
    %2681 = vmatpush1.msra.mxu0 %v2655
    %2682 = vmatprep.subr.mxu0 0.0
    %2683 = vmatpush1.msra.mxu0 %v2656
    %2684 = vmatprep.subr.mxu0 0.0
    %2685 = vmatpush1.msra.mxu0 %v2657
    %2686 = vmatprep.subr.mxu0 0.0
    %2687 = vmatpush1.msra.mxu0 %v2658
    %2688 = vmatprep.subr.mxu0 0.0
    %2689 = vmatpush1.msra.mxu0 %v2659
    %2690 = vmatprep.subr.mxu0 0.0
    %2691 = vmatpush1.msra.mxu0 %v2660
    %2692 = vmatprep.subr.mxu0 0.0
    %2693 = vmatpush1.msra.mxu0 %v2661
    %2694 = vmatprep.subr.mxu0 0.0
    %2695 = vmatpush1.msra.mxu0 %v2662
    %2696 = vmatprep.subr.mxu0 0.0
    %2697 = vmatpush1.msra.mxu0 %v2663
    %2698 = vmatprep.subr.mxu0 0.0
    %2699 = vmatpush1.msra.mxu0 %v2664
    %2700 = vmatprep.subr.mxu0 0.0
    %2701 = vmatpush1.msra.mxu0 %v2665
    %2702 = vmatprep.subr.mxu0 0.0
    %2703 = vmatpush1.msra.mxu0 %v2666
    %2704 = vmatprep.subr.mxu0 0.0
    %2705 = vmatpush1.msra.mxu0 %v2667
    %2706 = vmatprep.subr.mxu0 0.0
    %2707 = vmatpush1.msra.mxu0 %v2668
    %2708 = vmatprep.subr.mxu0 0.0
    %2709 = vmatpush1.msra.mxu0 %v2669
    %2710 = vmatprep.subr.mxu0 0.0
    %2711 = vmatpush1.msra.mxu0 0.0
    %2712 = vmatprep.subr.mxu0 0.0
    %2713 = vmatpush1.msra.mxu0 0.0
    %2714 = vmatprep.subr.mxu0 0.0
    %2715 = vmatpush1.msra.mxu0 0.0
    %2716 = vmatprep.subr.mxu0 0.0
    %2717 = vmatpush1.msra.mxu0 0.0
    %2718 = vmatprep.subr.mxu0 0.0
    %2719 = vmatpush1.msra.mxu0 0.0
    %2720 = vmatprep.subr.mxu0 0.0
    %2721 = vmatpush1.msra.mxu0 0.0
    %2722 = vmatprep.subr.mxu0 0.0
    %2723 = vmatpush1.msra.mxu0 0.0
    %2724 = vmatprep.subr.mxu0 0.0
    %2725 = vmatpush1.msra.mxu0 0.0
    %2726 = vmatprep.subr.mxu0 0.0
    %2727 = vmatpush1.msra.mxu0 0.0
    %2728 = vmatprep.subr.mxu0 0.0
    %2729 = vmatpush1.msra.mxu0 0.0
    %2730 = vmatprep.subr.mxu0 0.0
    %2731 = vmatpush1.msra.mxu0 0.0
    %2732 = vmatprep.subr.mxu0 0.0
    %2733 = vmatpush1.msra.mxu0 0.0
    %2734 = vmatprep.subr.mxu0 0.0
    %2735 = vmatpush1.msra.mxu0 0.0
    %2736 = vmatprep.subr.mxu0 0.0
    %2737 = vmatpush1.msra.mxu0 0.0
    %2738 = vmatprep.subr.mxu0 0.0
    %2739 = vmatpush1.msra.mxu0 0.0
    %2740 = vmatprep.subr.mxu0 0.0
    %2741 = vmatpush1.msra.mxu0 0.0
    %2742 = vmatprep.mubr.f32.mxu0 0.0
    %2743 = vmatmul.mubr.f32.gmra.mrb[0].mxu0 %v2652
    %v2744 = vpop.f32.mrb[0].mxu0
    %v2745 = vadd.f32 %v2676, %v2744
    %v2746 = vpop.f32.mrb[0].mxu0
    %2747 = vdwg.mxu0
    %v2748 = vmax.f32 %v2745, 0.0
    %v2749 = vadd.f32 %v2748, %v2556
    %v2752 = vrot.slane %v1515, 7
    %v2753 = vsel %vm1521, %v2752, %v1507
    %v2755 = vrot.slane %v1507, 1
    %v2756 = vsel %vm1521, %v1515, %v2755
    %2757 = vrot.lane.b32.xlu0 %v2756, 16
    %v2758 = vpop.permute.xlu0 %2757
    %v2760 = vrot.slane %v1507, 2
    %v2761 = vrot.slane %v1515, 1
    %v2762 = vsel %vm1521, %v2761, %v2760
    %2763 = vrot.lane.b32.xlu0 %v2762, 32
    %v2764 = vpop.permute.xlu0 %2763
    %v2766 = vrot.slane %v1507, 3
    %v2767 = vrot.slane %v1515, 2
    %v2768 = vsel %vm1521, %v2767, %v2766
    %2769 = vrot.lane.b32.xlu0 %v2768, 48
    %v2770 = vpop.permute.xlu0 %2769
    %v2772 = vrot.slane %v1507, 4
    %v2773 = vrot.slane %v1515, 3
    %v2774 = vsel %vm1521, %v2773, %v2772
    %2775 = vrot.lane.b32.xlu0 %v2774, 64
    %v2776 = vpop.permute.xlu0 %2775
    %v2778 = vrot.slane %v1507, 5
    %v2779 = vrot.slane %v1515, 4
    %v2780 = vsel %vm1521, %v2779, %v2778
    %2781 = vrot.lane.b32.xlu0 %v2780, 80
    %v2782 = vpop.permute.xlu0 %2781
    %v2784 = vrot.slane %v1507, 6
    %v2785 = vrot.slane %v1515, 5
    %v2786 = vsel %vm1521, %v2785, %v2784
    %2787 = vrot.lane.b32.xlu0 %v2786, 96
    %v2788 = vpop.permute.xlu0 %2787
    %v2790 = vrot.slane %v1507, 7
    %v2791 = vrot.slane %v1515, 6
    %v2792 = vsel %vm1521, %v2791, %v2790
    %2793 = vrot.lane.b32.xlu0 %v2792, 112
    %v2794 = vpop.permute.xlu0 %2793
    %v2796 = vsel %vm75, %v2753, %v2758
    %v2797 = vsel %vm1566, %v2796, %v2764
    %v2798 = vsel %vm1568, %v2797, %v2770
    %v2799 = vsel %vm885, %v2798, %v2776
    %v2800 = vsel %vm1571, %v2799, %v2782
    %v2801 = vsel %vm1573, %v2800, %v2788
    %v2802 = vsel %vm1575, %v2801, %v2794
    %s2803 = scalar_lea.vmem [#allocation2], 640
    %v2804 = vld [vmem:[%s2803] sm:$0xff]
    %v2805 = vld [vmem:[%s2803 + $0x8] sm:$0xff]
    %v2806 = vld [vmem:[%s2803 + $0x10] sm:$0xff]
    %v2807 = vld [vmem:[%s2803 + $0x18] sm:$0xff]
    %v2808 = vld [vmem:[%s2803 + $0x20] sm:$0xff]
    %v2809 = vld [vmem:[%s2803 + $0x28] sm:$0xff]
    %v2810 = vld [vmem:[%s2803 + $0x30] sm:$0xff]
    %v2811 = vld [vmem:[%s2803 + $0x38] sm:$0xff]
    %v2812 = vld [vmem:[%s2803 + $0x40] sm:$0xff]
    %v2813 = vld [vmem:[%s2803 + $0x48] sm:$0xff]
    %v2814 = vld [vmem:[%s2803 + $0x50] sm:$0xff]
    %v2815 = vld [vmem:[%s2803 + $0x58] sm:$0xff]
    %v2816 = vld [vmem:[%s2803 + $0x60] sm:$0xff]
    %v2817 = vld [vmem:[%s2803 + $0x68] sm:$0xff]
    %v2818 = vld [vmem:[%s2803 + $0x70] sm:$0xff]
    %v2819 = vld [vmem:[%s2803 + $0x78] sm:$0xff]
    %s2820 = scalar_lea.vmem %s5, 5
    %v2821 = vld [vmem:[%s2820] sm:$0x1]
    %v2823 = vlaneseq
    %v2824 = vshrl.u32 %v2823, 7
    %v2825 = vsub.s32 0, %v2824
    %v2826 = vrot.slane %v2821, %v2825
    %2828 = vmatprep.subr.mxu0 0.0
    %2829 = vmatpush1.msra.mxu0 %v2804
    %2830 = vmatprep.subr.mxu0 0.0
    %2831 = vmatpush1.msra.mxu0 %v2805
    %2832 = vmatprep.subr.mxu0 0.0
    %2833 = vmatpush1.msra.mxu0 %v2806
    %2834 = vmatprep.subr.mxu0 0.0
    %2835 = vmatpush1.msra.mxu0 %v2807
    %2836 = vmatprep.subr.mxu0 0.0
    %2837 = vmatpush1.msra.mxu0 %v2808
    %2838 = vmatprep.subr.mxu0 0.0
    %2839 = vmatpush1.msra.mxu0 %v2809
    %2840 = vmatprep.subr.mxu0 0.0
    %2841 = vmatpush1.msra.mxu0 %v2810
    %2842 = vmatprep.subr.mxu0 0.0
    %2843 = vmatpush1.msra.mxu0 %v2811
    %2844 = vmatprep.subr.mxu0 0.0
    %2845 = vmatpush1.msra.mxu0 %v2812
    %2846 = vmatprep.subr.mxu0 0.0
    %2847 = vmatpush1.msra.mxu0 %v2813
    %2848 = vmatprep.subr.mxu0 0.0
    %2849 = vmatpush1.msra.mxu0 %v2814
    %2850 = vmatprep.subr.mxu0 0.0
    %2851 = vmatpush1.msra.mxu0 %v2815
    %2852 = vmatprep.subr.mxu0 0.0
    %2853 = vmatpush1.msra.mxu0 %v2816
    %2854 = vmatprep.subr.mxu0 0.0
    %2855 = vmatpush1.msra.mxu0 %v2817
    %2856 = vmatprep.subr.mxu0 0.0
    %2857 = vmatpush1.msra.mxu0 %v2818
    %2858 = vmatprep.subr.mxu0 0.0
    %2859 = vmatpush1.msra.mxu0 %v2819
    %2860 = vmatprep.subr.mxu0 0.0
    %2861 = vmatpush1.msra.mxu0 0.0
    %2862 = vmatprep.subr.mxu0 0.0
    %2863 = vmatpush1.msra.mxu0 0.0
    %2864 = vmatprep.subr.mxu0 0.0
    %2865 = vmatpush1.msra.mxu0 0.0
    %2866 = vmatprep.subr.mxu0 0.0
    %2867 = vmatpush1.msra.mxu0 0.0
    %2868 = vmatprep.subr.mxu0 0.0
    %2869 = vmatpush1.msra.mxu0 0.0
    %2870 = vmatprep.subr.mxu0 0.0
    %2871 = vmatpush1.msra.mxu0 0.0
    %2872 = vmatprep.subr.mxu0 0.0
    %2873 = vmatpush1.msra.mxu0 0.0
    %2874 = vmatprep.subr.mxu0 0.0
    %2875 = vmatpush1.msra.mxu0 0.0
    %2876 = vmatprep.subr.mxu0 0.0
    %2877 = vmatpush1.msra.mxu0 0.0
    %2878 = vmatprep.subr.mxu0 0.0
    %2879 = vmatpush1.msra.mxu0 0.0
    %2880 = vmatprep.subr.mxu0 0.0
    %2881 = vmatpush1.msra.mxu0 0.0
    %2882 = vmatprep.subr.mxu0 0.0
    %2883 = vmatpush1.msra.mxu0 0.0
    %2884 = vmatprep.subr.mxu0 0.0
    %2885 = vmatpush1.msra.mxu0 0.0
    %2886 = vmatprep.subr.mxu0 0.0
    %2887 = vmatpush1.msra.mxu0 0.0
    %2888 = vmatprep.subr.mxu0 0.0
    %2889 = vmatpush1.msra.mxu0 0.0
    %2890 = vmatprep.subr.mxu0 0.0
    %2891 = vmatpush1.msra.mxu0 0.0
    %2892 = vmatprep.mubr.f32.mxu0 0.0
    %2893 = vmatmul.mubr.f32.gmra.mrb[0].mxu0 %v2802
    %v2894 = vpop.f32.mrb[0].mxu0
    %v2895 = vadd.f32 %v2826, %v2894
    %v2896 = vpop.f32.mrb[0].mxu0
    %2897 = vdwg.mxu0
    %v2898 = vmax.f32 %v2895, 0.0
    %s2899 = scalar_lea.vmem [#allocation4], 640
    %v2900 = vld [vmem:[%s2899] sm:$0xff]
    %v2901 = vld [vmem:[%s2899 + $0x8] sm:$0xff]
    %v2902 = vld [vmem:[%s2899 + $0x10] sm:$0xff]
    %v2903 = vld [vmem:[%s2899 + $0x18] sm:$0xff]
    %v2904 = vld [vmem:[%s2899 + $0x20] sm:$0xff]
    %v2905 = vld [vmem:[%s2899 + $0x28] sm:$0xff]
    %v2906 = vld [vmem:[%s2899 + $0x30] sm:$0xff]
    %v2907 = vld [vmem:[%s2899 + $0x38] sm:$0xff]
    %v2908 = vld [vmem:[%s2899 + $0x40] sm:$0xff]
    %v2909 = vld [vmem:[%s2899 + $0x48] sm:$0xff]
    %v2910 = vld [vmem:[%s2899 + $0x50] sm:$0xff]
    %v2911 = vld [vmem:[%s2899 + $0x58] sm:$0xff]
    %v2912 = vld [vmem:[%s2899 + $0x60] sm:$0xff]
    %v2913 = vld [vmem:[%s2899 + $0x68] sm:$0xff]
    %v2914 = vld [vmem:[%s2899 + $0x70] sm:$0xff]
    %v2915 = vld [vmem:[%s2899 + $0x78] sm:$0xff]
    %s2916 = scalar_lea.vmem %s7, 5
    %v2917 = vld [vmem:[%s2916] sm:$0x1]
    %v2919 = vlaneseq
    %v2920 = vshrl.u32 %v2919, 7
    %v2921 = vsub.s32 0, %v2920
    %v2922 = vrot.slane %v2917, %v2921
    %2924 = vmatprep.subr.mxu0 0.0
    %2925 = vmatpush1.msra.mxu0 %v2900
    %2926 = vmatprep.subr.mxu0 0.0
    %2927 = vmatpush1.msra.mxu0 %v2901
    %2928 = vmatprep.subr.mxu0 0.0
    %2929 = vmatpush1.msra.mxu0 %v2902
    %2930 = vmatprep.subr.mxu0 0.0
    %2931 = vmatpush1.msra.mxu0 %v2903
    %2932 = vmatprep.subr.mxu0 0.0
    %2933 = vmatpush1.msra.mxu0 %v2904
    %2934 = vmatprep.subr.mxu0 0.0
    %2935 = vmatpush1.msra.mxu0 %v2905
    %2936 = vmatprep.subr.mxu0 0.0
    %2937 = vmatpush1.msra.mxu0 %v2906
    %2938 = vmatprep.subr.mxu0 0.0
    %2939 = vmatpush1.msra.mxu0 %v2907
    %2940 = vmatprep.subr.mxu0 0.0
    %2941 = vmatpush1.msra.mxu0 %v2908
    %2942 = vmatprep.subr.mxu0 0.0
    %2943 = vmatpush1.msra.mxu0 %v2909
    %2944 = vmatprep.subr.mxu0 0.0
    %2945 = vmatpush1.msra.mxu0 %v2910
    %2946 = vmatprep.subr.mxu0 0.0
    %2947 = vmatpush1.msra.mxu0 %v2911
    %2948 = vmatprep.subr.mxu0 0.0
    %2949 = vmatpush1.msra.mxu0 %v2912
    %2950 = vmatprep.subr.mxu0 0.0
    %2951 = vmatpush1.msra.mxu0 %v2913
    %2952 = vmatprep.subr.mxu0 0.0
    %2953 = vmatpush1.msra.mxu0 %v2914
    %2954 = vmatprep.subr.mxu0 0.0
    %2955 = vmatpush1.msra.mxu0 %v2915
    %2956 = vmatprep.subr.mxu0 0.0
    %2957 = vmatpush1.msra.mxu0 0.0
    %2958 = vmatprep.subr.mxu0 0.0
    %2959 = vmatpush1.msra.mxu0 0.0
    %2960 = vmatprep.subr.mxu0 0.0
    %2961 = vmatpush1.msra.mxu0 0.0
    %2962 = vmatprep.subr.mxu0 0.0
    %2963 = vmatpush1.msra.mxu0 0.0
    %2964 = vmatprep.subr.mxu0 0.0
    %2965 = vmatpush1.msra.mxu0 0.0
    %2966 = vmatprep.subr.mxu0 0.0
    %2967 = vmatpush1.msra.mxu0 0.0
    %2968 = vmatprep.subr.mxu0 0.0
    %2969 = vmatpush1.msra.mxu0 0.0
    %2970 = vmatprep.subr.mxu0 0.0
    %2971 = vmatpush1.msra.mxu0 0.0
    %2972 = vmatprep.subr.mxu0 0.0
    %2973 = vmatpush1.msra.mxu0 0.0
    %2974 = vmatprep.subr.mxu0 0.0
    %2975 = vmatpush1.msra.mxu0 0.0
    %2976 = vmatprep.subr.mxu0 0.0
    %2977 = vmatpush1.msra.mxu0 0.0
    %2978 = vmatprep.subr.mxu0 0.0
    %2979 = vmatpush1.msra.mxu0 0.0
    %2980 = vmatprep.subr.mxu0 0.0
    %2981 = vmatpush1.msra.mxu0 0.0
    %2982 = vmatprep.subr.mxu0 0.0
    %2983 = vmatpush1.msra.mxu0 0.0
    %2984 = vmatprep.subr.mxu0 0.0
    %2985 = vmatpush1.msra.mxu0 0.0
    %2986 = vmatprep.subr.mxu0 0.0
    %2987 = vmatpush1.msra.mxu0 0.0
    %2988 = vmatprep.mubr.f32.mxu0 0.0
    %2989 = vmatmul.mubr.f32.gmra.mrb[0].mxu0 %v2898
    %v2990 = vpop.f32.mrb[0].mxu0
    %v2991 = vadd.f32 %v2922, %v2990
    %v2992 = vpop.f32.mrb[0].mxu0
    %2993 = vdwg.mxu0
    %v2994 = vmax.f32 %v2991, 0.0
    %v2995 = vadd.f32 %v2994, %v2802
    %v2998 = vrot.slane %v1516, 7
    %v2999 = vsel %vm1521, %v2998, %v1508
    %v3001 = vrot.slane %v1508, 1
    %v3002 = vsel %vm1521, %v1516, %v3001
    %3003 = vrot.lane.b32.xlu0 %v3002, 16
    %v3004 = vpop.permute.xlu0 %3003
    %v3006 = vrot.slane %v1508, 2
    %v3007 = vrot.slane %v1516, 1
    %v3008 = vsel %vm1521, %v3007, %v3006
    %3009 = vrot.lane.b32.xlu0 %v3008, 32
    %v3010 = vpop.permute.xlu0 %3009
    %v3012 = vrot.slane %v1508, 3
    %v3013 = vrot.slane %v1516, 2
    %v3014 = vsel %vm1521, %v3013, %v3012
    %3015 = vrot.lane.b32.xlu0 %v3014, 48
    %v3016 = vpop.permute.xlu0 %3015
    %v3018 = vrot.slane %v1508, 4
    %v3019 = vrot.slane %v1516, 3
    %v3020 = vsel %vm1521, %v3019, %v3018
    %3021 = vrot.lane.b32.xlu0 %v3020, 64
    %v3022 = vpop.permute.xlu0 %3021
    %v3024 = vrot.slane %v1508, 5
    %v3025 = vrot.slane %v1516, 4
    %v3026 = vsel %vm1521, %v3025, %v3024
    %3027 = vrot.lane.b32.xlu0 %v3026, 80
    %v3028 = vpop.permute.xlu0 %3027
    %v3030 = vrot.slane %v1508, 6
    %v3031 = vrot.slane %v1516, 5
    %v3032 = vsel %vm1521, %v3031, %v3030
    %3033 = vrot.lane.b32.xlu0 %v3032, 96
    %v3034 = vpop.permute.xlu0 %3033
    %v3036 = vrot.slane %v1508, 7
    %v3037 = vrot.slane %v1516, 6
    %v3038 = vsel %vm1521, %v3037, %v3036
    %3039 = vrot.lane.b32.xlu0 %v3038, 112
    %v3040 = vpop.permute.xlu0 %3039
    %v3042 = vsel %vm75, %v2999, %v3004
    %v3043 = vsel %vm1566, %v3042, %v3010
    %v3044 = vsel %vm1568, %v3043, %v3016
    %v3045 = vsel %vm885, %v3044, %v3022
    %v3046 = vsel %vm1571, %v3045, %v3028
    %v3047 = vsel %vm1573, %v3046, %v3034
    %v3048 = vsel %vm1575, %v3047, %v3040
    %s3049 = scalar_lea.vmem [#allocation2], 768
    %v3050 = vld [vmem:[%s3049] sm:$0xff]
    %v3051 = vld [vmem:[%s3049 + $0x8] sm:$0xff]
    %v3052 = vld [vmem:[%s3049 + $0x10] sm:$0xff]
    %v3053 = vld [vmem:[%s3049 + $0x18] sm:$0xff]
    %v3054 = vld [vmem:[%s3049 + $0x20] sm:$0xff]
    %v3055 = vld [vmem:[%s3049 + $0x28] sm:$0xff]
    %v3056 = vld [vmem:[%s3049 + $0x30] sm:$0xff]
    %v3057 = vld [vmem:[%s3049 + $0x38] sm:$0xff]
    %v3058 = vld [vmem:[%s3049 + $0x40] sm:$0xff]
    %v3059 = vld [vmem:[%s3049 + $0x48] sm:$0xff]
    %v3060 = vld [vmem:[%s3049 + $0x50] sm:$0xff]
    %v3061 = vld [vmem:[%s3049 + $0x58] sm:$0xff]
    %v3062 = vld [vmem:[%s3049 + $0x60] sm:$0xff]
    %v3063 = vld [vmem:[%s3049 + $0x68] sm:$0xff]
    %v3064 = vld [vmem:[%s3049 + $0x70] sm:$0xff]
    %v3065 = vld [vmem:[%s3049 + $0x78] sm:$0xff]
    %s3066 = scalar_lea.vmem %s5, 6
    %v3067 = vld [vmem:[%s3066] sm:$0x1]
    %v3069 = vlaneseq
    %v3070 = vshrl.u32 %v3069, 7
    %v3071 = vsub.s32 0, %v3070
    %v3072 = vrot.slane %v3067, %v3071
    %3074 = vmatprep.subr.mxu0 0.0
    %3075 = vmatpush1.msra.mxu0 %v3050
    %3076 = vmatprep.subr.mxu0 0.0
    %3077 = vmatpush1.msra.mxu0 %v3051
    %3078 = vmatprep.subr.mxu0 0.0
    %3079 = vmatpush1.msra.mxu0 %v3052
    %3080 = vmatprep.subr.mxu0 0.0
    %3081 = vmatpush1.msra.mxu0 %v3053
    %3082 = vmatprep.subr.mxu0 0.0
    %3083 = vmatpush1.msra.mxu0 %v3054
    %3084 = vmatprep.subr.mxu0 0.0
    %3085 = vmatpush1.msra.mxu0 %v3055
    %3086 = vmatprep.subr.mxu0 0.0
    %3087 = vmatpush1.msra.mxu0 %v3056
    %3088 = vmatprep.subr.mxu0 0.0
    %3089 = vmatpush1.msra.mxu0 %v3057
    %3090 = vmatprep.subr.mxu0 0.0
    %3091 = vmatpush1.msra.mxu0 %v3058
    %3092 = vmatprep.subr.mxu0 0.0
    %3093 = vmatpush1.msra.mxu0 %v3059
    %3094 = vmatprep.subr.mxu0 0.0
    %3095 = vmatpush1.msra.mxu0 %v3060
    %3096 = vmatprep.subr.mxu0 0.0
    %3097 = vmatpush1.msra.mxu0 %v3061
    %3098 = vmatprep.subr.mxu0 0.0
    %3099 = vmatpush1.msra.mxu0 %v3062
    %3100 = vmatprep.subr.mxu0 0.0
    %3101 = vmatpush1.msra.mxu0 %v3063
    %3102 = vmatprep.subr.mxu0 0.0
    %3103 = vmatpush1.msra.mxu0 %v3064
    %3104 = vmatprep.subr.mxu0 0.0
    %3105 = vmatpush1.msra.mxu0 %v3065
    %3106 = vmatprep.subr.mxu0 0.0
    %3107 = vmatpush1.msra.mxu0 0.0
    %3108 = vmatprep.subr.mxu0 0.0
    %3109 = vmatpush1.msra.mxu0 0.0
    %3110 = vmatprep.subr.mxu0 0.0
    %3111 = vmatpush1.msra.mxu0 0.0
    %3112 = vmatprep.subr.mxu0 0.0
    %3113 = vmatpush1.msra.mxu0 0.0
    %3114 = vmatprep.subr.mxu0 0.0
    %3115 = vmatpush1.msra.mxu0 0.0
    %3116 = vmatprep.subr.mxu0 0.0
    %3117 = vmatpush1.msra.mxu0 0.0
    %3118 = vmatprep.subr.mxu0 0.0
    %3119 = vmatpush1.msra.mxu0 0.0
    %3120 = vmatprep.subr.mxu0 0.0
    %3121 = vmatpush1.msra.mxu0 0.0
    %3122 = vmatprep.subr.mxu0 0.0
    %3123 = vmatpush1.msra.mxu0 0.0
    %3124 = vmatprep.subr.mxu0 0.0
    %3125 = vmatpush1.msra.mxu0 0.0
    %3126 = vmatprep.subr.mxu0 0.0
    %3127 = vmatpush1.msra.mxu0 0.0
    %3128 = vmatprep.subr.mxu0 0.0
    %3129 = vmatpush1.msra.mxu0 0.0
    %3130 = vmatprep.subr.mxu0 0.0
    %3131 = vmatpush1.msra.mxu0 0.0
    %3132 = vmatprep.subr.mxu0 0.0
    %3133 = vmatpush1.msra.mxu0 0.0
    %3134 = vmatprep.subr.mxu0 0.0
    %3135 = vmatpush1.msra.mxu0 0.0
    %3136 = vmatprep.subr.mxu0 0.0
    %3137 = vmatpush1.msra.mxu0 0.0
    %3138 = vmatprep.mubr.f32.mxu0 0.0
    %3139 = vmatmul.mubr.f32.gmra.mrb[0].mxu0 %v3048
    %v3140 = vpop.f32.mrb[0].mxu0
    %v3141 = vadd.f32 %v3072, %v3140
    %v3142 = vpop.f32.mrb[0].mxu0
    %3143 = vdwg.mxu0
    %v3144 = vmax.f32 %v3141, 0.0
    %s3145 = scalar_lea.vmem [#allocation4], 768
    %v3146 = vld [vmem:[%s3145] sm:$0xff]
    %v3147 = vld [vmem:[%s3145 + $0x8] sm:$0xff]
    %v3148 = vld [vmem:[%s3145 + $0x10] sm:$0xff]
    %v3149 = vld [vmem:[%s3145 + $0x18] sm:$0xff]
    %v3150 = vld [vmem:[%s3145 + $0x20] sm:$0xff]
    %v3151 = vld [vmem:[%s3145 + $0x28] sm:$0xff]
    %v3152 = vld [vmem:[%s3145 + $0x30] sm:$0xff]
    %v3153 = vld [vmem:[%s3145 + $0x38] sm:$0xff]
    %v3154 = vld [vmem:[%s3145 + $0x40] sm:$0xff]
    %v3155 = vld [vmem:[%s3145 + $0x48] sm:$0xff]
    %v3156 = vld [vmem:[%s3145 + $0x50] sm:$0xff]
    %v3157 = vld [vmem:[%s3145 + $0x58] sm:$0xff]
    %v3158 = vld [vmem:[%s3145 + $0x60] sm:$0xff]
    %v3159 = vld [vmem:[%s3145 + $0x68] sm:$0xff]
    %v3160 = vld [vmem:[%s3145 + $0x70] sm:$0xff]
    %v3161 = vld [vmem:[%s3145 + $0x78] sm:$0xff]
    %s3162 = scalar_lea.vmem %s7, 6
    %v3163 = vld [vmem:[%s3162] sm:$0x1]
    %v3165 = vlaneseq
    %v3166 = vshrl.u32 %v3165, 7
    %v3167 = vsub.s32 0, %v3166
    %v3168 = vrot.slane %v3163, %v3167
    %3170 = vmatprep.subr.mxu0 0.0
    %3171 = vmatpush1.msra.mxu0 %v3146
    %3172 = vmatprep.subr.mxu0 0.0
    %3173 = vmatpush1.msra.mxu0 %v3147
    %3174 = vmatprep.subr.mxu0 0.0
    %3175 = vmatpush1.msra.mxu0 %v3148
    %3176 = vmatprep.subr.mxu0 0.0
    %3177 = vmatpush1.msra.mxu0 %v3149
    %3178 = vmatprep.subr.mxu0 0.0
    %3179 = vmatpush1.msra.mxu0 %v3150
    %3180 = vmatprep.subr.mxu0 0.0
    %3181 = vmatpush1.msra.mxu0 %v3151
    %3182 = vmatprep.subr.mxu0 0.0
    %3183 = vmatpush1.msra.mxu0 %v3152
    %3184 = vmatprep.subr.mxu0 0.0
    %3185 = vmatpush1.msra.mxu0 %v3153
    %3186 = vmatprep.subr.mxu0 0.0
    %3187 = vmatpush1.msra.mxu0 %v3154
    %3188 = vmatprep.subr.mxu0 0.0
    %3189 = vmatpush1.msra.mxu0 %v3155
    %3190 = vmatprep.subr.mxu0 0.0
    %3191 = vmatpush1.msra.mxu0 %v3156
    %3192 = vmatprep.subr.mxu0 0.0
    %3193 = vmatpush1.msra.mxu0 %v3157
    %3194 = vmatprep.subr.mxu0 0.0
    %3195 = vmatpush1.msra.mxu0 %v3158
    %3196 = vmatprep.subr.mxu0 0.0
    %3197 = vmatpush1.msra.mxu0 %v3159
    %3198 = vmatprep.subr.mxu0 0.0
    %3199 = vmatpush1.msra.mxu0 %v3160
    %3200 = vmatprep.subr.mxu0 0.0
    %3201 = vmatpush1.msra.mxu0 %v3161
    %3202 = vmatprep.subr.mxu0 0.0
    %3203 = vmatpush1.msra.mxu0 0.0
    %3204 = vmatprep.subr.mxu0 0.0
    %3205 = vmatpush1.msra.mxu0 0.0
    %3206 = vmatprep.subr.mxu0 0.0
    %3207 = vmatpush1.msra.mxu0 0.0
    %3208 = vmatprep.subr.mxu0 0.0
    %3209 = vmatpush1.msra.mxu0 0.0
    %3210 = vmatprep.subr.mxu0 0.0
    %3211 = vmatpush1.msra.mxu0 0.0
    %3212 = vmatprep.subr.mxu0 0.0
    %3213 = vmatpush1.msra.mxu0 0.0
    %3214 = vmatprep.subr.mxu0 0.0
    %3215 = vmatpush1.msra.mxu0 0.0
    %3216 = vmatprep.subr.mxu0 0.0
    %3217 = vmatpush1.msra.mxu0 0.0
    %3218 = vmatprep.subr.mxu0 0.0
    %3219 = vmatpush1.msra.mxu0 0.0
    %3220 = vmatprep.subr.mxu0 0.0
    %3221 = vmatpush1.msra.mxu0 0.0
    %3222 = vmatprep.subr.mxu0 0.0
    %3223 = vmatpush1.msra.mxu0 0.0
    %3224 = vmatprep.subr.mxu0 0.0
    %3225 = vmatpush1.msra.mxu0 0.0
    %3226 = vmatprep.subr.mxu0 0.0
    %3227 = vmatpush1.msra.mxu0 0.0
    %3228 = vmatprep.subr.mxu0 0.0
    %3229 = vmatpush1.msra.mxu0 0.0
    %3230 = vmatprep.subr.mxu0 0.0
    %3231 = vmatpush1.msra.mxu0 0.0
    %3232 = vmatprep.subr.mxu0 0.0
    %3233 = vmatpush1.msra.mxu0 0.0
    %3234 = vmatprep.mubr.f32.mxu0 0.0
    %3235 = vmatmul.mubr.f32.gmra.mrb[0].mxu0 %v3144
    %v3236 = vpop.f32.mrb[0].mxu0
    %v3237 = vadd.f32 %v3168, %v3236
    %v3238 = vpop.f32.mrb[0].mxu0
    %3239 = vdwg.mxu0
    %v3240 = vmax.f32 %v3237, 0.0
    %v3241 = vadd.f32 %v3240, %v3048
    %v3244 = vrot.slane %v1517, 7
    %v3245 = vsel %vm1521, %v3244, %v1509
    %v3247 = vrot.slane %v1509, 1
    %v3248 = vsel %vm1521, %v1517, %v3247
    %3249 = vrot.lane.b32.xlu0 %v3248, 16
    %v3250 = vpop.permute.xlu0 %3249
    %v3252 = vrot.slane %v1509, 2
    %v3253 = vrot.slane %v1517, 1
    %v3254 = vsel %vm1521, %v3253, %v3252
    %3255 = vrot.lane.b32.xlu0 %v3254, 32
    %v3256 = vpop.permute.xlu0 %3255
    %v3258 = vrot.slane %v1509, 3
    %v3259 = vrot.slane %v1517, 2
    %v3260 = vsel %vm1521, %v3259, %v3258
    %3261 = vrot.lane.b32.xlu0 %v3260, 48
    %v3262 = vpop.permute.xlu0 %3261
    %v3264 = vrot.slane %v1509, 4
    %v3265 = vrot.slane %v1517, 3
    %v3266 = vsel %vm1521, %v3265, %v3264
    %3267 = vrot.lane.b32.xlu0 %v3266, 64
    %v3268 = vpop.permute.xlu0 %3267
    %v3270 = vrot.slane %v1509, 5
    %v3271 = vrot.slane %v1517, 4
    %v3272 = vsel %vm1521, %v3271, %v3270
    %3273 = vrot.lane.b32.xlu0 %v3272, 80
    %v3274 = vpop.permute.xlu0 %3273
    %v3276 = vrot.slane %v1509, 6
    %v3277 = vrot.slane %v1517, 5
    %v3278 = vsel %vm1521, %v3277, %v3276
    %3279 = vrot.lane.b32.xlu0 %v3278, 96
    %v3280 = vpop.permute.xlu0 %3279
    %v3282 = vrot.slane %v1509, 7
    %v3283 = vrot.slane %v1517, 6
    %v3284 = vsel %vm1521, %v3283, %v3282
    %3285 = vrot.lane.b32.xlu0 %v3284, 112
    %v3286 = vpop.permute.xlu0 %3285
    %v3288 = vsel %vm75, %v3245, %v3250
    %v3289 = vsel %vm1566, %v3288, %v3256
    %v3290 = vsel %vm1568, %v3289, %v3262
    %v3291 = vsel %vm885, %v3290, %v3268
    %v3292 = vsel %vm1571, %v3291, %v3274
    %v3293 = vsel %vm1573, %v3292, %v3280
    %v3294 = vsel %vm1575, %v3293, %v3286
    %s3295 = scalar_lea.vmem [#allocation2], 896
    %v3296 = vld [vmem:[%s3295] sm:$0xff]
    %v3297 = vld [vmem:[%s3295 + $0x8] sm:$0xff]
    %v3298 = vld [vmem:[%s3295 + $0x10] sm:$0xff]
    %v3299 = vld [vmem:[%s3295 + $0x18] sm:$0xff]
    %v3300 = vld [vmem:[%s3295 + $0x20] sm:$0xff]
    %v3301 = vld [vmem:[%s3295 + $0x28] sm:$0xff]
    %v3302 = vld [vmem:[%s3295 + $0x30] sm:$0xff]
    %v3303 = vld [vmem:[%s3295 + $0x38] sm:$0xff]
    %v3304 = vld [vmem:[%s3295 + $0x40] sm:$0xff]
    %v3305 = vld [vmem:[%s3295 + $0x48] sm:$0xff]
    %v3306 = vld [vmem:[%s3295 + $0x50] sm:$0xff]
    %v3307 = vld [vmem:[%s3295 + $0x58] sm:$0xff]
    %v3308 = vld [vmem:[%s3295 + $0x60] sm:$0xff]
    %v3309 = vld [vmem:[%s3295 + $0x68] sm:$0xff]
    %v3310 = vld [vmem:[%s3295 + $0x70] sm:$0xff]
    %v3311 = vld [vmem:[%s3295 + $0x78] sm:$0xff]
    %s3312 = scalar_lea.vmem %s5, 7
    %v3313 = vld [vmem:[%s3312] sm:$0x1]
    %v3315 = vlaneseq
    %v3316 = vshrl.u32 %v3315, 7
    %v3317 = vsub.s32 0, %v3316
    %v3318 = vrot.slane %v3313, %v3317
    %3320 = vmatprep.subr.mxu0 0.0
    %3321 = vmatpush1.msra.mxu0 %v3296
    %3322 = vmatprep.subr.mxu0 0.0
    %3323 = vmatpush1.msra.mxu0 %v3297
    %3324 = vmatprep.subr.mxu0 0.0
    %3325 = vmatpush1.msra.mxu0 %v3298
    %3326 = vmatprep.subr.mxu0 0.0
    %3327 = vmatpush1.msra.mxu0 %v3299
    %3328 = vmatprep.subr.mxu0 0.0
    %3329 = vmatpush1.msra.mxu0 %v3300
    %3330 = vmatprep.subr.mxu0 0.0
    %3331 = vmatpush1.msra.mxu0 %v3301
    %3332 = vmatprep.subr.mxu0 0.0
    %3333 = vmatpush1.msra.mxu0 %v3302
    %3334 = vmatprep.subr.mxu0 0.0
    %3335 = vmatpush1.msra.mxu0 %v3303
    %3336 = vmatprep.subr.mxu0 0.0
    %3337 = vmatpush1.msra.mxu0 %v3304
    %3338 = vmatprep.subr.mxu0 0.0
    %3339 = vmatpush1.msra.mxu0 %v3305
    %3340 = vmatprep.subr.mxu0 0.0
    %3341 = vmatpush1.msra.mxu0 %v3306
    %3342 = vmatprep.subr.mxu0 0.0
    %3343 = vmatpush1.msra.mxu0 %v3307
    %3344 = vmatprep.subr.mxu0 0.0
    %3345 = vmatpush1.msra.mxu0 %v3308
    %3346 = vmatprep.subr.mxu0 0.0
    %3347 = vmatpush1.msra.mxu0 %v3309
    %3348 = vmatprep.subr.mxu0 0.0
    %3349 = vmatpush1.msra.mxu0 %v3310
    %3350 = vmatprep.subr.mxu0 0.0
    %3351 = vmatpush1.msra.mxu0 %v3311
    %3352 = vmatprep.subr.mxu0 0.0
    %3353 = vmatpush1.msra.mxu0 0.0
    %3354 = vmatprep.subr.mxu0 0.0
    %3355 = vmatpush1.msra.mxu0 0.0
    %3356 = vmatprep.subr.mxu0 0.0
    %3357 = vmatpush1.msra.mxu0 0.0
    %3358 = vmatprep.subr.mxu0 0.0
    %3359 = vmatpush1.msra.mxu0 0.0
    %3360 = vmatprep.subr.mxu0 0.0
    %3361 = vmatpush1.msra.mxu0 0.0
    %3362 = vmatprep.subr.mxu0 0.0
    %3363 = vmatpush1.msra.mxu0 0.0
    %3364 = vmatprep.subr.mxu0 0.0
    %3365 = vmatpush1.msra.mxu0 0.0
    %3366 = vmatprep.subr.mxu0 0.0
    %3367 = vmatpush1.msra.mxu0 0.0
    %3368 = vmatprep.subr.mxu0 0.0
    %3369 = vmatpush1.msra.mxu0 0.0
    %3370 = vmatprep.subr.mxu0 0.0
    %3371 = vmatpush1.msra.mxu0 0.0
    %3372 = vmatprep.subr.mxu0 0.0
    %3373 = vmatpush1.msra.mxu0 0.0
    %3374 = vmatprep.subr.mxu0 0.0
    %3375 = vmatpush1.msra.mxu0 0.0
    %3376 = vmatprep.subr.mxu0 0.0
    %3377 = vmatpush1.msra.mxu0 0.0
    %3378 = vmatprep.subr.mxu0 0.0
    %3379 = vmatpush1.msra.mxu0 0.0
    %3380 = vmatprep.subr.mxu0 0.0
    %3381 = vmatpush1.msra.mxu0 0.0
    %3382 = vmatprep.subr.mxu0 0.0
    %3383 = vmatpush1.msra.mxu0 0.0
    %3384 = vmatprep.mubr.f32.mxu0 0.0
    %3385 = vmatmul.mubr.f32.gmra.mrb[0].mxu0 %v3294
    %v3386 = vpop.f32.mrb[0].mxu0
    %v3387 = vadd.f32 %v3318, %v3386
    %v3388 = vpop.f32.mrb[0].mxu0
    %3389 = vdwg.mxu0
    %v3390 = vmax.f32 %v3387, 0.0
    %s3391 = scalar_lea.vmem [#allocation4], 896
    %v3392 = vld [vmem:[%s3391] sm:$0xff]
    %v3393 = vld [vmem:[%s3391 + $0x8] sm:$0xff]
    %v3394 = vld [vmem:[%s3391 + $0x10] sm:$0xff]
    %v3395 = vld [vmem:[%s3391 + $0x18] sm:$0xff]
    %v3396 = vld [vmem:[%s3391 + $0x20] sm:$0xff]
    %v3397 = vld [vmem:[%s3391 + $0x28] sm:$0xff]
    %v3398 = vld [vmem:[%s3391 + $0x30] sm:$0xff]
    %v3399 = vld [vmem:[%s3391 + $0x38] sm:$0xff]
    %v3400 = vld [vmem:[%s3391 + $0x40] sm:$0xff]
    %v3401 = vld [vmem:[%s3391 + $0x48] sm:$0xff]
    %v3402 = vld [vmem:[%s3391 + $0x50] sm:$0xff]
    %v3403 = vld [vmem:[%s3391 + $0x58] sm:$0xff]
    %v3404 = vld [vmem:[%s3391 + $0x60] sm:$0xff]
    %v3405 = vld [vmem:[%s3391 + $0x68] sm:$0xff]
    %v3406 = vld [vmem:[%s3391 + $0x70] sm:$0xff]
    %v3407 = vld [vmem:[%s3391 + $0x78] sm:$0xff]
    %s3408 = scalar_lea.vmem %s7, 7
    %v3409 = vld [vmem:[%s3408] sm:$0x1]
    %v3411 = vlaneseq
    %v3412 = vshrl.u32 %v3411, 7
    %v3413 = vsub.s32 0, %v3412
    %v3414 = vrot.slane %v3409, %v3413
    %3416 = vmatprep.subr.mxu0 0.0
    %3417 = vmatpush1.msra.mxu0 %v3392
    %3418 = vmatprep.subr.mxu0 0.0
    %3419 = vmatpush1.msra.mxu0 %v3393
    %3420 = vmatprep.subr.mxu0 0.0
    %3421 = vmatpush1.msra.mxu0 %v3394
    %3422 = vmatprep.subr.mxu0 0.0
    %3423 = vmatpush1.msra.mxu0 %v3395
    %3424 = vmatprep.subr.mxu0 0.0
    %3425 = vmatpush1.msra.mxu0 %v3396
    %3426 = vmatprep.subr.mxu0 0.0
    %3427 = vmatpush1.msra.mxu0 %v3397
    %3428 = vmatprep.subr.mxu0 0.0
    %3429 = vmatpush1.msra.mxu0 %v3398
    %3430 = vmatprep.subr.mxu0 0.0
    %3431 = vmatpush1.msra.mxu0 %v3399
    %3432 = vmatprep.subr.mxu0 0.0
    %3433 = vmatpush1.msra.mxu0 %v3400
    %3434 = vmatprep.subr.mxu0 0.0
    %3435 = vmatpush1.msra.mxu0 %v3401
    %3436 = vmatprep.subr.mxu0 0.0
    %3437 = vmatpush1.msra.mxu0 %v3402
    %3438 = vmatprep.subr.mxu0 0.0
    %3439 = vmatpush1.msra.mxu0 %v3403
    %3440 = vmatprep.subr.mxu0 0.0
    %3441 = vmatpush1.msra.mxu0 %v3404
    %3442 = vmatprep.subr.mxu0 0.0
    %3443 = vmatpush1.msra.mxu0 %v3405
    %3444 = vmatprep.subr.mxu0 0.0
    %3445 = vmatpush1.msra.mxu0 %v3406
    %3446 = vmatprep.subr.mxu0 0.0
    %3447 = vmatpush1.msra.mxu0 %v3407
    %3448 = vmatprep.subr.mxu0 0.0
    %3449 = vmatpush1.msra.mxu0 0.0
    %3450 = vmatprep.subr.mxu0 0.0
    %3451 = vmatpush1.msra.mxu0 0.0
    %3452 = vmatprep.subr.mxu0 0.0
    %3453 = vmatpush1.msra.mxu0 0.0
    %3454 = vmatprep.subr.mxu0 0.0
    %3455 = vmatpush1.msra.mxu0 0.0
    %3456 = vmatprep.subr.mxu0 0.0
    %3457 = vmatpush1.msra.mxu0 0.0
    %3458 = vmatprep.subr.mxu0 0.0
    %3459 = vmatpush1.msra.mxu0 0.0
    %3460 = vmatprep.subr.mxu0 0.0
    %3461 = vmatpush1.msra.mxu0 0.0
    %3462 = vmatprep.subr.mxu0 0.0
    %3463 = vmatpush1.msra.mxu0 0.0
    %3464 = vmatprep.subr.mxu0 0.0
    %3465 = vmatpush1.msra.mxu0 0.0
    %3466 = vmatprep.subr.mxu0 0.0
    %3467 = vmatpush1.msra.mxu0 0.0
    %3468 = vmatprep.subr.mxu0 0.0
    %3469 = vmatpush1.msra.mxu0 0.0
    %3470 = vmatprep.subr.mxu0 0.0
    %3471 = vmatpush1.msra.mxu0 0.0
    %3472 = vmatprep.subr.mxu0 0.0
    %3473 = vmatpush1.msra.mxu0 0.0
    %3474 = vmatprep.subr.mxu0 0.0
    %3475 = vmatpush1.msra.mxu0 0.0
    %3476 = vmatprep.subr.mxu0 0.0
    %3477 = vmatpush1.msra.mxu0 0.0
    %3478 = vmatprep.subr.mxu0 0.0
    %3479 = vmatpush1.msra.mxu0 0.0
    %3480 = vmatprep.mubr.f32.mxu0 0.0
    %3481 = vmatmul.mubr.f32.gmra.mrb[0].mxu0 %v3390
    %v3482 = vpop.f32.mrb[0].mxu0
    %v3483 = vadd.f32 %v3414, %v3482
    %v3484 = vpop.f32.mrb[0].mxu0
    %3485 = vdwg.mxu0
    %v3486 = vmax.f32 %v3483, 0.0
    %v3487 = vadd.f32 %v3486, %v3294
    %vm3488 = vcmask 1041408
    %v3489 = vsel %vm3488, %v1765, 0.0
    %v3490 = vsel %vm3488, %v2011, 0.0
    %v3491 = vadd.f32 %v3489, %v3490
    %v3492 = vsel %vm3488, %v2257, 0.0
    %v3493 = vadd.f32 %v3491, %v3492
    %v3494 = vsel %vm3488, %v2503, 0.0
    %v3495 = vadd.f32 %v3493, %v3494
    %v3496 = vsel %vm3488, %v2749, 0.0
    %v3497 = vadd.f32 %v3495, %v3496
    %v3498 = vsel %vm3488, %v2995, 0.0
    %v3499 = vadd.f32 %v3497, %v3498
    %v3500 = vsel %vm3488, %v3241, 0.0
    %v3501 = vadd.f32 %v3499, %v3500
    %v3502 = vsel %vm3488, %v3487, 0.0
    %v3503 = vadd.f32 %v3501, %v3502
    %3504 = vadd.xlane.f32.xlu0 %v3503
    %v3505 = vpop.xlane.xlu0 %3504
    %v3506 = vrcp.pop 1024.0
    %v3507 = vmul.f32 %v3505, %v3506
    %v3508 = vsub.f32 %v1765, %v3507
    %v3509 = vsub.f32 %v2011, %v3507
    %v3510 = vsub.f32 %v2257, %v3507
    %v3511 = vsub.f32 %v2503, %v3507
    %v3512 = vsub.f32 %v2749, %v3507
    %v3513 = vsub.f32 %v2995, %v3507
    %v3514 = vsub.f32 %v3241, %v3507
    %v3515 = vsub.f32 %v3487, %v3507
    %v3516 = vmul.f32 %v3508, %v3508
    %v3517 = vmul.f32 %v3509, %v3509
    %v3518 = vmul.f32 %v3510, %v3510
    %v3519 = vmul.f32 %v3511, %v3511
    %v3520 = vmul.f32 %v3512, %v3512
    %v3521 = vmul.f32 %v3513, %v3513
    %v3522 = vmul.f32 %v3514, %v3514
    %v3523 = vmul.f32 %v3515, %v3515
    %v3524 = vsel %vm3488, %v3516, 0.0
    %v3525 = vsel %vm3488, %v3517, 0.0
    %v3526 = vadd.f32 %v3524, %v3525
    %v3527 = vsel %vm3488, %v3518, 0.0
    %v3528 = vadd.f32 %v3526, %v3527
    %v3529 = vsel %vm3488, %v3519, 0.0
    %v3530 = vadd.f32 %v3528, %v3529
    %v3531 = vsel %vm3488, %v3520, 0.0
    %v3532 = vadd.f32 %v3530, %v3531
    %v3533 = vsel %vm3488, %v3521, 0.0
    %v3534 = vadd.f32 %v3532, %v3533
    %v3535 = vsel %vm3488, %v3522, 0.0
    %v3536 = vadd.f32 %v3534, %v3535
    %v3537 = vsel %vm3488, %v3523, 0.0
    %v3538 = vadd.f32 %v3536, %v3537
    %3539 = vadd.xlane.f32.xlu0 %v3538
    %v3540 = vpop.xlane.xlu0 %3539
    %v3541 = vmul.f32 %v3540, %v3506
    %v3542 = vadd.f32 %v3541, 1e-05
    %v3543 = vrsqrt.pop %v3542
    %v3544 = vmul.f32 %v3508, %v3543
    %v3545 = vmul.f32 %v3509, %v3543
    %v3546 = vmul.f32 %v3510, %v3543
    %v3547 = vmul.f32 %v3511, %v3543
    %v3548 = vmul.f32 %v3512, %v3543
    %v3549 = vmul.f32 %v3513, %v3543
    %v3550 = vmul.f32 %v3514, %v3543
    %v3551 = vmul.f32 %v3515, %v3543
    %v3560 = vcombine.low %v3544, %v3545
    %v3561 = vcombine.low %v3546, %v3547
    %v3563 = vunpack.c.l.s4 1983009808
    %v3564 = vunpack.c.0.s8 %v3563
    %v3565 = vlaneseq
    %v3566 = vshrl.u32 %v3565, 7
    %v3567 = vsub.s32 %v3564, %v3566
    %v3568 = vrot.slane %v3560, %v3567
    %v3570 = vunpack.c.l.s4 1983009808
    %v3571 = vunpack.c.0.s8 %v3570
    %v3572 = vlaneseq
    %v3573 = vshrl.u32 %v3572, 7
    %v3574 = vsub.s32 %v3571, %v3573
    %v3575 = vrot.slane %v3561, %v3574
    %v3576 = vcombine.low %v3568, %v3575
    %v3577 = vcombine.low %v3548, %v3549
    %v3578 = vcombine.low %v3550, %v3551
    %v3580 = vunpack.c.l.s4 1983009808
    %v3581 = vunpack.c.0.s8 %v3580
    %v3582 = vlaneseq
    %v3583 = vshrl.u32 %v3582, 7
    %v3584 = vsub.s32 %v3581, %v3583
    %v3585 = vrot.slane %v3577, %v3584
    %v3587 = vunpack.c.l.s4 1983009808
    %v3588 = vunpack.c.0.s8 %v3587
    %v3589 = vlaneseq
    %v3590 = vshrl.u32 %v3589, 7
    %v3591 = vsub.s32 %v3588, %v3590
    %v3592 = vrot.slane %v3578, %v3591
    %v3593 = vcombine.low %v3585, %v3592
    %3596 = vst [vmem:[%s8] sm:$0xff] %v3576
    %3597 = vst [vmem:[%s8 + $0x8] sm:$0xff] %v3593
    // Predicated region
    $region42: #{encoder_forward.1} parent=1 // pred_check
      _
    $region43: #{encoder_forward.1} parent=1 // pred_check_branch
      %3599 = sbr.rel (0) target = $region45
    $region44: #{encoder_forward.1} parent=1 // pred_region
      _
    $region45: #{encoder_forward.1} parent=1 // pred_fallthru
      _
    // Predicated region
    $region46: #{encoder_forward.1} parent=1 // pred_check
      _
    $region47: #{encoder_forward.1} parent=1 // pred_check_branch
      %3601 = sbr.rel (0) target = $region49
    $region48: #{encoder_forward.1} parent=1 // pred_region
      _
    $region49: #{encoder_forward.1} parent=1 // pred_fallthru
      _
    %3602 = vsyncpa [#allocation3], 1
    %3603 = vsyncpa [#allocation5], 1

</llo_original>
